<compile_context>
chip_gen: v7x
topology: tpu7x:2x2x1
jax: 0.10.0
libtpu: 0.0.40
codegen_flags: <defaults>
</compile_context>

<pallas_src>
import functools

import jax
import jax.numpy as jnp
import numpy as np
from jax.experimental import pallas as pl
from jax.experimental.pallas import tpu as pltpu

EPS = 1e-5
LANE = 128
CDT = jnp.bfloat16                     # MXU operand / intermediate dtype


def _round_up(x, m):
    return (x + m - 1) // m * m


def _detect_vmem_limit():
    try:
        cap = int(pltpu.get_tpu_info().vmem_capacity_bytes)
    except Exception:
        cap = 64 * 1024 * 1024          # conservative fallback (v7x physical)
    return max(32 * 1024 * 1024, min(cap * 3 // 4, 96 * 1024 * 1024))


VMEM_LIMIT = _detect_vmem_limit()
TM_CAP = 1024 if VMEM_LIMIT >= 80 * 1024 * 1024 else 512   # im2col row tile cap


def _cparams(*sem):
    return pltpu.CompilerParams(dimension_semantics=sem,
                                vmem_limit_bytes=VMEM_LIMIT)


# ---------------------------------------------------------------------------
# Pallas kernels
# ---------------------------------------------------------------------------
def conv3x3_taps_kernel(xa_ref, xb_ref, xc_ref, w_ref, y_ref, sum_ref, ssq_ref):
    """Stride-1 3x3 conv for one output row block, taps gathered in VMEM.

    xa/xb/xc: (N, Wp, Ci) bf16 -- padded input rows ho, ho+1, ho+2.
    w: (3, 3, Ci, Co) bf16.  y: (N, Wo, Co) bf16.  sum/ssq: (1, Co) f32.
    """
    n, wo, co = y_ref.shape
    ci = w_ref.shape[2]
    acc = jnp.zeros((n * wo, co), jnp.float32)
    for dy, xr in enumerate((xa_ref, xb_ref, xc_ref)):
        for dx in range(3):
            patch = xr[:, dx:dx + wo, :].reshape(n * wo, ci)
            acc = acc + jnp.dot(patch, w_ref[dy, dx],
                                preferred_element_type=jnp.float32)
    y_ref[...] = acc.reshape(n, wo, co).astype(y_ref.dtype)
    sum_ref[...] = jnp.sum(acc, axis=0, keepdims=True)
    ssq_ref[...] = jnp.sum(acc * acc, axis=0, keepdims=True)


def conv1x1_kernel(x_ref, w_ref, y_ref, sum_ref, ssq_ref):
    """1x1 conv (projection shortcut) for one output row block, plus stats."""
    n, wo, co = y_ref.shape
    ci = w_ref.shape[0]
    acc = jnp.dot(x_ref[...].reshape(n * wo, ci), w_ref[...],
                  preferred_element_type=jnp.float32)
    y_ref[...] = acc.reshape(n, wo, co).astype(y_ref.dtype)
    sum_ref[...] = jnp.sum(acc, axis=0, keepdims=True)
    ssq_ref[...] = jnp.sum(acc * acc, axis=0, keepdims=True)


def matmul_stats_kernel(p_ref, w_ref, y_ref, sum_ref, ssq_ref):
    """One M-tile of y = patches @ w (f32 accum, bf16 store) + per-tile stats."""
    acc = jnp.dot(p_ref[...], w_ref[...], preferred_element_type=jnp.float32)
    y_ref[...] = acc.astype(y_ref.dtype)
    sum_ref[...] = jnp.sum(acc, axis=0, keepdims=True)
    ssq_ref[...] = jnp.sum(acc * acc, axis=0, keepdims=True)


def bn_relu_kernel(y_ref, s_ref, b_ref, o_ref):
    o_ref[...] = jnp.maximum(
        y_ref[...].astype(jnp.float32) * s_ref[...] + b_ref[...],
        0.0).astype(o_ref.dtype)


def bn_add_bn_relu_kernel(y2_ref, ysc_ref, s2_ref, b2_ref, ssc_ref, bsc_ref, o_ref):
    main = y2_ref[...].astype(jnp.float32) * s2_ref[...] + b2_ref[...]
    sc = ysc_ref[...].astype(jnp.float32) * ssc_ref[...] + bsc_ref[...]
    o_ref[...] = jnp.maximum(main + sc, 0.0).astype(o_ref.dtype)


def bn_add_id_relu_kernel(y2_ref, x_ref, s2_ref, b2_ref, o_ref):
    main = y2_ref[...].astype(jnp.float32) * s2_ref[...] + b2_ref[...]
    o_ref[...] = jnp.maximum(main + x_ref[...].astype(jnp.float32),
                             0.0).astype(o_ref.dtype)


# ---------------------------------------------------------------------------
# Gridded pallas_call wrappers
# ---------------------------------------------------------------------------
def _row_spec(n, wp, ci, dy):
    return pl.BlockSpec((n, None, wp, ci), lambda h: (0, h + dy, 0, 0))


def _conv3x3_s1(xp, w_taps):
    """xp: (N, Ho+2, Wo+2, Ci) bf16 spatially padded; w_taps: (3,3,Ci,Co) bf16."""
    N, Hp, Wp, Ci = xp.shape
    Ho, Wo = Hp - 2, Wp - 2
    Co = w_taps.shape[-1]
    y, s, ss = pl.pallas_call(
        conv3x3_taps_kernel,
        grid=(Ho,),
        in_specs=[_row_spec(N, Wp, Ci, 0),
                  _row_spec(N, Wp, Ci, 1),
                  _row_spec(N, Wp, Ci, 2),
                  pl.BlockSpec((3, 3, Ci, Co), lambda h: (0, 0, 0, 0))],
        out_specs=[pl.BlockSpec((N, None, Wo, Co), lambda h: (0, h, 0, 0)),
                   pl.BlockSpec((None, 1, Co), lambda h: (h, 0, 0)),
                   pl.BlockSpec((None, 1, Co), lambda h: (h, 0, 0))],
        out_shape=(jax.ShapeDtypeStruct((N, Ho, Wo, Co), CDT),
                   jax.ShapeDtypeStruct((Ho, 1, Co), jnp.float32),
                   jax.ShapeDtypeStruct((Ho, 1, Co), jnp.float32)),
        compiler_params=_cparams("parallel"),
    )(xp, xp, xp, w_taps)
    return y, jnp.sum(s, axis=0), jnp.sum(ss, axis=0)


def _conv1x1(xs, w):
    N, Ho, Wo, Ci = xs.shape
    Co = w.shape[-1]
    y, s, ss = pl.pallas_call(
        conv1x1_kernel,
        grid=(Ho,),
        in_specs=[pl.BlockSpec((N, None, Wo, Ci), lambda h: (0, h, 0, 0)),
                  pl.BlockSpec((Ci, Co), lambda h: (0, 0))],
        out_specs=[pl.BlockSpec((N, None, Wo, Co), lambda h: (0, h, 0, 0)),
                   pl.BlockSpec((None, 1, Co), lambda h: (h, 0, 0)),
                   pl.BlockSpec((None, 1, Co), lambda h: (h, 0, 0))],
        out_shape=(jax.ShapeDtypeStruct((N, Ho, Wo, Co), CDT),
                   jax.ShapeDtypeStruct((Ho, 1, Co), jnp.float32),
                   jax.ShapeDtypeStruct((Ho, 1, Co), jnp.float32)),
        compiler_params=_cparams("parallel"),
    )(xs, w)
    return y, jnp.sum(s, axis=0), jnp.sum(ss, axis=0)


def _matmul_stats(p, w, tm):
    mp, k = p.shape
    co = w.shape[1]
    nt = mp // tm
    y, s, ss = pl.pallas_call(
        matmul_stats_kernel,
        grid=(nt,),
        in_specs=[pl.BlockSpec((tm, k), lambda i: (i, 0)),
                  pl.BlockSpec((k, co), lambda i: (0, 0))],
        out_specs=[pl.BlockSpec((tm, co), lambda i: (i, 0)),
                   pl.BlockSpec((None, 1, co), lambda i: (i, 0, 0)),
                   pl.BlockSpec((None, 1, co), lambda i: (i, 0, 0))],
        out_shape=(jax.ShapeDtypeStruct((mp, co), CDT),
                   jax.ShapeDtypeStruct((nt, 1, co), jnp.float32),
                   jax.ShapeDtypeStruct((nt, 1, co), jnp.float32)),
        compiler_params=_cparams("parallel"),
    )(p, w)
    return y, jnp.sum(s, axis=0), jnp.sum(ss, axis=0)


def _bn_relu_4d(y, scale, bias):
    N, Ho, Wo, Co = y.shape
    blk = pl.BlockSpec((N, None, Wo, Co), lambda h: (0, h, 0, 0))
    vec = pl.BlockSpec((1, Co), lambda h: (0, 0))
    return pl.pallas_call(
        bn_relu_kernel, grid=(Ho,),
        in_specs=[blk, vec, vec], out_specs=blk,
        out_shape=jax.ShapeDtypeStruct((N, Ho, Wo, Co), CDT),
        compiler_params=_cparams("parallel"),
    )(y, scale, bias)


def _bn_relu_flat(y, scale, bias, tm):
    mp, co = y.shape
    return pl.pallas_call(
        bn_relu_kernel, grid=(mp // tm,),
        in_specs=[pl.BlockSpec((tm, co), lambda i: (i, 0)),
                  pl.BlockSpec((1, co), lambda i: (0, 0)),
                  pl.BlockSpec((1, co), lambda i: (0, 0))],
        out_specs=pl.BlockSpec((tm, co), lambda i: (i, 0)),
        out_shape=jax.ShapeDtypeStruct((mp, co), CDT),
        compiler_params=_cparams("parallel"),
    )(y, scale, bias)


def _bn_add_bn_relu(y2, ysc, s2, b2, ssc, bsc):
    N, Ho, Wo, Co = y2.shape
    blk = pl.BlockSpec((N, None, Wo, Co), lambda h: (0, h, 0, 0))
    vec = pl.BlockSpec((1, Co), lambda h: (0, 0))
    return pl.pallas_call(
        bn_add_bn_relu_kernel, grid=(Ho,),
        in_specs=[blk, blk, vec, vec, vec, vec], out_specs=blk,
        out_shape=jax.ShapeDtypeStruct((N, Ho, Wo, Co), CDT),
        compiler_params=_cparams("parallel"),
    )(y2, ysc, s2, b2, ssc, bsc)


def _bn_add_id_relu(y2, xid, s2, b2):
    N, Ho, Wo, Co = y2.shape
    blk = pl.BlockSpec((N, None, Wo, Co), lambda h: (0, h, 0, 0))
    vec = pl.BlockSpec((1, Co), lambda h: (0, 0))
    return pl.pallas_call(
        bn_add_id_relu_kernel, grid=(Ho,),
        in_specs=[blk, blk, vec, vec], out_specs=blk,
        out_shape=jax.ShapeDtypeStruct((N, Ho, Wo, Co), CDT),
        compiler_params=_cparams("parallel"),
    )(y2, xid, s2, b2)


# ---------------------------------------------------------------------------
# Layout glue (weights, im2col fallback for strided conv1, BN affine folding)
# ---------------------------------------------------------------------------
def _im2col_3x3(x_nhwc, stride):
    N, H, W, C = x_nhwc.shape
    xp = jnp.pad(x_nhwc, ((0, 0), (1, 1), (1, 1), (0, 0)))
    Ho = (H + 2 - 3) // stride + 1
    Wo = (W + 2 - 3) // stride + 1
    cols = []
    for dy in range(3):
        for dx in range(3):
            cols.append(xp[:, dy:dy + stride * (Ho - 1) + 1:stride,
                           dx:dx + stride * (Wo - 1) + 1:stride, :])
    patches = jnp.stack(cols, axis=3)                 # (N, Ho, Wo, 9, C)
    return patches.reshape(N * Ho * Wo, 9 * C), Ho, Wo


def _pad_cols(v, cp):
    return jnp.pad(v.reshape(1, -1),
                   ((0, 0), (0, cp - v.shape[-1]))).astype(jnp.float32)


def _bn_affine(s, ss, m, gamma, beta):
    """Fold training-mode BN (biased var) into per-channel scale/bias."""
    mean = s / m
    var = jnp.maximum(ss / m - mean * mean, 0.0)       # guard cancellation
    scale = gamma * jax.lax.rsqrt(var + EPS)
    return scale, beta - mean * scale


def _w3x3_taps(w, cip, cop):
    co, ci = w.shape[0], w.shape[1]
    wt = jnp.transpose(w, (2, 3, 1, 0))                # (3, 3, Cin, Cout)
    return jnp.pad(wt, ((0, 0), (0, 0), (0, cip - ci), (0, cop - co))).astype(CDT)


def _w3x3_flat(w, kp, cop):
    co, ci = w.shape[0], w.shape[1]
    wm = jnp.transpose(w, (2, 3, 1, 0)).reshape(9 * ci, co)
    return jnp.pad(wm, ((0, kp - 9 * ci), (0, cop - co))).astype(CDT)


def _tile_m(m):
    tm = min(TM_CAP, _round_up(m, 16))
    return _round_up(m, tm), tm


def init_params(key, in_channels, out_channels, stride):
    k1, k2, k3 = jax.random.split(key, 3)
    p = {
        "w1": 0.1 * jax.random.normal(k1, (out_channels, in_channels, 3, 3), jnp.float32),
        "g1": jnp.ones((out_channels,), jnp.float32),
        "b1": jnp.zeros((out_channels,), jnp.float32),
        "w2": 0.1 * jax.random.normal(k2, (out_channels, out_channels, 3, 3), jnp.float32),
        "g2": jnp.ones((out_channels,), jnp.float32),
        "b2": jnp.zeros((out_channels,), jnp.float32),
    }
    if stride != 1 or in_channels != out_channels:
        p["wsc"] = 0.1 * jax.random.normal(k3, (out_channels, in_channels, 1, 1), jnp.float32)
        p["gsc"] = jnp.ones((out_channels,), jnp.float32)
        p["bsc"] = jnp.zeros((out_channels,), jnp.float32)
    return p


@functools.partial(jax.jit, static_argnames=("stride",))
def residual_block_pallas(x_nchw, params, stride):
    x = jnp.transpose(x_nchw, (0, 2, 3, 1)).astype(jnp.float32)     # NHWC
    N, H, W, Cin = x.shape
    Cout = params["w1"].shape[0]
    Cp = _round_up(Cout, LANE)                    # lane-dense channel padding
    Cinp = _round_up(Cin, LANE)
    use_projection = (stride != 1) or (Cin != Cout)

    # ---- conv1 (3x3, stride) + bn1 + relu -----------------------------------
    if stride == 1:
        Ho, Wo = H, W
        M = N * Ho * Wo
        xp1 = jnp.pad(x, ((0, 0), (1, 1), (1, 1), (0, Cinp - Cin))).astype(CDT)
        w1t = _w3x3_taps(params["w1"], Cinp, Cp)
        y1, s1, ss1 = _conv3x3_s1(xp1, w1t)       # taps gathered in-kernel
        sc1, bi1 = _bn_affine(s1, ss1, M, _pad_cols(params["g1"], Cp),
                              _pad_cols(params["b1"], Cp))
        out1 = _bn_relu_4d(y1, sc1, bi1)          # (N, Ho, Wo, Cp) bf16
    else:
        # TODO(synk): strided conv1 still materializes im2col patches in HBM;
        # an even/odd-column tap-gather kernel would remove this path too.
        p1, Ho, Wo = _im2col_3x3(x, stride)
        M = N * Ho * Wo
        K1p = _round_up(9 * Cin, LANE)
        Mp, TM = _tile_m(M)
        p1 = jnp.pad(p1, ((0, Mp - M), (0, K1p - 9 * Cin))).astype(CDT)
        w1m = _w3x3_flat(params["w1"], K1p, Cp)
        y1, s1, ss1 = _matmul_stats(p1, w1m, TM)
        sc1, bi1 = _bn_affine(s1, ss1, M, _pad_cols(params["g1"], Cp),
                              _pad_cols(params["b1"], Cp))
        out1 = _bn_relu_flat(y1, sc1, bi1, TM)[:M].reshape(N, Ho, Wo, Cp)

    # ---- conv2 (3x3, stride 1) + bn2 ----------------------------------------
    # TODO(synk): BN1+ReLU could be fused into conv2's tap loads if the zero
    # spatial halo were reproduced in-kernel (padding must stay exactly 0).
    out1p = jnp.pad(out1, ((0, 0), (1, 1), (1, 1), (0, 0)))
    w2t = _w3x3_taps(params["w2"], Cp, Cp)
    y2, s2, ss2 = _conv3x3_s1(out1p, w2t)
    sc2, bi2 = _bn_affine(s2, ss2, M, _pad_cols(params["g2"], Cp),
                          _pad_cols(params["b2"], Cp))

    # ---- shortcut + add + relu (static Python branch) -----------------------
    if use_projection:
        xs = x[:, ::stride, ::stride, :]          # 1x1 conv input, stride s
        xs = jnp.pad(xs, ((0, 0), (0, 0), (0, 0), (0, Cinp - Cin))).astype(CDT)
        wsc = jnp.pad(params["wsc"].reshape(Cout, Cin).T,
                      ((0, Cinp - Cin), (0, Cp - Cout))).astype(CDT)
        ysc, ssum, ssq = _conv1x1(xs, wsc)
        scsc, bisc = _bn_affine(ssum, ssq, M, _pad_cols(params["gsc"], Cp),
                                _pad_cols(params["bsc"], Cp))
        out = _bn_add_bn_relu(y2, ysc, sc2, bi2, scsc, bisc)
    else:
        xid = jnp.pad(x, ((0, 0), (0, 0), (0, 0), (0, Cp - Cin))).astype(CDT)
        out = _bn_add_id_relu(y2, xid, sc2, bi2)

    out = out[..., :Cout]                          # drop channel padding
    return jnp.transpose(out, (0, 3, 1, 2)).astype(x_nchw.dtype)    # NCHW


# ---------------------------------------------------------------------------
# Pure-JAX reference (mirrors PyTorch forward in training mode, f32 HIGHEST)
# ---------------------------------------------------------------------------
def residual_block_ref(x_nchw, params, stride):
    x = jnp.transpose(x_nchw, (0, 2, 3, 1)).astype(jnp.float32)

    def conv(xx, w, s, pad):
        return jax.lax.conv_general_dilated(
            xx, jnp.transpose(w, (2, 3, 1, 0)), (s, s),
            [(pad, pad), (pad, pad)],
            dimension_numbers=("NHWC", "HWIO", "NHWC"),
            precision=jax.lax.Precision.HIGHEST)

    def bn(y, g, b):
        m = jnp.mean(y, axis=(0, 1, 2), keepdims=True)
        v = jnp.mean(jnp.square(y - m), axis=(0, 1, 2), keepdims=True)
        return (y - m) * jax.lax.rsqrt(v + EPS) * g.reshape(1, 1, 1, -1) + b.reshape(1, 1, 1, -1)

    out = jax.nn.relu(bn(conv(x, params["w1"], stride, 1), params["g1"], params["b1"]))
    out = bn(conv(out, params["w2"], 1, 1), params["g2"], params["b2"])
    Cin, Cout = x.shape[-1], params["w1"].shape[0]
    if stride != 1 or Cin != Cout:
        sc = bn(conv(x, params["wsc"], stride, 0), params["gsc"], params["bsc"])
    else:
        sc = x
    out = jax.nn.relu(out + sc)
    return jnp.transpose(out, (0, 3, 1, 2))


if __name__ == "__main__":
    key = jax.random.PRNGKey(0)
    k1, k2, k3, k4 = jax.random.split(key, 4)

    # Case 1: projection shortcut (stride=2, channel change)
    N, Cin, Cout, H, W, stride = 2, 4, 8, 16, 16, 2
    x = jax.random.normal(k1, (N, Cin, H, W), jnp.float32)      # NCHW like PyTorch
    params = init_params(k2, Cin, Cout, stride)
    out = jax.block_until_ready(residual_block_pallas(x, params, stride))
    ref = jax.block_until_ready(residual_block_ref(x, params, stride))
    assert out.shape == (N, Cout, H // stride, W // stride), out.shape
    np.testing.assert_allclose(np.asarray(out), np.asarray(ref), rtol=5e-2, atol=5e-2)

    # Case 2: identity shortcut (stride=1, same channels)
    N2, C2, H2, W2 = 2, 8, 16, 16
    x2 = jax.random.normal(k3, (N2, C2, H2, W2), jnp.float32)
    params2 = init_params(k4, C2, C2, 1)
    out2 = jax.block_until_ready(residual_block_pallas(x2, params2, 1))
    ref2 = jax.block_until_ready(residual_block_ref(x2, params2, 1))
    assert out2.shape == (N2, C2, H2, W2), out2.shape
    np.testing.assert_allclose(np.asarray(out2), np.asarray(ref2), rtol=5e-2, atol=5e-2)

    print("KERNEL_OK")
</pallas_src>

<mosaic_0001>
module attributes {stable_mosaic.version = 11 : i64} {
  func.func @conv1x1_kernel(%arg0: i32, %arg1: memref<2x1x8x128xbf16, #tpu.memory_space<vmem>>, %arg2: memref<128x128xbf16, #tpu.memory_space<vmem>>, %arg3: memref<2x1x8x128xbf16, #tpu.memory_space<vmem>>, %arg4: memref<1x1x128xf32, #tpu.memory_space<vmem>>, %arg5: memref<1x1x128xf32, #tpu.memory_space<vmem>>) attributes {dimension_semantics = [#tpu.dimension_semantics<parallel>], iteration_bounds = array<i64: 8>, scalar_prefetch = 0 : i64, scratch_operands = 0 : i64, tpu.core_type = #tpu.core_type<tc>, window_params = [{transform_indices = @transform_0, window_bounds = array<i64: 2, 1, 8, 128>}, {pipeline_mode = #tpu.pipeline_mode<synchronous>, transform_indices = @transform_1, window_bounds = array<i64: 128, 128>}, {transform_indices = @transform_2, window_bounds = array<i64: 2, 1, 8, 128>}, {transform_indices = @transform_3, window_bounds = array<i64: 1, 1, 128>}, {transform_indices = @transform_4, window_bounds = array<i64: 1, 1, 128>}]} {
    %c0 = arith.constant 0 : index
    %c0_0 = arith.constant 0 : index
    %c0_1 = arith.constant 0 : index
    %c0_2 = arith.constant 0 : index
    %0 = vector.load %arg1[%c0, %c0_0, %c0_1, %c0_2] : memref<2x1x8x128xbf16, #tpu.memory_space<vmem>>, vector<2x1x8x128xbf16>
    %1 = vector.shape_cast %0 : vector<2x1x8x128xbf16> to vector<2x8x128xbf16>
    %2 = vector.shape_cast %1 : vector<2x8x128xbf16> to vector<16x128xbf16>
    %c0_3 = arith.constant 0 : index
    %c0_4 = arith.constant 0 : index
    %3 = vector.load %arg2[%c0_3, %c0_4] : memref<128x128xbf16, #tpu.memory_space<vmem>>, vector<128x128xbf16>
    %cst = arith.constant dense<0.000000e+00> : vector<16x128xf32>
    %4 = tpu.matmul %2, %3, %cst {dimension_numbers = #tpu.dot_dimension_numbers<[1], [0], [0], [1], [0, 0, 1, 1], [], []>} : vector<16x128xbf16>, vector<128x128xbf16>, vector<16x128xf32> -> vector<16x128xf32>
    %5 = vector.shape_cast %4 : vector<16x128xf32> to vector<2x8x128xf32>
    %6 = arith.truncf %5 : vector<2x8x128xf32> to vector<2x8x128xbf16>
    %c0_5 = arith.constant 0 : index
    %c0_6 = arith.constant 0 : index
    %c0_7 = arith.constant 0 : index
    %c0_8 = arith.constant 0 : index
    %7 = vector.load %arg3[%c0_5, %c0_6, %c0_7, %c0_8] : memref<2x1x8x128xbf16, #tpu.memory_space<vmem>>, vector<2x1x8x128xbf16>
    %8 = vector.shape_cast %7 : vector<2x1x8x128xbf16> to vector<2x8x128xbf16>
    %9 = vector.shape_cast %6 : vector<2x8x128xbf16> to vector<2x1x8x128xbf16>
    tpu.vector_store %arg3[%c0_5, %c0_6, %c0_7, %c0_8], %9 {strides = array<i32>} : memref<2x1x8x128xbf16, #tpu.memory_space<vmem>>, vector<2x1x8x128xbf16>,
    %cst_9 = arith.constant dense<0.000000e+00> : vector<128xf32>
    %10 = vector.multi_reduction <add>, %4, %cst_9 [0] : vector<16x128xf32> to vector<128xf32>
    %11 = vector.shape_cast %10 : vector<128xf32> to vector<1x128xf32>
    %c0_10 = arith.constant 0 : index
    %c0_11 = arith.constant 0 : index
    %c0_12 = arith.constant 0 : index
    %12 = vector.load %arg4[%c0_10, %c0_11, %c0_12] : memref<1x1x128xf32, #tpu.memory_space<vmem>>, vector<1x1x128xf32>
    %13 = vector.shape_cast %12 : vector<1x1x128xf32> to vector<1x128xf32>
    %14 = vector.shape_cast %11 : vector<1x128xf32> to vector<1x1x128xf32>
    tpu.vector_store %arg4[%c0_10, %c0_11, %c0_12], %14 {strides = array<i32>} : memref<1x1x128xf32, #tpu.memory_space<vmem>>, vector<1x1x128xf32>,
    %15 = arith.mulf %4, %4 : vector<16x128xf32>
    %cst_13 = arith.constant dense<0.000000e+00> : vector<128xf32>
    %16 = vector.multi_reduction <add>, %15, %cst_13 [0] : vector<16x128xf32> to vector<128xf32>
    %17 = vector.shape_cast %16 : vector<128xf32> to vector<1x128xf32>
    %c0_14 = arith.constant 0 : index
    %c0_15 = arith.constant 0 : index
    %c0_16 = arith.constant 0 : index
    %18 = vector.load %arg5[%c0_14, %c0_15, %c0_16] : memref<1x1x128xf32, #tpu.memory_space<vmem>>, vector<1x1x128xf32>
    %19 = vector.shape_cast %18 : vector<1x1x128xf32> to vector<1x128xf32>
    %20 = vector.shape_cast %17 : vector<1x128xf32> to vector<1x1x128xf32>
    tpu.vector_store %arg5[%c0_14, %c0_15, %c0_16], %20 {strides = array<i32>} : memref<1x1x128xf32, #tpu.memory_space<vmem>>, vector<1x1x128xf32>,
    return
  }
  func.func @transform_0(%arg0: i32) -> (i32, i32, i32, i32) {
    %c0_i32 = arith.constant 0 : i32
    %c0_i32_0 = arith.constant 0 : i32
    %c0_i32_1 = arith.constant 0 : i32
    %c0_i32_2 = arith.constant 0 : i32
    return %c0_i32, %arg0, %c0_i32_0, %c0_i32_1 : i32, i32, i32, i32
  }
  func.func @transform_1(%arg0: i32) -> (i32, i32) {
    %c0_i32 = arith.constant 0 : i32
    %c0_i32_0 = arith.constant 0 : i32
    %c0_i32_1 = arith.constant 0 : i32
    return %c0_i32, %c0_i32_0 : i32, i32
  }
  func.func @transform_2(%arg0: i32) -> (i32, i32, i32, i32) {
    %c0_i32 = arith.constant 0 : i32
    %c0_i32_0 = arith.constant 0 : i32
    %c0_i32_1 = arith.constant 0 : i32
    %c0_i32_2 = arith.constant 0 : i32
    return %c0_i32, %arg0, %c0_i32_0, %c0_i32_1 : i32, i32, i32, i32
  }
  func.func @transform_3(%arg0: i32) -> (i32, i32, i32) {
    %c0_i32 = arith.constant 0 : i32
    %c0_i32_0 = arith.constant 0 : i32
    %c0_i32_1 = arith.constant 0 : i32
    return %arg0, %c0_i32, %c0_i32_0 : i32, i32, i32
  }
  func.func @transform_4(%arg0: i32) -> (i32, i32, i32) {
    %c0_i32 = arith.constant 0 : i32
    %c0_i32_0 = arith.constant 0 : i32
    %c0_i32_1 = arith.constant 0 : i32
    return %arg0, %c0_i32, %c0_i32_0 : i32, i32, i32
  }
}

module attributes {stable_mosaic.version = 11 : i64} {
  func.func @matmul_stats_kernel(%arg0: i32, %arg1: memref<128x128xbf16, #tpu.memory_space<vmem>>, %arg2: memref<128x128xbf16, #tpu.memory_space<vmem>>, %arg3: memref<128x128xbf16, #tpu.memory_space<vmem>>, %arg4: memref<1x1x128xf32, #tpu.memory_space<vmem>>, %arg5: memref<1x1x128xf32, #tpu.memory_space<vmem>>) attributes {dimension_semantics = [#tpu.dimension_semantics<parallel>], iteration_bounds = array<i64: 1>, scalar_prefetch = 0 : i64, scratch_operands = 0 : i64, tpu.core_type = #tpu.core_type<tc>, window_params = [{transform_indices = @transform_0, window_bounds = array<i64: 128, 128>}, {pipeline_mode = #tpu.pipeline_mode<synchronous>, transform_indices = @transform_1, window_bounds = array<i64: 128, 128>}, {transform_indices = @transform_2, window_bounds = array<i64: 128, 128>}, {transform_indices = @transform_3, window_bounds = array<i64: 1, 1, 128>}, {transform_indices = @transform_4, window_bounds = array<i64: 1, 1, 128>}]} {
    %c0 = arith.constant 0 : index
    %c0_0 = arith.constant 0 : index
    %0 = vector.load %arg1[%c0, %c0_0] : memref<128x128xbf16, #tpu.memory_space<vmem>>, vector<128x128xbf16>
    %c0_1 = arith.constant 0 : index
    %c0_2 = arith.constant 0 : index
    %1 = vector.load %arg2[%c0_1, %c0_2] : memref<128x128xbf16, #tpu.memory_space<vmem>>, vector<128x128xbf16>
    %cst = arith.constant dense<0.000000e+00> : vector<128x128xf32>
    %2 = tpu.matmul %0, %1, %cst {dimension_numbers = #tpu.dot_dimension_numbers<[1], [0], [0], [1], [0, 0, 1, 1], [], []>} : vector<128x128xbf16>, vector<128x128xbf16>, vector<128x128xf32> -> vector<128x128xf32>
    %3 = arith.truncf %2 : vector<128x128xf32> to vector<128x128xbf16>
    %c0_3 = arith.constant 0 : index
    %c0_4 = arith.constant 0 : index
    %4 = vector.load %arg3[%c0_3, %c0_4] : memref<128x128xbf16, #tpu.memory_space<vmem>>, vector<128x128xbf16>
    tpu.vector_store %arg3[%c0_3, %c0_4], %3 {strides = array<i32>} : memref<128x128xbf16, #tpu.memory_space<vmem>>, vector<128x128xbf16>,
    %cst_5 = arith.constant dense<0.000000e+00> : vector<128xf32>
    %5 = vector.multi_reduction <add>, %2, %cst_5 [0] : vector<128x128xf32> to vector<128xf32>
    %6 = vector.shape_cast %5 : vector<128xf32> to vector<1x128xf32>
    %c0_6 = arith.constant 0 : index
    %c0_7 = arith.constant 0 : index
    %c0_8 = arith.constant 0 : index
    %7 = vector.load %arg4[%c0_6, %c0_7, %c0_8] : memref<1x1x128xf32, #tpu.memory_space<vmem>>, vector<1x1x128xf32>
    %8 = vector.shape_cast %7 : vector<1x1x128xf32> to vector<1x128xf32>
    %9 = vector.shape_cast %6 : vector<1x128xf32> to vector<1x1x128xf32>
    tpu.vector_store %arg4[%c0_6, %c0_7, %c0_8], %9 {strides = array<i32>} : memref<1x1x128xf32, #tpu.memory_space<vmem>>, vector<1x1x128xf32>,
    %10 = arith.mulf %2, %2 : vector<128x128xf32>
    %cst_9 = arith.constant dense<0.000000e+00> : vector<128xf32>
    %11 = vector.multi_reduction <add>, %10, %cst_9 [0] : vector<128x128xf32> to vector<128xf32>
    %12 = vector.shape_cast %11 : vector<128xf32> to vector<1x128xf32>
    %c0_10 = arith.constant 0 : index
    %c0_11 = arith.constant 0 : index
    %c0_12 = arith.constant 0 : index
    %13 = vector.load %arg5[%c0_10, %c0_11, %c0_12] : memref<1x1x128xf32, #tpu.memory_space<vmem>>, vector<1x1x128xf32>
    %14 = vector.shape_cast %13 : vector<1x1x128xf32> to vector<1x128xf32>
    %15 = vector.shape_cast %12 : vector<1x128xf32> to vector<1x1x128xf32>
    tpu.vector_store %arg5[%c0_10, %c0_11, %c0_12], %15 {strides = array<i32>} : memref<1x1x128xf32, #tpu.memory_space<vmem>>, vector<1x1x128xf32>,
    return
  }
  func.func @transform_0(%arg0: i32) -> (i32, i32) {
    %c0_i32 = arith.constant 0 : i32
    %c0_i32_0 = arith.constant 0 : i32
    return %arg0, %c0_i32 : i32, i32
  }
  func.func @transform_1(%arg0: i32) -> (i32, i32) {
    %c0_i32 = arith.constant 0 : i32
    %c0_i32_0 = arith.constant 0 : i32
    %c0_i32_1 = arith.constant 0 : i32
    return %c0_i32, %c0_i32_0 : i32, i32
  }
  func.func @transform_2(%arg0: i32) -> (i32, i32) {
    %c0_i32 = arith.constant 0 : i32
    %c0_i32_0 = arith.constant 0 : i32
    return %arg0, %c0_i32 : i32, i32
  }
  func.func @transform_3(%arg0: i32) -> (i32, i32, i32) {
    %c0_i32 = arith.constant 0 : i32
    %c0_i32_0 = arith.constant 0 : i32
    %c0_i32_1 = arith.constant 0 : i32
    return %arg0, %c0_i32, %c0_i32_0 : i32, i32, i32
  }
  func.func @transform_4(%arg0: i32) -> (i32, i32, i32) {
    %c0_i32 = arith.constant 0 : i32
    %c0_i32_0 = arith.constant 0 : i32
    %c0_i32_1 = arith.constant 0 : i32
    return %arg0, %c0_i32, %c0_i32_0 : i32, i32, i32
  }
}

module attributes {stable_mosaic.version = 11 : i64} {
  func.func @bn_relu_kernel(%arg0: i32, %arg1: memref<128x128xbf16, #tpu.memory_space<vmem>>, %arg2: memref<1x128xf32, #tpu.memory_space<vmem>>, %arg3: memref<1x128xf32, #tpu.memory_space<vmem>>, %arg4: memref<128x128xbf16, #tpu.memory_space<vmem>>) attributes {dimension_semantics = [#tpu.dimension_semantics<parallel>], iteration_bounds = array<i64: 1>, scalar_prefetch = 0 : i64, scratch_operands = 0 : i64, tpu.core_type = #tpu.core_type<tc>, window_params = [{transform_indices = @transform_0, window_bounds = array<i64: 128, 128>}, {pipeline_mode = #tpu.pipeline_mode<synchronous>, transform_indices = @transform_1, window_bounds = array<i64: 1, 128>}, {pipeline_mode = #tpu.pipeline_mode<synchronous>, transform_indices = @transform_2, window_bounds = array<i64: 1, 128>}, {transform_indices = @transform_3, window_bounds = array<i64: 128, 128>}]} {
    %c0 = arith.constant 0 : index
    %c0_0 = arith.constant 0 : index
    %0 = vector.load %arg1[%c0, %c0_0] : memref<128x128xbf16, #tpu.memory_space<vmem>>, vector<128x128xbf16>
    %1 = arith.extf %0 : vector<128x128xbf16> to vector<128x128xf32>
    %c0_1 = arith.constant 0 : index
    %c0_2 = arith.constant 0 : index
    %2 = vector.load %arg2[%c0_1, %c0_2] : memref<1x128xf32, #tpu.memory_space<vmem>>, vector<1x128xf32>
    %3 = vector.broadcast %2 : vector<1x128xf32> to vector<128x128xf32>
    %4 = arith.mulf %1, %3 : vector<128x128xf32>
    %c0_3 = arith.constant 0 : index
    %c0_4 = arith.constant 0 : index
    %5 = vector.load %arg3[%c0_3, %c0_4] : memref<1x128xf32, #tpu.memory_space<vmem>>, vector<1x128xf32>
    %6 = vector.broadcast %5 : vector<1x128xf32> to vector<128x128xf32>
    %7 = arith.addf %4, %6 : vector<128x128xf32>
    %cst = arith.constant 0.000000e+00 : f32
    %8 = vector.broadcast %cst : f32 to vector<128x128xf32>
    %9 = arith.maximumf %7, %8 : vector<128x128xf32>
    %10 = arith.truncf %9 : vector<128x128xf32> to vector<128x128xbf16>
    %c0_5 = arith.constant 0 : index
    %c0_6 = arith.constant 0 : index
    %11 = vector.load %arg4[%c0_5, %c0_6] : memref<128x128xbf16, #tpu.memory_space<vmem>>, vector<128x128xbf16>
    tpu.vector_store %arg4[%c0_5, %c0_6], %10 {strides = array<i32>} : memref<128x128xbf16, #tpu.memory_space<vmem>>, vector<128x128xbf16>,
    return
  }
  func.func @transform_0(%arg0: i32) -> (i32, i32) {
    %c0_i32 = arith.constant 0 : i32
    %c0_i32_0 = arith.constant 0 : i32
    return %arg0, %c0_i32 : i32, i32
  }
  func.func @transform_1(%arg0: i32) -> (i32, i32) {
    %c0_i32 = arith.constant 0 : i32
    %c0_i32_0 = arith.constant 0 : i32
    %c0_i32_1 = arith.constant 0 : i32
    return %c0_i32, %c0_i32_0 : i32, i32
  }
  func.func @transform_2(%arg0: i32) -> (i32, i32) {
    %c0_i32 = arith.constant 0 : i32
    %c0_i32_0 = arith.constant 0 : i32
    %c0_i32_1 = arith.constant 0 : i32
    return %c0_i32, %c0_i32_0 : i32, i32
  }
  func.func @transform_3(%arg0: i32) -> (i32, i32) {
    %c0_i32 = arith.constant 0 : i32
    %c0_i32_0 = arith.constant 0 : i32
    return %arg0, %c0_i32 : i32, i32
  }
}

module attributes {stable_mosaic.version = 11 : i64} {
  func.func @bn_add_bn_relu_kernel(%arg0: i32, %arg1: memref<2x1x8x128xbf16, #tpu.memory_space<vmem>>, %arg2: memref<2x1x8x128xbf16, #tpu.memory_space<vmem>>, %arg3: memref<1x128xf32, #tpu.memory_space<vmem>>, %arg4: memref<1x128xf32, #tpu.memory_space<vmem>>, %arg5: memref<1x128xf32, #tpu.memory_space<vmem>>, %arg6: memref<1x128xf32, #tpu.memory_space<vmem>>, %arg7: memref<2x1x8x128xbf16, #tpu.memory_space<vmem>>) attributes {dimension_semantics = [#tpu.dimension_semantics<parallel>], iteration_bounds = array<i64: 8>, scalar_prefetch = 0 : i64, scratch_operands = 0 : i64, tpu.core_type = #tpu.core_type<tc>, window_params = [{transform_indices = @transform_0, window_bounds = array<i64: 2, 1, 8, 128>}, {transform_indices = @transform_1, window_bounds = array<i64: 2, 1, 8, 128>}, {pipeline_mode = #tpu.pipeline_mode<synchronous>, transform_indices = @transform_2, window_bounds = array<i64: 1, 128>}, {pipeline_mode = #tpu.pipeline_mode<synchronous>, transform_indices = @transform_3, window_bounds = array<i64: 1, 128>}, {pipeline_mode = #tpu.pipeline_mode<synchronous>, transform_indices = @transform_4, window_bounds = array<i64: 1, 128>}, {pipeline_mode = #tpu.pipeline_mode<synchronous>, transform_indices = @transform_5, window_bounds = array<i64: 1, 128>}, {transform_indices = @transform_6, window_bounds = array<i64: 2, 1, 8, 128>}]} {
    %c0 = arith.constant 0 : index
    %c0_0 = arith.constant 0 : index
    %c0_1 = arith.constant 0 : index
    %c0_2 = arith.constant 0 : index
    %0 = vector.load %arg1[%c0, %c0_0, %c0_1, %c0_2] : memref<2x1x8x128xbf16, #tpu.memory_space<vmem>>, vector<2x1x8x128xbf16>
    %1 = vector.shape_cast %0 : vector<2x1x8x128xbf16> to vector<2x8x128xbf16>
    %2 = arith.extf %1 : vector<2x8x128xbf16> to vector<2x8x128xf32>
    %c0_3 = arith.constant 0 : index
    %c0_4 = arith.constant 0 : index
    %3 = vector.load %arg3[%c0_3, %c0_4] : memref<1x128xf32, #tpu.memory_space<vmem>>, vector<1x128xf32>
    %4 = vector.shape_cast %3 : vector<1x128xf32> to vector<1x1x128xf32>
    %5 = vector.broadcast %4 : vector<1x1x128xf32> to vector<2x8x128xf32>
    %6 = arith.mulf %2, %5 : vector<2x8x128xf32>
    %c0_5 = arith.constant 0 : index
    %c0_6 = arith.constant 0 : index
    %7 = vector.load %arg4[%c0_5, %c0_6] : memref<1x128xf32, #tpu.memory_space<vmem>>, vector<1x128xf32>
    %8 = vector.shape_cast %7 : vector<1x128xf32> to vector<1x1x128xf32>
    %9 = vector.broadcast %8 : vector<1x1x128xf32> to vector<2x8x128xf32>
    %10 = arith.addf %6, %9 : vector<2x8x128xf32>
    %c0_7 = arith.constant 0 : index
    %c0_8 = arith.constant 0 : index
    %c0_9 = arith.constant 0 : index
    %c0_10 = arith.constant 0 : index
    %11 = vector.load %arg2[%c0_7, %c0_8, %c0_9, %c0_10] : memref<2x1x8x128xbf16, #tpu.memory_space<vmem>>, vector<2x1x8x128xbf16>
    %12 = vector.shape_cast %11 : vector<2x1x8x128xbf16> to vector<2x8x128xbf16>
    %13 = arith.extf %12 : vector<2x8x128xbf16> to vector<2x8x128xf32>
    %c0_11 = arith.constant 0 : index
    %c0_12 = arith.constant 0 : index
    %14 = vector.load %arg5[%c0_11, %c0_12] : memref<1x128xf32, #tpu.memory_space<vmem>>, vector<1x128xf32>
    %15 = vector.shape_cast %14 : vector<1x128xf32> to vector<1x1x128xf32>
    %16 = vector.broadcast %15 : vector<1x1x128xf32> to vector<2x8x128xf32>
    %17 = arith.mulf %13, %16 : vector<2x8x128xf32>
    %c0_13 = arith.constant 0 : index
    %c0_14 = arith.constant 0 : index
    %18 = vector.load %arg6[%c0_13, %c0_14] : memref<1x128xf32, #tpu.memory_space<vmem>>, vector<1x128xf32>
    %19 = vector.shape_cast %18 : vector<1x128xf32> to vector<1x1x128xf32>
    %20 = vector.broadcast %19 : vector<1x1x128xf32> to vector<2x8x128xf32>
    %21 = arith.addf %17, %20 : vector<2x8x128xf32>
    %22 = arith.addf %10, %21 : vector<2x8x128xf32>
    %cst = arith.constant 0.000000e+00 : f32
    %23 = vector.broadcast %cst : f32 to vector<2x8x128xf32>
    %24 = arith.maximumf %22, %23 : vector<2x8x128xf32>
    %25 = arith.truncf %24 : vector<2x8x128xf32> to vector<2x8x128xbf16>
    %c0_15 = arith.constant 0 : index
    %c0_16 = arith.constant 0 : index
    %c0_17 = arith.constant 0 : index
    %c0_18 = arith.constant 0 : index
    %26 = vector.load %arg7[%c0_15, %c0_16, %c0_17, %c0_18] : memref<2x1x8x128xbf16, #tpu.memory_space<vmem>>, vector<2x1x8x128xbf16>
    %27 = vector.shape_cast %26 : vector<2x1x8x128xbf16> to vector<2x8x128xbf16>
    %28 = vector.shape_cast %25 : vector<2x8x128xbf16> to vector<2x1x8x128xbf16>
    tpu.vector_store %arg7[%c0_15, %c0_16, %c0_17, %c0_18], %28 {strides = array<i32>} : memref<2x1x8x128xbf16, #tpu.memory_space<vmem>>, vector<2x1x8x128xbf16>,
    return
  }
  func.func @transform_0(%arg0: i32) -> (i32, i32, i32, i32) {
    %c0_i32 = arith.constant 0 : i32
    %c0_i32_0 = arith.constant 0 : i32
    %c0_i32_1 = arith.constant 0 : i32
    %c0_i32_2 = arith.constant 0 : i32
    return %c0_i32, %arg0, %c0_i32_0, %c0_i32_1 : i32, i32, i32, i32
  }
  func.func @transform_1(%arg0: i32) -> (i32, i32, i32, i32) {
    %c0_i32 = arith.constant 0 : i32
    %c0_i32_0 = arith.constant 0 : i32
    %c0_i32_1 = arith.constant 0 : i32
    %c0_i32_2 = arith.constant 0 : i32
    return %c0_i32, %arg0, %c0_i32_0, %c0_i32_1 : i32, i32, i32, i32
  }
  func.func @transform_2(%arg0: i32) -> (i32, i32) {
    %c0_i32 = arith.constant 0 : i32
    %c0_i32_0 = arith.constant 0 : i32
    %c0_i32_1 = arith.constant 0 : i32
    return %c0_i32, %c0_i32_0 : i32, i32
  }
  func.func @transform_3(%arg0: i32) -> (i32, i32) {
    %c0_i32 = arith.constant 0 : i32
    %c0_i32_0 = arith.constant 0 : i32
    %c0_i32_1 = arith.constant 0 : i32
    return %c0_i32, %c0_i32_0 : i32, i32
  }
  func.func @transform_4(%arg0: i32) -> (i32, i32) {
    %c0_i32 = arith.constant 0 : i32
    %c0_i32_0 = arith.constant 0 : i32
    %c0_i32_1 = arith.constant 0 : i32
    return %c0_i32, %c0_i32_0 : i32, i32
  }
  func.func @transform_5(%arg0: i32) -> (i32, i32) {
    %c0_i32 = arith.constant 0 : i32
    %c0_i32_0 = arith.constant 0 : i32
    %c0_i32_1 = arith.constant 0 : i32
    return %c0_i32, %c0_i32_0 : i32, i32
  }
  func.func @transform_6(%arg0: i32) -> (i32, i32, i32, i32) {
    %c0_i32 = arith.constant 0 : i32
    %c0_i32_0 = arith.constant 0 : i32
    %c0_i32_1 = arith.constant 0 : i32
    %c0_i32_2 = arith.constant 0 : i32
    return %c0_i32, %arg0, %c0_i32_0, %c0_i32_1 : i32, i32, i32, i32
  }
}

module attributes {stable_mosaic.version = 11 : i64} {
  func.func @conv3x3_taps_kernel(%arg0: i32, %arg1: memref<2x1x10x128xbf16, #tpu.memory_space<vmem>>, %arg2: memref<2x1x10x128xbf16, #tpu.memory_space<vmem>>, %arg3: memref<2x1x10x128xbf16, #tpu.memory_space<vmem>>, %arg4: memref<3x3x128x128xbf16, #tpu.memory_space<vmem>>, %arg5: memref<2x1x8x128xbf16, #tpu.memory_space<vmem>>, %arg6: memref<1x1x128xf32, #tpu.memory_space<vmem>>, %arg7: memref<1x1x128xf32, #tpu.memory_space<vmem>>) attributes {dimension_semantics = [#tpu.dimension_semantics<parallel>], iteration_bounds = array<i64: 8>, scalar_prefetch = 0 : i64, scratch_operands = 0 : i64, tpu.core_type = #tpu.core_type<tc>, window_params = [{transform_indices = @transform_0, window_bounds = array<i64: 2, 1, 10, 128>}, {transform_indices = @transform_1, window_bounds = array<i64: 2, 1, 10, 128>}, {transform_indices = @transform_2, window_bounds = array<i64: 2, 1, 10, 128>}, {pipeline_mode = #tpu.pipeline_mode<synchronous>, transform_indices = @transform_3, window_bounds = array<i64: 3, 3, 128, 128>}, {transform_indices = @transform_4, window_bounds = array<i64: 2, 1, 8, 128>}, {transform_indices = @transform_5, window_bounds = array<i64: 1, 1, 128>}, {transform_indices = @transform_6, window_bounds = array<i64: 1, 1, 128>}]} {
    %cst = arith.constant 0.000000e+00 : f32
    %0 = vector.broadcast %cst : f32 to vector<16x128xf32>
    %c0 = arith.constant 0 : index
    %c0_0 = arith.constant 0 : index
    %c0_1 = arith.constant 0 : index
    %c0_2 = arith.constant 0 : index
    %1 = vector.load %arg1[%c0, %c0_0, %c0_1, %c0_2] : memref<2x1x10x128xbf16, #tpu.memory_space<vmem>>, vector<2x1x8x128xbf16>
    %2 = vector.shape_cast %1 : vector<2x1x8x128xbf16> to vector<2x8x128xbf16>
    %3 = vector.shape_cast %2 : vector<2x8x128xbf16> to vector<16x128xbf16>
    %c0_3 = arith.constant 0 : index
    %c0_4 = arith.constant 0 : index
    %c0_5 = arith.constant 0 : index
    %c0_6 = arith.constant 0 : index
    %4 = vector.load %arg4[%c0_3, %c0_4, %c0_5, %c0_6] : memref<3x3x128x128xbf16, #tpu.memory_space<vmem>>, vector<1x1x128x128xbf16>
    %5 = vector.shape_cast %4 : vector<1x1x128x128xbf16> to vector<128x128xbf16>
    %cst_7 = arith.constant dense<0.000000e+00> : vector<16x128xf32>
    %6 = tpu.matmul %3, %5, %cst_7 {dimension_numbers = #tpu.dot_dimension_numbers<[1], [0], [0], [1], [0, 0, 1, 1], [], []>} : vector<16x128xbf16>, vector<128x128xbf16>, vector<16x128xf32> -> vector<16x128xf32>
    %7 = arith.addf %0, %6 : vector<16x128xf32>
    %c0_8 = arith.constant 0 : index
    %c0_9 = arith.constant 0 : index
    %c1 = arith.constant 1 : index
    %c0_10 = arith.constant 0 : index
    %8 = vector.load %arg1[%c0_8, %c0_9, %c1, %c0_10] : memref<2x1x10x128xbf16, #tpu.memory_space<vmem>>, vector<2x1x8x128xbf16>
    %9 = vector.shape_cast %8 : vector<2x1x8x128xbf16> to vector<2x8x128xbf16>
    %10 = vector.shape_cast %9 : vector<2x8x128xbf16> to vector<16x128xbf16>
    %c0_11 = arith.constant 0 : index
    %c1_12 = arith.constant 1 : index
    %c0_13 = arith.constant 0 : index
    %c0_14 = arith.constant 0 : index
    %11 = vector.load %arg4[%c0_11, %c1_12, %c0_13, %c0_14] : memref<3x3x128x128xbf16, #tpu.memory_space<vmem>>, vector<1x1x128x128xbf16>
    %12 = vector.shape_cast %11 : vector<1x1x128x128xbf16> to vector<128x128xbf16>
    %cst_15 = arith.constant dense<0.000000e+00> : vector<16x128xf32>
    %13 = tpu.matmul %10, %12, %cst_15 {dimension_numbers = #tpu.dot_dimension_numbers<[1], [0], [0], [1], [0, 0, 1, 1], [], []>} : vector<16x128xbf16>, vector<128x128xbf16>, vector<16x128xf32> -> vector<16x128xf32>
    %14 = arith.addf %7, %13 : vector<16x128xf32>
    %c0_16 = arith.constant 0 : index
    %c0_17 = arith.constant 0 : index
    %c2 = arith.constant 2 : index
    %c0_18 = arith.constant 0 : index
    %15 = vector.load %arg1[%c0_16, %c0_17, %c2, %c0_18] : memref<2x1x10x128xbf16, #tpu.memory_space<vmem>>, vector<2x1x8x128xbf16>
    %16 = vector.shape_cast %15 : vector<2x1x8x128xbf16> to vector<2x8x128xbf16>
    %17 = vector.shape_cast %16 : vector<2x8x128xbf16> to vector<16x128xbf16>
    %c0_19 = arith.constant 0 : index
    %c2_20 = arith.constant 2 : index
    %c0_21 = arith.constant 0 : index
    %c0_22 = arith.constant 0 : index
    %18 = vector.load %arg4[%c0_19, %c2_20, %c0_21, %c0_22] : memref<3x3x128x128xbf16, #tpu.memory_space<vmem>>, vector<1x1x128x128xbf16>
    %19 = vector.shape_cast %18 : vector<1x1x128x128xbf16> to vector<128x128xbf16>
    %cst_23 = arith.constant dense<0.000000e+00> : vector<16x128xf32>
    %20 = tpu.matmul %17, %19, %cst_23 {dimension_numbers = #tpu.dot_dimension_numbers<[1], [0], [0], [1], [0, 0, 1, 1], [], []>} : vector<16x128xbf16>, vector<128x128xbf16>, vector<16x128xf32> -> vector<16x128xf32>
    %21 = arith.addf %14, %20 : vector<16x128xf32>
    %c0_24 = arith.constant 0 : index
    %c0_25 = arith.constant 0 : index
    %c0_26 = arith.constant 0 : index
    %c0_27 = arith.constant 0 : index
    %22 = vector.load %arg2[%c0_24, %c0_25, %c0_26, %c0_27] : memref<2x1x10x128xbf16, #tpu.memory_space<vmem>>, vector<2x1x8x128xbf16>
    %23 = vector.shape_cast %22 : vector<2x1x8x128xbf16> to vector<2x8x128xbf16>
    %24 = vector.shape_cast %23 : vector<2x8x128xbf16> to vector<16x128xbf16>
    %c1_28 = arith.constant 1 : index
    %c0_29 = arith.constant 0 : index
    %c0_30 = arith.constant 0 : index
    %c0_31 = arith.constant 0 : index
    %25 = vector.load %arg4[%c1_28, %c0_29, %c0_30, %c0_31] : memref<3x3x128x128xbf16, #tpu.memory_space<vmem>>, vector<1x1x128x128xbf16>
    %26 = vector.shape_cast %25 : vector<1x1x128x128xbf16> to vector<128x128xbf16>
    %cst_32 = arith.constant dense<0.000000e+00> : vector<16x128xf32>
    %27 = tpu.matmul %24, %26, %cst_32 {dimension_numbers = #tpu.dot_dimension_numbers<[1], [0], [0], [1], [0, 0, 1, 1], [], []>} : vector<16x128xbf16>, vector<128x128xbf16>, vector<16x128xf32> -> vector<16x128xf32>
    %28 = arith.addf %21, %27 : vector<16x128xf32>
    %c0_33 = arith.constant 0 : index
    %c0_34 = arith.constant 0 : index
    %c1_35 = arith.constant 1 : index
    %c0_36 = arith.constant 0 : index
    %29 = vector.load %arg2[%c0_33, %c0_34, %c1_35, %c0_36] : memref<2x1x10x128xbf16, #tpu.memory_space<vmem>>, vector<2x1x8x128xbf16>
    %30 = vector.shape_cast %29 : vector<2x1x8x128xbf16> to vector<2x8x128xbf16>
    %31 = vector.shape_cast %30 : vector<2x8x128xbf16> to vector<16x128xbf16>
    %c1_37 = arith.constant 1 : index
    %c1_38 = arith.constant 1 : index
    %c0_39 = arith.constant 0 : index
    %c0_40 = arith.constant 0 : index
    %32 = vector.load %arg4[%c1_37, %c1_38, %c0_39, %c0_40] : memref<3x3x128x128xbf16, #tpu.memory_space<vmem>>, vector<1x1x128x128xbf16>
    %33 = vector.shape_cast %32 : vector<1x1x128x128xbf16> to vector<128x128xbf16>
    %cst_41 = arith.constant dense<0.000000e+00> : vector<16x128xf32>
    %34 = tpu.matmul %31, %33, %cst_41 {dimension_numbers = #tpu.dot_dimension_numbers<[1], [0], [0], [1], [0, 0, 1, 1], [], []>} : vector<16x128xbf16>, vector<128x128xbf16>, vector<16x128xf32> -> vector<16x128xf32>
    %35 = arith.addf %28, %34 : vector<16x128xf32>
    %c0_42 = arith.constant 0 : index
    %c0_43 = arith.constant 0 : index
    %c2_44 = arith.constant 2 : index
    %c0_45 = arith.constant 0 : index
    %36 = vector.load %arg2[%c0_42, %c0_43, %c2_44, %c0_45] : memref<2x1x10x128xbf16, #tpu.memory_space<vmem>>, vector<2x1x8x128xbf16>
    %37 = vector.shape_cast %36 : vector<2x1x8x128xbf16> to vector<2x8x128xbf16>
    %38 = vector.shape_cast %37 : vector<2x8x128xbf16> to vector<16x128xbf16>
    %c1_46 = arith.constant 1 : index
    %c2_47 = arith.constant 2 : index
    %c0_48 = arith.constant 0 : index
    %c0_49 = arith.constant 0 : index
    %39 = vector.load %arg4[%c1_46, %c2_47, %c0_48, %c0_49] : memref<3x3x128x128xbf16, #tpu.memory_space<vmem>>, vector<1x1x128x128xbf16>
    %40 = vector.shape_cast %39 : vector<1x1x128x128xbf16> to vector<128x128xbf16>
    %cst_50 = arith.constant dense<0.000000e+00> : vector<16x128xf32>
    %41 = tpu.matmul %38, %40, %cst_50 {dimension_numbers = #tpu.dot_dimension_numbers<[1], [0], [0], [1], [0, 0, 1, 1], [], []>} : vector<16x128xbf16>, vector<128x128xbf16>, vector<16x128xf32> -> vector<16x128xf32>
    %42 = arith.addf %35, %41 : vector<16x128xf32>
    %c0_51 = arith.constant 0 : index
    %c0_52 = arith.constant 0 : index
    %c0_53 = arith.constant 0 : index
    %c0_54 = arith.constant 0 : index
    %43 = vector.load %arg3[%c0_51, %c0_52, %c0_53, %c0_54] : memref<2x1x10x128xbf16, #tpu.memory_space<vmem>>, vector<2x1x8x128xbf16>
    %44 = vector.shape_cast %43 : vector<2x1x8x128xbf16> to vector<2x8x128xbf16>
    %45 = vector.shape_cast %44 : vector<2x8x128xbf16> to vector<16x128xbf16>
    %c2_55 = arith.constant 2 : index
    %c0_56 = arith.constant 0 : index
    %c0_57 = arith.constant 0 : index
    %c0_58 = arith.constant 0 : index
    %46 = vector.load %arg4[%c2_55, %c0_56, %c0_57, %c0_58] : memref<3x3x128x128xbf16, #tpu.memory_space<vmem>>, vector<1x1x128x128xbf16>
    %47 = vector.shape_cast %46 : vector<1x1x128x128xbf16> to vector<128x128xbf16>
    %cst_59 = arith.constant dense<0.000000e+00> : vector<16x128xf32>
    %48 = tpu.matmul %45, %47, %cst_59 {dimension_numbers = #tpu.dot_dimension_numbers<[1], [0], [0], [1], [0, 0, 1, 1], [], []>} : vector<16x128xbf16>, vector<128x128xbf16>, vector<16x128xf32> -> vector<16x128xf32>
    %49 = arith.addf %42, %48 : vector<16x128xf32>
    %c0_60 = arith.constant 0 : index
    %c0_61 = arith.constant 0 : index
    %c1_62 = arith.constant 1 : index
    %c0_63 = arith.constant 0 : index
    %50 = vector.load %arg3[%c0_60, %c0_61, %c1_62, %c0_63] : memref<2x1x10x128xbf16, #tpu.memory_space<vmem>>, vector<2x1x8x128xbf16>
    %51 = vector.shape_cast %50 : vector<2x1x8x128xbf16> to vector<2x8x128xbf16>
    %52 = vector.shape_cast %51 : vector<2x8x128xbf16> to vector<16x128xbf16>
    %c2_64 = arith.constant 2 : index
    %c1_65 = arith.constant 1 : index
    %c0_66 = arith.constant 0 : index
    %c0_67 = arith.constant 0 : index
    %53 = vector.load %arg4[%c2_64, %c1_65, %c0_66, %c0_67] : memref<3x3x128x128xbf16, #tpu.memory_space<vmem>>, vector<1x1x128x128xbf16>
    %54 = vector.shape_cast %53 : vector<1x1x128x128xbf16> to vector<128x128xbf16>
    %cst_68 = arith.constant dense<0.000000e+00> : vector<16x128xf32>
    %55 = tpu.matmul %52, %54, %cst_68 {dimension_numbers = #tpu.dot_dimension_numbers<[1], [0], [0], [1], [0, 0, 1, 1], [], []>} : vector<16x128xbf16>, vector<128x128xbf16>, vector<16x128xf32> -> vector<16x128xf32>
    %56 = arith.addf %49, %55 : vector<16x128xf32>
    %c0_69 = arith.constant 0 : index
    %c0_70 = arith.constant 0 : index
    %c2_71 = arith.constant 2 : index
    %c0_72 = arith.constant 0 : index
    %57 = vector.load %arg3[%c0_69, %c0_70, %c2_71, %c0_72] : memref<2x1x10x128xbf16, #tpu.memory_space<vmem>>, vector<2x1x8x128xbf16>
    %58 = vector.shape_cast %57 : vector<2x1x8x128xbf16> to vector<2x8x128xbf16>
    %59 = vector.shape_cast %58 : vector<2x8x128xbf16> to vector<16x128xbf16>
    %c2_73 = arith.constant 2 : index
    %c2_74 = arith.constant 2 : index
    %c0_75 = arith.constant 0 : index
    %c0_76 = arith.constant 0 : index
    %60 = vector.load %arg4[%c2_73, %c2_74, %c0_75, %c0_76] : memref<3x3x128x128xbf16, #tpu.memory_space<vmem>>, vector<1x1x128x128xbf16>
    %61 = vector.shape_cast %60 : vector<1x1x128x128xbf16> to vector<128x128xbf16>
    %cst_77 = arith.constant dense<0.000000e+00> : vector<16x128xf32>
    %62 = tpu.matmul %59, %61, %cst_77 {dimension_numbers = #tpu.dot_dimension_numbers<[1], [0], [0], [1], [0, 0, 1, 1], [], []>} : vector<16x128xbf16>, vector<128x128xbf16>, vector<16x128xf32> -> vector<16x128xf32>
    %63 = arith.addf %56, %62 : vector<16x128xf32>
    %64 = vector.shape_cast %63 : vector<16x128xf32> to vector<2x8x128xf32>
    %65 = arith.truncf %64 : vector<2x8x128xf32> to vector<2x8x128xbf16>
    %c0_78 = arith.constant 0 : index
    %c0_79 = arith.constant 0 : index
    %c0_80 = arith.constant 0 : index
    %c0_81 = arith.constant 0 : index
    %66 = vector.load %arg5[%c0_78, %c0_79, %c0_80, %c0_81] : memref<2x1x8x128xbf16, #tpu.memory_space<vmem>>, vector<2x1x8x128xbf16>
    %67 = vector.shape_cast %66 : vector<2x1x8x128xbf16> to vector<2x8x128xbf16>
    %68 = vector.shape_cast %65 : vector<2x8x128xbf16> to vector<2x1x8x128xbf16>
    tpu.vector_store %arg5[%c0_78, %c0_79, %c0_80, %c0_81], %68 {strides = array<i32>} : memref<2x1x8x128xbf16, #tpu.memory_space<vmem>>, vector<2x1x8x128xbf16>,
    %cst_82 = arith.constant dense<0.000000e+00> : vector<128xf32>
    %69 = vector.multi_reduction <add>, %63, %cst_82 [0] : vector<16x128xf32> to vector<128xf32>
    %70 = vector.shape_cast %69 : vector<128xf32> to vector<1x128xf32>
    %c0_83 = arith.constant 0 : index
    %c0_84 = arith.constant 0 : index
    %c0_85 = arith.constant 0 : index
    %71 = vector.load %arg6[%c0_83, %c0_84, %c0_85] : memref<1x1x128xf32, #tpu.memory_space<vmem>>, vector<1x1x128xf32>
    %72 = vector.shape_cast %71 : vector<1x1x128xf32> to vector<1x128xf32>
    %73 = vector.shape_cast %70 : vector<1x128xf32> to vector<1x1x128xf32>
    tpu.vector_store %arg6[%c0_83, %c0_84, %c0_85], %73 {strides = array<i32>} : memref<1x1x128xf32, #tpu.memory_space<vmem>>, vector<1x1x128xf32>,
    %74 = arith.mulf %63, %63 : vector<16x128xf32>
    %cst_86 = arith.constant dense<0.000000e+00> : vector<128xf32>
    %75 = vector.multi_reduction <add>, %74, %cst_86 [0] : vector<16x128xf32> to vector<128xf32>
    %76 = vector.shape_cast %75 : vector<128xf32> to vector<1x128xf32>
    %c0_87 = arith.constant 0 : index
    %c0_88 = arith.constant 0 : index
    %c0_89 = arith.constant 0 : index
    %77 = vector.load %arg7[%c0_87, %c0_88, %c0_89] : memref<1x1x128xf32, #tpu.memory_space<vmem>>, vector<1x1x128xf32>
    %78 = vector.shape_cast %77 : vector<1x1x128xf32> to vector<1x128xf32>
    %79 = vector.shape_cast %76 : vector<1x128xf32> to vector<1x1x128xf32>
    tpu.vector_store %arg7[%c0_87, %c0_88, %c0_89], %79 {strides = array<i32>} : memref<1x1x128xf32, #tpu.memory_space<vmem>>, vector<1x1x128xf32>,
    return
  }
  func.func @transform_0(%arg0: i32) -> (i32, i32, i32, i32) {
    %c0_i32 = arith.constant 0 : i32
    %0 = arith.addi %arg0, %c0_i32 : i32
    %c0_i32_0 = arith.constant 0 : i32
    %c0_i32_1 = arith.constant 0 : i32
    %c0_i32_2 = arith.constant 0 : i32
    %c0_i32_3 = arith.constant 0 : i32
    return %c0_i32_0, %0, %c0_i32_1, %c0_i32_2 : i32, i32, i32, i32
  }
  func.func @transform_1(%arg0: i32) -> (i32, i32, i32, i32) {
    %c1_i32 = arith.constant 1 : i32
    %0 = arith.addi %arg0, %c1_i32 : i32
    %c0_i32 = arith.constant 0 : i32
    %c0_i32_0 = arith.constant 0 : i32
    %c0_i32_1 = arith.constant 0 : i32
    %c0_i32_2 = arith.constant 0 : i32
    return %c0_i32, %0, %c0_i32_0, %c0_i32_1 : i32, i32, i32, i32
  }
  func.func @transform_2(%arg0: i32) -> (i32, i32, i32, i32) {
    %c2_i32 = arith.constant 2 : i32
    %0 = arith.addi %arg0, %c2_i32 : i32
    %c0_i32 = arith.constant 0 : i32
    %c0_i32_0 = arith.constant 0 : i32
    %c0_i32_1 = arith.constant 0 : i32
    %c0_i32_2 = arith.constant 0 : i32
    return %c0_i32, %0, %c0_i32_0, %c0_i32_1 : i32, i32, i32, i32
  }
  func.func @transform_3(%arg0: i32) -> (i32, i32, i32, i32) {
    %c0_i32 = arith.constant 0 : i32
    %c0_i32_0 = arith.constant 0 : i32
    %c0_i32_1 = arith.constant 0 : i32
    %c0_i32_2 = arith.constant 0 : i32
    %c0_i32_3 = arith.constant 0 : i32
    return %c0_i32, %c0_i32_0, %c0_i32_1, %c0_i32_2 : i32, i32, i32, i32
  }
  func.func @transform_4(%arg0: i32) -> (i32, i32, i32, i32) {
    %c0_i32 = arith.constant 0 : i32
    %c0_i32_0 = arith.constant 0 : i32
    %c0_i32_1 = arith.constant 0 : i32
    %c0_i32_2 = arith.constant 0 : i32
    return %c0_i32, %arg0, %c0_i32_0, %c0_i32_1 : i32, i32, i32, i32
  }
  func.func @transform_5(%arg0: i32) -> (i32, i32, i32) {
    %c0_i32 = arith.constant 0 : i32
    %c0_i32_0 = arith.constant 0 : i32
    %c0_i32_1 = arith.constant 0 : i32
    return %arg0, %c0_i32, %c0_i32_0 : i32, i32, i32
  }
  func.func @transform_6(%arg0: i32) -> (i32, i32, i32) {
    %c0_i32 = arith.constant 0 : i32
    %c0_i32_0 = arith.constant 0 : i32
    %c0_i32_1 = arith.constant 0 : i32
    return %arg0, %c0_i32, %c0_i32_0 : i32, i32, i32
  }
}

</mosaic_0001>

<llo_original>
// kernel: residual_block_pallas.8
$region0: #{residual_block_pallas.8}
  #allocation0 [shape = 'u32[]', space=smem, size = 0x4, offset = 0x4, fixed_abs, tag = 'smem constant byte address 0x4 - core index']
  #allocation1 [shape = 'u32[144,128]{1,0:T(1,128)}', space=vmem, size = 0x12000, scoped, tag = 'internal scratch']
  %s0 = inlined_call_operand.vmem [shape: bf16[2,8,8,128], index: 0, kind: input, shape index: {}]
  %s1 = inlined_call_operand.vmem [shape: bf16[128,128], index: 1, kind: input, shape index: {}]
  %s2 = inlined_call_operand.vmem [shape: bf16[2,8,8,128], index: 2, kind: output, shape index: {0}]
  %s3 = inlined_call_operand.vmem [shape: f32[8,1,128], index: 3, kind: output, shape index: {1}]
  %s4 = inlined_call_operand.vmem [shape: f32[8,1,128], index: 4, kind: output, shape index: {2}]
  %5 = xla_tuple %s2, %s3, %s4
  %s6 = sld [smem:[#allocation0]]
  $region135: #{residual_block_pallas.8} parent=0
    _
  %s8 = ssub.s32 1, %s6
  %s9 = scalar_select 0, %s8, %s6
  $region1: #{residual_block_pallas.8} parent=0
    #allocation2 [shape = 'u8[8192]{0}', space=vmem, size = 0x2000, scoped, tag = 'input window, operand 0']
    #allocation3 [shape = 'u8[8192]{0}', space=vmem, size = 0x2000, scoped, tag = 'output window, operand 0']
    loop: start=0, step=1, limit=10
    $region2: #{residual_block_pallas.8} parent=1 // loop_pre_header
      _
    $region3: #{residual_block_pallas.8} parent=1 // loop_header
      %s11 = sphi 0, %s15
      %p12 = scmp.ge.s32.totalorder %s11, 10
      %s21 = sphi 0, %s23
      %s24 = sphi 0, %s21
      %s25 = sphi 0, %s24
      %s41 = sphi 0, %s25
      %s45 = sphi 0, %s45
      %s47 = sphi 0, %s45
      %s48 = sphi 0, %s47
      %s62 = sphi 0, %s48
      %s68 = sphi 0, %s70
      %s71 = sphi 0, %s68
      %s72 = sphi 0, %s71
      %s88 = sphi 0, %s72
      %s94 = sphi 0, %s96
      %s97 = sphi 0, %s94
      %s98 = sphi 0, %s97
      %s114 = sphi 0, %s98
      %s120 = sphi 0, %s122
      %s123 = sphi 0, %s120
      %s124 = sphi 0, %s123
      %s140 = sphi 0, %s124
    $region4: #{residual_block_pallas.8} parent=1 // loop_header_branch
      %14 = sbr.rel (%p12) target = $region8
    $region5: #{residual_block_pallas.8} parent=1 // loop_body
      %s16 = ssub.s32 %s11, 1
      %s17 = ssub.s32 %s11, 2
      %s18 = sadd.s32 %s11, 1
      %s19 = ssub.s32 %s11, %s18
      %p20 = scmp.eq.s32.totalorder %s19, 0
      %s22 = sadd.s32 %s21, 1
      %s23 = scalar_select %p20, %s21, %s22
      %p26 = pneg %p20
      %p27 = scmp.eq.s32.totalorder %s11, 7
      %p28 = por %p26, %p27
      %p29 = scmp.ne.s32.totalorder %s21, %s24
      %p30 = scmp.eq.s32.totalorder %s11, 0
      %p31 = por %p29, %p30
      %p32 = scmp.ne.s32.totalorder %s21, %s24
      %p33 = scmp.eq.s32.totalorder %s16, 7
      %p34 = por %p32, %p33
      %p35 = scmp.ne.s32.totalorder %s24, %s25
      %p36 = scmp.eq.s32.totalorder %s16, 0
      %p37 = por %p35, %p36
      %p38 = scmp.ne.s32.totalorder %s24, %s25
      %p39 = scmp.eq.s32.totalorder %s17, 7
      %p40 = por %p38, %p39
      %p42 = scmp.ne.s32.totalorder %s25, %s41
      %p43 = scmp.eq.s32.totalorder %s17, 0
      %p44 = por %p42, %p43
      %s46 = sadd.s32 %s45, 1
      %p49 = scmp.eq.s32.totalorder %s11, 7
      %p50 = scmp.ne.s32.totalorder %s45, %s47
      %p51 = scmp.eq.s32.totalorder %s11, 0
      %p52 = por %p50, %p51
      %p53 = scmp.ne.s32.totalorder %s45, %s47
      %p54 = scmp.eq.s32.totalorder %s16, 7
      %p55 = por %p53, %p54
      %p56 = scmp.ne.s32.totalorder %s47, %s48
      %p57 = scmp.eq.s32.totalorder %s16, 0
      %p58 = por %p56, %p57
      %p59 = scmp.ne.s32.totalorder %s47, %s48
      %p60 = scmp.eq.s32.totalorder %s17, 7
      %p61 = por %p59, %p60
      %p63 = scmp.ne.s32.totalorder %s48, %s62
      %p64 = scmp.eq.s32.totalorder %s17, 0
      %p65 = por %p63, %p64
      %s66 = ssub.s32 %s11, %s18
      %p67 = scmp.eq.s32.totalorder %s66, 0
      %s69 = sadd.s32 %s68, 1
      %s70 = scalar_select %p67, %s68, %s69
      %p73 = pneg %p67
      %p74 = scmp.eq.s32.totalorder %s11, 7
      %p75 = por %p73, %p74
      %p76 = scmp.ne.s32.totalorder %s68, %s71
      %p77 = scmp.eq.s32.totalorder %s11, 0
      %p78 = por %p76, %p77
      %p79 = scmp.ne.s32.totalorder %s68, %s71
      %p80 = scmp.eq.s32.totalorder %s16, 7
      %p81 = por %p79, %p80
      %p82 = scmp.ne.s32.totalorder %s71, %s72
      %p83 = scmp.eq.s32.totalorder %s16, 0
      %p84 = por %p82, %p83
      %p85 = scmp.ne.s32.totalorder %s71, %s72
      %p86 = scmp.eq.s32.totalorder %s17, 7
      %p87 = por %p85, %p86
      %p89 = scmp.ne.s32.totalorder %s72, %s88
      %p90 = scmp.eq.s32.totalorder %s17, 0
      %p91 = por %p89, %p90
      %s92 = ssub.s32 %s11, %s18
      %p93 = scmp.eq.s32.totalorder %s92, 0
      %s95 = sadd.s32 %s94, 1
      %s96 = scalar_select %p93, %s94, %s95
      %p99 = pneg %p93
      %p100 = scmp.eq.s32.totalorder %s11, 7
      %p101 = por %p99, %p100
      %p102 = scmp.ne.s32.totalorder %s94, %s97
      %p103 = scmp.eq.s32.totalorder %s11, 0
      %p104 = por %p102, %p103
      %p105 = scmp.ne.s32.totalorder %s94, %s97
      %p106 = scmp.eq.s32.totalorder %s16, 7
      %p107 = por %p105, %p106
      %p108 = scmp.ne.s32.totalorder %s97, %s98
      %p109 = scmp.eq.s32.totalorder %s16, 0
      %p110 = por %p108, %p109
      %p111 = scmp.ne.s32.totalorder %s97, %s98
      %p112 = scmp.eq.s32.totalorder %s17, 7
      %p113 = por %p111, %p112
      %p115 = scmp.ne.s32.totalorder %s98, %s114
      %p116 = scmp.eq.s32.totalorder %s17, 0
      %p117 = por %p115, %p116
      %s118 = ssub.s32 %s11, %s18
      %p119 = scmp.eq.s32.totalorder %s118, 0
      %s121 = sadd.s32 %s120, 1
      %s122 = scalar_select %p119, %s120, %s121
      %p125 = pneg %p119
      %p126 = scmp.eq.s32.totalorder %s11, 7
      %p127 = por %p125, %p126
      %p128 = scmp.ne.s32.totalorder %s120, %s123
      %p129 = scmp.eq.s32.totalorder %s11, 0
      %p130 = por %p128, %p129
      %p131 = scmp.ne.s32.totalorder %s120, %s123
      %p132 = scmp.eq.s32.totalorder %s16, 7
      %p133 = por %p131, %p132
      %p134 = scmp.ne.s32.totalorder %s123, %s124
      %p135 = scmp.eq.s32.totalorder %s16, 0
      %p136 = por %p134, %p135
      %p137 = scmp.ne.s32.totalorder %s123, %s124
      %p138 = scmp.eq.s32.totalorder %s17, 7
      %p139 = por %p137, %p138
      %p141 = scmp.ne.s32.totalorder %s124, %s140
      %p142 = scmp.eq.s32.totalorder %s17, 0
      %p143 = por %p141, %p142
      %p144 = scmp.le.s32.totalorder 1, %s11
      %p145 = scmp.lt.s32.totalorder %s11, 9
      %p146 = pnand %p144, %p145
      %p147 = pneg %p146
      // Predicated region
      $region9: #{residual_block_pallas.8} parent=5 // pred_check
        _
      $region10: #{residual_block_pallas.8} parent=5 // pred_check_branch
        %149 = sbr.rel (%p146) target = $region12
      $region11: #{residual_block_pallas.8} parent=5 // pred_region
        %s150 = ssub.s32 %s11, 1
        // Predicated region
        $region13: #{residual_block_pallas.8} parent=11 // pred_check
          %p151 = pneg %p58
        $region14: #{residual_block_pallas.8} parent=11 // pred_check_branch
          %153 = sbr.rel (%p151) target = $region16
        $region15: #{residual_block_pallas.8} parent=11 // pred_region
          _
        $region16: #{residual_block_pallas.8} parent=11 // pred_fallthru
          _
      $region12: #{residual_block_pallas.8} parent=5 // pred_fallthru
        _
      %p154 = scmp.lt.s32.totalorder %s11, 8
      // Predicated region
      $region17: #{residual_block_pallas.8} parent=5 // pred_check
        %p155 = pneg %p154
      $region18: #{residual_block_pallas.8} parent=5 // pred_check_branch
        %157 = sbr.rel (%p155) target = $region20
      $region19: #{residual_block_pallas.8} parent=5 // pred_region
        // Predicated region
        $region21: #{residual_block_pallas.8} parent=19 // pred_check
          %p158 = pneg %p31
        $region22: #{residual_block_pallas.8} parent=19 // pred_check_branch
          %160 = sbr.rel (%p158) target = $region24
        $region23: #{residual_block_pallas.8} parent=19 // pred_region
          %s161 = sand.u32 %s21, 1
          %s162 = sand.u32 %s21, 1
          %s163 = smul.addr %s162, 8
          %s164 = scalar_lea.vmem [#allocation2], %s163
          %s165 = smul.addr %s11, 4
          %s166 = scalar_lea.vmem %s0, %s165
          // Predicated region
          $region25: #{residual_block_pallas.8} parent=23 // pred_check
            _
          $region26: #{residual_block_pallas.8} parent=23 // pred_check_branch
            %168 = sbr.rel (0) target = $region28
          $region27: #{residual_block_pallas.8} parent=23 // pred_region
            // Predicated region
            $region29: #{residual_block_pallas.8} parent=27 // pred_check
              _
            $region30: #{residual_block_pallas.8} parent=27 // pred_check_branch
              %170 = sbr.rel target = $region32
            $region31: #{residual_block_pallas.8} parent=27 // pred_region
              // Predicated region
              $region44: #{residual_block_pallas.8} parent=31 // pred_check
                _
              $region45: #{residual_block_pallas.8} parent=31 // pred_check_branch
                %187 = sbr.rel (0) target = $region47
              $region46: #{residual_block_pallas.8} parent=31 // pred_region
                loop: start=0, step=1, limit=1
                $region48: #{residual_block_pallas.8} parent=46 // loop_pre_header
                  _
                $region49: #{residual_block_pallas.8} parent=46 // loop_header
                  %s189 = sphi 0, %s193
                  %p190 = scmp.ge.s32.totalorder %s189, 1
                  %s194 = sphi %s166, %s166
                  %s195 = sphi %s164, %s164
                $region50: #{residual_block_pallas.8} parent=46 // loop_header_branch
                  %192 = sbr.rel (%p190) target = $region54
                $region51: #{residual_block_pallas.8} parent=46 // loop_body
                  _
                $region52: #{residual_block_pallas.8} parent=46 // loop_footer
                  %s193 = sadd.s32 1, %s189
                $region53: #{residual_block_pallas.8} parent=46 // loop_footer_branch
                  %188 = sbr.rel target = $region49
                $region54: #{residual_block_pallas.8} parent=46 // loop_exit
                  _
                loop: start=0, step=1, limit=1
                $region55: #{residual_block_pallas.8} parent=46 // loop_pre_header
                  _
                $region56: #{residual_block_pallas.8} parent=46 // loop_header
                  %s198 = sphi 0, %s202
                  %p199 = scmp.ge.s32.totalorder %s198, 1
                  %s203 = sphi %s166, %s166
                  %s204 = sphi %s164, %s164
                $region57: #{residual_block_pallas.8} parent=46 // loop_header_branch
                  %201 = sbr.rel (%p199) target = $region61
                $region58: #{residual_block_pallas.8} parent=46 // loop_body
                  %v205 = vld [vmem:[%s203] sm:$0xf]
                  %206 = vst [vmem:[%s204] sm:$0xf] %v205
                  %v207 = vld [vmem:[%s203 + $0x20] sm:$0xf]
                  %208 = vst [vmem:[%s204 + $0x4] sm:$0xf] %v207
                $region59: #{residual_block_pallas.8} parent=46 // loop_footer
                  %s202 = sadd.s32 1, %s198
                $region60: #{residual_block_pallas.8} parent=46 // loop_footer_branch
                  %197 = sbr.rel target = $region56
                $region61: #{residual_block_pallas.8} parent=46 // loop_exit
                  _
              $region47: #{residual_block_pallas.8} parent=31 // pred_fallthru
                _
            $region32: #{residual_block_pallas.8} parent=27 // pred_fallthru
              _
            // Predicated region
            $region33: #{residual_block_pallas.8} parent=27 // pred_check
              _
            $region34: #{residual_block_pallas.8} parent=27 // pred_check_branch
              %172 = sbr.rel (0) target = $region36
            $region35: #{residual_block_pallas.8} parent=27 // pred_region
              loop: start=0, step=1, limit=1
              $region37: #{residual_block_pallas.8} parent=35 // loop_pre_header
                _
              $region38: #{residual_block_pallas.8} parent=35 // loop_header
                %s175 = sphi 0, %s179
                %p176 = scmp.ge.s32.totalorder %s175, 1
                %s180 = sphi %s166, %s166
                %s181 = sphi %s164, %s164
              $region39: #{residual_block_pallas.8} parent=35 // loop_header_branch
                %178 = sbr.rel (%p176) target = $region43
              $region40: #{residual_block_pallas.8} parent=35 // loop_body
                %v182 = vld [vmem:[%s180] sm:$0xf]
                %183 = vst [vmem:[%s181] sm:$0xf] %v182
                %v184 = vld [vmem:[%s180 + $0x20] sm:$0xf]
                %185 = vst [vmem:[%s181 + $0x4] sm:$0xf] %v184
              $region41: #{residual_block_pallas.8} parent=35 // loop_footer
                %s179 = sadd.s32 1, %s175
              $region42: #{residual_block_pallas.8} parent=35 // loop_footer_branch
                %174 = sbr.rel target = $region38
              $region43: #{residual_block_pallas.8} parent=35 // loop_exit
                _
            $region36: #{residual_block_pallas.8} parent=27 // pred_fallthru
              _
          $region28: #{residual_block_pallas.8} parent=23 // pred_fallthru
            _
          %209 = vnop
        $region24: #{residual_block_pallas.8} parent=19 // pred_fallthru
          _
      $region20: #{residual_block_pallas.8} parent=5 // pred_fallthru
        _
      %p210 = scmp.le.s32.totalorder 1, %s11
      %p211 = scmp.lt.s32.totalorder %s11, 9
      %p212 = pnand %p210, %p211
      %p213 = pneg %p212
      // Predicated region
      $region62: #{residual_block_pallas.8} parent=5 // pred_check
        _
      $region63: #{residual_block_pallas.8} parent=5 // pred_check_branch
        %215 = sbr.rel (%p212) target = $region65
      $region64: #{residual_block_pallas.8} parent=5 // pred_region
        %s216 = ssub.s32 %s11, 1
        %s217 = sand.u32 %s24, 1
        %s218 = sand.u32 %s24, 1
        %s219 = smul.addr %s218, 8
        %s220 = scalar_lea.vmem [#allocation2], %s219
        // Predicated region
        $region66: #{residual_block_pallas.8} parent=64 // pred_check
          %p221 = pneg %p37
        $region67: #{residual_block_pallas.8} parent=64 // pred_check_branch
          %223 = sbr.rel (%p221) target = $region69
        $region68: #{residual_block_pallas.8} parent=64 // pred_region
          _
        $region69: #{residual_block_pallas.8} parent=64 // pred_fallthru
          _
        %s224 = sand.u32 %s24, 1
        %s225 = sand.u32 %s24, 1
        %s226 = smul.addr %s225, 8
        %s227 = scalar_lea.vmem [#allocation2], %s226
        %p228 = pneg %p37
        %p229 = pneg %p34
        %p230 = pneg %p58
        %p231 = pneg %p55
        %p232 = pneg %p84
        %p233 = pneg %p81
        %s234 = sand.u32 %s71, 1
        %s235 = sand.u32 %s71, 1
        %s236 = smul.addr %s235, 8
        %s237 = scalar_lea.vmem [#allocation3], %s236
        %p238 = pneg %p110
        %p239 = pneg %p107
        %p240 = scmp.lt.s32.totalorder %s16, 7
        %s241 = scalar_select %p240, %s16, 7
        %s242 = scalar_lea.vmem %s3, %s241
        %p243 = pneg %p136
        %p244 = pneg %p133
        %p245 = scmp.lt.s32.totalorder %s16, 7
        %s246 = scalar_select %p245, %s16, 7
        %s247 = scalar_lea.vmem %s4, %s246
        %p248 = scmp.lt.s32.totalorder %s16, 7
        %s249 = scalar_select %p248, %s16, 7
        %s250 = scalar_lea.vmem %s3, %s249
        %p251 = scmp.lt.s32.totalorder %s16, 7
        %s252 = scalar_select %p251, %s16, 7
        %s253 = scalar_lea.vmem %s4, %s252
        %v255 = vld [vmem:[%s220] sm:$0xf]
        %v256 = vld [vmem:[%s220 + $0x4] sm:$0xf]
        %v257 = vld [vmem:[%s1] sm:$0xf]
        %v258 = vld [vmem:[%s1 + $0x4] sm:$0xf]
        %v259 = vld [vmem:[%s1 + $0x8] sm:$0xf]
        %v260 = vld [vmem:[%s1 + $0xc] sm:$0xf]
        %v261 = vld [vmem:[%s1 + $0x10] sm:$0xf]
        %v262 = vld [vmem:[%s1 + $0x14] sm:$0xf]
        %v263 = vld [vmem:[%s1 + $0x18] sm:$0xf]
        %v264 = vld [vmem:[%s1 + $0x1c] sm:$0xf]
        %v265 = vld [vmem:[%s1 + $0x20] sm:$0xf]
        %v266 = vld [vmem:[%s1 + $0x24] sm:$0xf]
        %v267 = vld [vmem:[%s1 + $0x28] sm:$0xf]
        %v268 = vld [vmem:[%s1 + $0x2c] sm:$0xf]
        %v269 = vld [vmem:[%s1 + $0x30] sm:$0xf]
        %v270 = vld [vmem:[%s1 + $0x34] sm:$0xf]
        %v271 = vld [vmem:[%s1 + $0x38] sm:$0xf]
        %v272 = vld [vmem:[%s1 + $0x3c] sm:$0xf]
        %v275 = vunpack.c.l.b16 %v255
        %v276 = vunpack.c.l.b16 %v256
        %v277 = vpack.c.b16 %v276, %v275
        %v295 = vunpack.c.l.b16 %v257
        %v296 = vunpack.c.l.b16 %v258
        %v297 = vunpack.c.l.b16 %v259
        %v298 = vunpack.c.l.b16 %v260
        %v299 = vunpack.c.l.b16 %v261
        %v300 = vunpack.c.l.b16 %v262
        %v301 = vunpack.c.l.b16 %v263
        %v302 = vunpack.c.l.b16 %v264
        %v303 = vunpack.c.l.b16 %v265
        %v304 = vunpack.c.l.b16 %v266
        %v305 = vunpack.c.l.b16 %v267
        %v306 = vunpack.c.l.b16 %v268
        %v307 = vunpack.c.l.b16 %v269
        %v308 = vunpack.c.l.b16 %v270
        %v309 = vunpack.c.l.b16 %v271
        %v310 = vunpack.c.l.b16 %v272
        %v311 = vpack.c.b16 %v296, %v295
        %v312 = vpack.c.b16 %v298, %v297
        %v313 = vpack.c.b16 %v300, %v299
        %v314 = vpack.c.b16 %v302, %v301
        %v315 = vpack.c.b16 %v304, %v303
        %v316 = vpack.c.b16 %v306, %v305
        %v317 = vpack.c.b16 %v308, %v307
        %v318 = vpack.c.b16 %v310, %v309
        %327 = vmatprep.subr.bf16.mxu0 0
        %328 = vmatpush1.bf16.msra.mxu0 %v311
        %329 = vmatprep.subr.bf16.mxu0 0
        %330 = vmatpush1.bf16.msra.mxu0 %v312
        %331 = vmatprep.subr.bf16.mxu0 0
        %332 = vmatpush1.bf16.msra.mxu0 %v313
        %333 = vmatprep.subr.bf16.mxu0 0
        %334 = vmatpush1.bf16.msra.mxu0 %v314
        %335 = vmatprep.subr.bf16.mxu0 0
        %336 = vmatpush1.bf16.msra.mxu0 %v315
        %337 = vmatprep.subr.bf16.mxu0 0
        %338 = vmatpush1.bf16.msra.mxu0 %v316
        %339 = vmatprep.subr.bf16.mxu0 0
        %340 = vmatpush1.bf16.msra.mxu0 %v317
        %341 = vmatprep.subr.bf16.mxu0 0
        %342 = vmatpush1.bf16.msra.mxu0 %v318
        %343 = vmatprep.subr.bf16.mxu0 0
        %344 = vmatpush1.bf16.msra.mxu0 0
        %345 = vmatprep.subr.bf16.mxu0 0
        %346 = vmatpush1.bf16.msra.mxu0 0
        %347 = vmatprep.subr.bf16.mxu0 0
        %348 = vmatpush1.bf16.msra.mxu0 0
        %349 = vmatprep.subr.bf16.mxu0 0
        %350 = vmatpush1.bf16.msra.mxu0 0
        %351 = vmatprep.subr.bf16.mxu0 0
        %352 = vmatpush1.bf16.msra.mxu0 0
        %353 = vmatprep.subr.bf16.mxu0 0
        %354 = vmatpush1.bf16.msra.mxu0 0
        %355 = vmatprep.subr.bf16.mxu0 0
        %356 = vmatpush1.bf16.msra.mxu0 0
        %357 = vmatprep.subr.bf16.mxu0 0
        %358 = vmatpush1.bf16.msra.mxu0 0
        %359 = vmatprep.mubr.bf16.mxu0 0
        %360 = vmatmul.mubr.bf16.gmra.mrb[0].mxu0 %v277
        %v361 = vpop.f32.mrb[0].mxu0
        %v362 = vadd.f32 0.0, %v361
        %v363 = vpop.f32.mrb[0].mxu0
        %v364 = vpop.f32.mrb[0].mxu0
        %v365 = vadd.f32 0.0, %v364
        %v366 = vpop.f32.mrb[0].mxu0
        %367 = vdwg.mxu0
        %v368 = vpack.c.bf16 %v362, %v362
        %v369 = vpack.c.bf16 %v365, %v365
        %370 = vst [vmem:[%s237] sm:$0xf] %v368
        %371 = vst [vmem:[%s237 + $0x4] sm:$0xf] %v369
        %v372 = vadd.f32 %v362, %v365
        %v373 = vrot.slane %v372, 4
        %v374 = vadd.f32 %v372, %v373
        %v375 = vrot.slane %v374, 2
        %v376 = vadd.f32 %v374, %v375
        %v377 = vrot.slane %v376, 1
        %v378 = vadd.f32 %v376, %v377
        %379 = vst [vmem:[%s250] sm:$0x1] %v378
        %v380 = vmul.f32 %v362, %v362
        %v381 = vmul.f32 %v365, %v365
        %v382 = vadd.f32 %v380, %v381
        %v383 = vrot.slane %v382, 4
        %v384 = vadd.f32 %v382, %v383
        %v385 = vrot.slane %v384, 2
        %v386 = vadd.f32 %v384, %v385
        %v387 = vrot.slane %v386, 1
        %v388 = vadd.f32 %v386, %v387
        %389 = vst [vmem:[%s253] sm:$0x1] %v388
        %s390 = sand.u32 %s71, 1
        %s391 = sand.u32 %s71, 1
        %s392 = smul.addr %s391, 8
        %s393 = scalar_lea.vmem [#allocation3], %s392
        %p394 = scmp.lt.s32.totalorder %s16, 7
        %s395 = scalar_select %p394, %s16, 7
        %s396 = scalar_lea.vmem %s3, %s395
        %p397 = scmp.lt.s32.totalorder %s16, 7
        %s398 = scalar_select %p397, %s16, 7
        %s399 = scalar_lea.vmem %s4, %s398
        // Predicated region
        $region70: #{residual_block_pallas.8} parent=64 // pred_check
          %p400 = pneg %p81
        $region71: #{residual_block_pallas.8} parent=64 // pred_check_branch
          %402 = sbr.rel (%p400) target = $region73
        $region72: #{residual_block_pallas.8} parent=64 // pred_region
          %s403 = smul.addr %s16, 4
          %s404 = scalar_lea.vmem %s2, %s403
          // Predicated region
          $region74: #{residual_block_pallas.8} parent=72 // pred_check
            _
          $region75: #{residual_block_pallas.8} parent=72 // pred_check_branch
            %406 = sbr.rel (0) target = $region77
          $region76: #{residual_block_pallas.8} parent=72 // pred_region
            // Predicated region
            $region78: #{residual_block_pallas.8} parent=76 // pred_check
              _
            $region79: #{residual_block_pallas.8} parent=76 // pred_check_branch
              %408 = sbr.rel target = $region81
            $region80: #{residual_block_pallas.8} parent=76 // pred_region
              // Predicated region
              $region93: #{residual_block_pallas.8} parent=80 // pred_check
                _
              $region94: #{residual_block_pallas.8} parent=80 // pred_check_branch
                %425 = sbr.rel (0) target = $region96
              $region95: #{residual_block_pallas.8} parent=80 // pred_region
                loop: start=0, step=1, limit=1
                $region97: #{residual_block_pallas.8} parent=95 // loop_pre_header
                  _
                $region98: #{residual_block_pallas.8} parent=95 // loop_header
                  %s427 = sphi 0, %s431
                  %p428 = scmp.ge.s32.totalorder %s427, 1
                  %s432 = sphi %s393, %s393
                  %s433 = sphi %s404, %s404
                $region99: #{residual_block_pallas.8} parent=95 // loop_header_branch
                  %430 = sbr.rel (%p428) target = $region103
                $region100: #{residual_block_pallas.8} parent=95 // loop_body
                  _
                $region101: #{residual_block_pallas.8} parent=95 // loop_footer
                  %s431 = sadd.s32 1, %s427
                $region102: #{residual_block_pallas.8} parent=95 // loop_footer_branch
                  %426 = sbr.rel target = $region98
                $region103: #{residual_block_pallas.8} parent=95 // loop_exit
                  _
                loop: start=0, step=1, limit=1
                $region104: #{residual_block_pallas.8} parent=95 // loop_pre_header
                  _
                $region105: #{residual_block_pallas.8} parent=95 // loop_header
                  %s436 = sphi 0, %s440
                  %p437 = scmp.ge.s32.totalorder %s436, 1
                  %s441 = sphi %s393, %s393
                  %s442 = sphi %s404, %s404
                $region106: #{residual_block_pallas.8} parent=95 // loop_header_branch
                  %439 = sbr.rel (%p437) target = $region110
                $region107: #{residual_block_pallas.8} parent=95 // loop_body
                  %v443 = vld [vmem:[%s441] sm:$0xf]
                  %444 = vst [vmem:[%s442] sm:$0xf] %v443
                  %v445 = vld [vmem:[%s441 + $0x4] sm:$0xf]
                  %446 = vst [vmem:[%s442 + $0x20] sm:$0xf] %v445
                $region108: #{residual_block_pallas.8} parent=95 // loop_footer
                  %s440 = sadd.s32 1, %s436
                $region109: #{residual_block_pallas.8} parent=95 // loop_footer_branch
                  %435 = sbr.rel target = $region105
                $region110: #{residual_block_pallas.8} parent=95 // loop_exit
                  _
              $region96: #{residual_block_pallas.8} parent=80 // pred_fallthru
                _
            $region81: #{residual_block_pallas.8} parent=76 // pred_fallthru
              _
            // Predicated region
            $region82: #{residual_block_pallas.8} parent=76 // pred_check
              _
            $region83: #{residual_block_pallas.8} parent=76 // pred_check_branch
              %410 = sbr.rel (0) target = $region85
            $region84: #{residual_block_pallas.8} parent=76 // pred_region
              loop: start=0, step=1, limit=1
              $region86: #{residual_block_pallas.8} parent=84 // loop_pre_header
                _
              $region87: #{residual_block_pallas.8} parent=84 // loop_header
                %s413 = sphi 0, %s417
                %p414 = scmp.ge.s32.totalorder %s413, 1
                %s418 = sphi %s393, %s393
                %s419 = sphi %s404, %s404
              $region88: #{residual_block_pallas.8} parent=84 // loop_header_branch
                %416 = sbr.rel (%p414) target = $region92
              $region89: #{residual_block_pallas.8} parent=84 // loop_body
                %v420 = vld [vmem:[%s418] sm:$0xf]
                %421 = vst [vmem:[%s419] sm:$0xf] %v420
                %v422 = vld [vmem:[%s418 + $0x4] sm:$0xf]
                %423 = vst [vmem:[%s419 + $0x20] sm:$0xf] %v422
              $region90: #{residual_block_pallas.8} parent=84 // loop_footer
                %s417 = sadd.s32 1, %s413
              $region91: #{residual_block_pallas.8} parent=84 // loop_footer_branch
                %412 = sbr.rel target = $region87
              $region92: #{residual_block_pallas.8} parent=84 // loop_exit
                _
            $region85: #{residual_block_pallas.8} parent=76 // pred_fallthru
              _
          $region77: #{residual_block_pallas.8} parent=72 // pred_fallthru
            _
          %447 = vnop
        $region73: #{residual_block_pallas.8} parent=64 // pred_fallthru
          _
        // Predicated region
        $region111: #{residual_block_pallas.8} parent=64 // pred_check
          %p448 = pneg %p107
        $region112: #{residual_block_pallas.8} parent=64 // pred_check_branch
          %450 = sbr.rel (%p448) target = $region114
        $region113: #{residual_block_pallas.8} parent=64 // pred_region
          _
        $region114: #{residual_block_pallas.8} parent=64 // pred_fallthru
          _
        // Predicated region
        $region115: #{residual_block_pallas.8} parent=64 // pred_check
          %p451 = pneg %p133
        $region116: #{residual_block_pallas.8} parent=64 // pred_check_branch
          %453 = sbr.rel (%p451) target = $region118
        $region117: #{residual_block_pallas.8} parent=64 // pred_region
          _
        $region118: #{residual_block_pallas.8} parent=64 // pred_fallthru
          _
      $region65: #{residual_block_pallas.8} parent=5 // pred_fallthru
        _
      %p454 = scmp.le.s32.totalorder 2, %s11
      // Predicated region
      $region119: #{residual_block_pallas.8} parent=5 // pred_check
        %p455 = pneg %p454
      $region120: #{residual_block_pallas.8} parent=5 // pred_check_branch
        %457 = sbr.rel (%p455) target = $region122
      $region121: #{residual_block_pallas.8} parent=5 // pred_region
        %s458 = ssub.s32 %s11, 2
        // Predicated region
        $region123: #{residual_block_pallas.8} parent=121 // pred_check
          %p459 = pneg %p87
        $region124: #{residual_block_pallas.8} parent=121 // pred_check_branch
          %461 = sbr.rel (%p459) target = $region126
        $region125: #{residual_block_pallas.8} parent=121 // pred_region
          %s462 = sand.u32 %s72, 1
          %s463 = sand.u32 %s72, 1
          %s464 = smul.addr %s463, 8
          %s465 = scalar_lea.vmem [#allocation3], %s464
        $region126: #{residual_block_pallas.8} parent=121 // pred_fallthru
          _
        // Predicated region
        $region127: #{residual_block_pallas.8} parent=121 // pred_check
          %p466 = pneg %p113
        $region128: #{residual_block_pallas.8} parent=121 // pred_check_branch
          %468 = sbr.rel (%p466) target = $region130
        $region129: #{residual_block_pallas.8} parent=121 // pred_region
          %p469 = scmp.lt.s32.totalorder %s17, 7
          %s470 = scalar_select %p469, %s17, 7
          %s471 = scalar_lea.vmem %s3, %s470
        $region130: #{residual_block_pallas.8} parent=121 // pred_fallthru
          _
        // Predicated region
        $region131: #{residual_block_pallas.8} parent=121 // pred_check
          %p472 = pneg %p139
        $region132: #{residual_block_pallas.8} parent=121 // pred_check_branch
          %474 = sbr.rel (%p472) target = $region134
        $region133: #{residual_block_pallas.8} parent=121 // pred_region
          %p475 = scmp.lt.s32.totalorder %s17, 7
          %s476 = scalar_select %p475, %s17, 7
          %s477 = scalar_lea.vmem %s4, %s476
        $region134: #{residual_block_pallas.8} parent=121 // pred_fallthru
          _
      $region122: #{residual_block_pallas.8} parent=5 // pred_fallthru
        _
    $region6: #{residual_block_pallas.8} parent=1 // loop_footer
      %s15 = sadd.s32 1, %s11
    $region7: #{residual_block_pallas.8} parent=1 // loop_footer_branch
      %10 = sbr.rel target = $region3
    $region8: #{residual_block_pallas.8} parent=1 // loop_exit
      _

// kernel: residual_block_pallas.6
$region0: #{residual_block_pallas.6}
  #allocation0 [shape = 'u32[]', space=smem, size = 0x4, offset = 0x4, fixed_abs, tag = 'smem constant byte address 0x4 - core index']
  #allocation1 [shape = 'u32[144,128]{1,0:T(1,128)}', space=vmem, size = 0x12000, scoped, tag = 'internal scratch']
  %s0 = inlined_call_operand.vmem [shape: bf16[128,128], index: 0, kind: input, shape index: {}]
  %s1 = inlined_call_operand.vmem [shape: f32[1,128], index: 1, kind: input, shape index: {}]
  %s2 = inlined_call_operand.vmem [shape: f32[1,128], index: 2, kind: input, shape index: {}]
  %s3 = inlined_call_operand.vmem [shape: bf16[128,128], index: 3, kind: output, shape index: {}]
  %s4 = sld [smem:[#allocation0]]
  $region22: #{residual_block_pallas.6} parent=0
    _
  %s6 = ssub.s32 1, %s4
  %s7 = scalar_select 0, %s6, %s4
  // Predicated region
  $region2: #{residual_block_pallas.6} parent=0 // pred_check
    _
  $region3: #{residual_block_pallas.6} parent=0 // pred_check_branch
    %9 = sbr.rel (0) target = $region5
  $region4: #{residual_block_pallas.6} parent=0 // pred_region
    _
  $region5: #{residual_block_pallas.6} parent=0 // pred_fallthru
    _
  // Predicated region
  $region6: #{residual_block_pallas.6} parent=0 // pred_check
    _
  $region7: #{residual_block_pallas.6} parent=0 // pred_check_branch
    %11 = sbr.rel (0) target = $region9
  $region8: #{residual_block_pallas.6} parent=0 // pred_region
    _
  $region9: #{residual_block_pallas.6} parent=0 // pred_fallthru
    _
  // Predicated region
  $region10: #{residual_block_pallas.6} parent=0 // pred_check
    _
  $region11: #{residual_block_pallas.6} parent=0 // pred_check_branch
    %13 = sbr.rel (0) target = $region13
  $region12: #{residual_block_pallas.6} parent=0 // pred_region
    _
  $region13: #{residual_block_pallas.6} parent=0 // pred_fallthru
    _
  %v14 = vld [vmem:[%s0] sm:$0xf]
  %v15 = vld [vmem:[%s0 + $0x4] sm:$0xf]
  %v16 = vld [vmem:[%s0 + $0x8] sm:$0xf]
  %v17 = vld [vmem:[%s0 + $0xc] sm:$0xf]
  %v18 = vld [vmem:[%s0 + $0x10] sm:$0xf]
  %v19 = vld [vmem:[%s0 + $0x14] sm:$0xf]
  %v20 = vld [vmem:[%s0 + $0x18] sm:$0xf]
  %v21 = vld [vmem:[%s0 + $0x1c] sm:$0xf]
  %v22 = vld [vmem:[%s0 + $0x20] sm:$0xf]
  %v23 = vld [vmem:[%s0 + $0x24] sm:$0xf]
  %v24 = vld [vmem:[%s0 + $0x28] sm:$0xf]
  %v25 = vld [vmem:[%s0 + $0x2c] sm:$0xf]
  %v26 = vld [vmem:[%s0 + $0x30] sm:$0xf]
  %v27 = vld [vmem:[%s0 + $0x34] sm:$0xf]
  %v28 = vld [vmem:[%s0 + $0x38] sm:$0xf]
  %v29 = vld [vmem:[%s0 + $0x3c] sm:$0xf]
  %v30 = vunpack.c.l.bf16 %v14
  %v31 = vunpack.c.l.bf16 %v15
  %v32 = vunpack.c.l.bf16 %v16
  %v33 = vunpack.c.l.bf16 %v17
  %v34 = vunpack.c.l.bf16 %v18
  %v35 = vunpack.c.l.bf16 %v19
  %v36 = vunpack.c.l.bf16 %v20
  %v37 = vunpack.c.l.bf16 %v21
  %v38 = vunpack.c.l.bf16 %v22
  %v39 = vunpack.c.l.bf16 %v23
  %v40 = vunpack.c.l.bf16 %v24
  %v41 = vunpack.c.l.bf16 %v25
  %v42 = vunpack.c.l.bf16 %v26
  %v43 = vunpack.c.l.bf16 %v27
  %v44 = vunpack.c.l.bf16 %v28
  %v45 = vunpack.c.l.bf16 %v29
  %v46 = vld [vmem:[%s1] sm:$0x1]
  %v48 = vlaneseq
  %v49 = vshrl.u32 %v48, 7
  %v50 = vsub.s32 0, %v49
  %v51 = vrot.slane %v46, %v50
  %v53 = vmul.f32 %v30, %v51
  %v54 = vmul.f32 %v31, %v51
  %v55 = vmul.f32 %v32, %v51
  %v56 = vmul.f32 %v33, %v51
  %v57 = vmul.f32 %v34, %v51
  %v58 = vmul.f32 %v35, %v51
  %v59 = vmul.f32 %v36, %v51
  %v60 = vmul.f32 %v37, %v51
  %v61 = vmul.f32 %v38, %v51
  %v62 = vmul.f32 %v39, %v51
  %v63 = vmul.f32 %v40, %v51
  %v64 = vmul.f32 %v41, %v51
  %v65 = vmul.f32 %v42, %v51
  %v66 = vmul.f32 %v43, %v51
  %v67 = vmul.f32 %v44, %v51
  %v68 = vmul.f32 %v45, %v51
  %v69 = vld [vmem:[%s2] sm:$0x1]
  %v71 = vlaneseq
  %v72 = vshrl.u32 %v71, 7
  %v73 = vsub.s32 0, %v72
  %v74 = vrot.slane %v69, %v73
  %v76 = vadd.f32 %v53, %v74
  %v77 = vadd.f32 %v54, %v74
  %v78 = vadd.f32 %v55, %v74
  %v79 = vadd.f32 %v56, %v74
  %v80 = vadd.f32 %v57, %v74
  %v81 = vadd.f32 %v58, %v74
  %v82 = vadd.f32 %v59, %v74
  %v83 = vadd.f32 %v60, %v74
  %v84 = vadd.f32 %v61, %v74
  %v85 = vadd.f32 %v62, %v74
  %v86 = vadd.f32 %v63, %v74
  %v87 = vadd.f32 %v64, %v74
  %v88 = vadd.f32 %v65, %v74
  %v89 = vadd.f32 %v66, %v74
  %v90 = vadd.f32 %v67, %v74
  %v91 = vadd.f32 %v68, %v74
  %v92 = vmax.f32 %v76, 0.0
  %v93 = vmax.f32 %v77, 0.0
  %v94 = vmax.f32 %v78, 0.0
  %v95 = vmax.f32 %v79, 0.0
  %v96 = vmax.f32 %v80, 0.0
  %v97 = vmax.f32 %v81, 0.0
  %v98 = vmax.f32 %v82, 0.0
  %v99 = vmax.f32 %v83, 0.0
  %v100 = vmax.f32 %v84, 0.0
  %v101 = vmax.f32 %v85, 0.0
  %v102 = vmax.f32 %v86, 0.0
  %v103 = vmax.f32 %v87, 0.0
  %v104 = vmax.f32 %v88, 0.0
  %v105 = vmax.f32 %v89, 0.0
  %v106 = vmax.f32 %v90, 0.0
  %v107 = vmax.f32 %v91, 0.0
  %v108 = vpack.c.bf16 %v93, %v92
  %v109 = vpack.c.bf16 %v95, %v94
  %v110 = vpack.c.bf16 %v97, %v96
  %v111 = vpack.c.bf16 %v99, %v98
  %v112 = vpack.c.bf16 %v101, %v100
  %v113 = vpack.c.bf16 %v103, %v102
  %v114 = vpack.c.bf16 %v105, %v104
  %v115 = vpack.c.bf16 %v107, %v106
  %v124 = vunpack.c.l.b16 %v108
  %v125 = vunpack.c.h.b16 %v108
  %v126 = vunpack.c.l.b16 %v109
  %v127 = vunpack.c.h.b16 %v109
  %v128 = vunpack.c.l.b16 %v110
  %v129 = vunpack.c.h.b16 %v110
  %v130 = vunpack.c.l.b16 %v111
  %v131 = vunpack.c.h.b16 %v111
  %v132 = vunpack.c.l.b16 %v112
  %v133 = vunpack.c.h.b16 %v112
  %v134 = vunpack.c.l.b16 %v113
  %v135 = vunpack.c.h.b16 %v113
  %v136 = vunpack.c.l.b16 %v114
  %v137 = vunpack.c.h.b16 %v114
  %v138 = vunpack.c.l.b16 %v115
  %v139 = vunpack.c.h.b16 %v115
  %v140 = vpack.c.b16 %v124, %v124
  %v141 = vpack.c.b16 %v125, %v125
  %v142 = vpack.c.b16 %v126, %v126
  %v143 = vpack.c.b16 %v127, %v127
  %v144 = vpack.c.b16 %v128, %v128
  %v145 = vpack.c.b16 %v129, %v129
  %v146 = vpack.c.b16 %v130, %v130
  %v147 = vpack.c.b16 %v131, %v131
  %v148 = vpack.c.b16 %v132, %v132
  %v149 = vpack.c.b16 %v133, %v133
  %v150 = vpack.c.b16 %v134, %v134
  %v151 = vpack.c.b16 %v135, %v135
  %v152 = vpack.c.b16 %v136, %v136
  %v153 = vpack.c.b16 %v137, %v137
  %v154 = vpack.c.b16 %v138, %v138
  %v155 = vpack.c.b16 %v139, %v139
  %172 = vst [vmem:[%s3] sm:$0xf] %v140
  %173 = vst [vmem:[%s3 + $0x4] sm:$0xf] %v141
  %174 = vst [vmem:[%s3 + $0x8] sm:$0xf] %v142
  %175 = vst [vmem:[%s3 + $0xc] sm:$0xf] %v143
  %176 = vst [vmem:[%s3 + $0x10] sm:$0xf] %v144
  %177 = vst [vmem:[%s3 + $0x14] sm:$0xf] %v145
  %178 = vst [vmem:[%s3 + $0x18] sm:$0xf] %v146
  %179 = vst [vmem:[%s3 + $0x1c] sm:$0xf] %v147
  %180 = vst [vmem:[%s3 + $0x20] sm:$0xf] %v148
  %181 = vst [vmem:[%s3 + $0x24] sm:$0xf] %v149
  %182 = vst [vmem:[%s3 + $0x28] sm:$0xf] %v150
  %183 = vst [vmem:[%s3 + $0x2c] sm:$0xf] %v151
  %184 = vst [vmem:[%s3 + $0x30] sm:$0xf] %v152
  %185 = vst [vmem:[%s3 + $0x34] sm:$0xf] %v153
  %186 = vst [vmem:[%s3 + $0x38] sm:$0xf] %v154
  %187 = vst [vmem:[%s3 + $0x3c] sm:$0xf] %v155
  // Predicated region
  $region14: #{residual_block_pallas.6} parent=0 // pred_check
    _
  $region15: #{residual_block_pallas.6} parent=0 // pred_check_branch
    %189 = sbr.rel (0) target = $region17
  $region16: #{residual_block_pallas.6} parent=0 // pred_region
    _
  $region17: #{residual_block_pallas.6} parent=0 // pred_fallthru
    _
  // Predicated region
  $region18: #{residual_block_pallas.6} parent=0 // pred_check
    _
  $region19: #{residual_block_pallas.6} parent=0 // pred_check_branch
    %191 = sbr.rel (0) target = $region21
  $region20: #{residual_block_pallas.6} parent=0 // pred_region
    _
  $region21: #{residual_block_pallas.6} parent=0 // pred_fallthru
    _

// kernel: residual_block_pallas.5
$region0: #{residual_block_pallas.5}
  #allocation0 [shape = 'u32[]', space=smem, size = 0x4, offset = 0x4, fixed_abs, tag = 'smem constant byte address 0x4 - core index']
  #allocation1 [shape = 'u32[144,128]{1,0:T(1,128)}', space=vmem, size = 0x12000, scoped, tag = 'internal scratch']
  %s0 = inlined_call_operand.vmem [shape: bf16[128,128], index: 0, kind: input, shape index: {}]
  %s1 = inlined_call_operand.vmem [shape: bf16[128,128], index: 1, kind: input, shape index: {}]
  %s2 = inlined_call_operand.vmem [shape: bf16[128,128], index: 2, kind: output, shape index: {0}]
  %s3 = inlined_call_operand.vmem [shape: f32[1,1,128], index: 3, kind: output, shape index: {1}]
  %s4 = inlined_call_operand.vmem [shape: f32[1,1,128], index: 4, kind: output, shape index: {2}]
  %5 = xla_tuple %s2, %s3, %s4
  %s6 = sld [smem:[#allocation0]]
  $region34: #{residual_block_pallas.5} parent=0
    _
  %s8 = ssub.s32 1, %s6
  %s9 = scalar_select 0, %s8, %s6
  // Predicated region
  $region2: #{residual_block_pallas.5} parent=0 // pred_check
    _
  $region3: #{residual_block_pallas.5} parent=0 // pred_check_branch
    %11 = sbr.rel (0) target = $region5
  $region4: #{residual_block_pallas.5} parent=0 // pred_region
    _
  $region5: #{residual_block_pallas.5} parent=0 // pred_fallthru
    _
  // Predicated region
  $region6: #{residual_block_pallas.5} parent=0 // pred_check
    _
  $region7: #{residual_block_pallas.5} parent=0 // pred_check_branch
    %13 = sbr.rel (0) target = $region9
  $region8: #{residual_block_pallas.5} parent=0 // pred_region
    _
  $region9: #{residual_block_pallas.5} parent=0 // pred_fallthru
    _
  %v15 = vld [vmem:[%s0] sm:$0xf]
  %v16 = vld [vmem:[%s0 + $0x4] sm:$0xf]
  %v17 = vld [vmem:[%s0 + $0x8] sm:$0xf]
  %v18 = vld [vmem:[%s0 + $0xc] sm:$0xf]
  %v19 = vld [vmem:[%s0 + $0x10] sm:$0xf]
  %v20 = vld [vmem:[%s0 + $0x14] sm:$0xf]
  %v21 = vld [vmem:[%s0 + $0x18] sm:$0xf]
  %v22 = vld [vmem:[%s0 + $0x1c] sm:$0xf]
  %v23 = vld [vmem:[%s0 + $0x20] sm:$0xf]
  %v24 = vld [vmem:[%s0 + $0x24] sm:$0xf]
  %v25 = vld [vmem:[%s0 + $0x28] sm:$0xf]
  %v26 = vld [vmem:[%s0 + $0x2c] sm:$0xf]
  %v27 = vld [vmem:[%s0 + $0x30] sm:$0xf]
  %v28 = vld [vmem:[%s0 + $0x34] sm:$0xf]
  %v29 = vld [vmem:[%s0 + $0x38] sm:$0xf]
  %v30 = vld [vmem:[%s0 + $0x3c] sm:$0xf]
  %v31 = vld [vmem:[%s1] sm:$0xf]
  %v32 = vld [vmem:[%s1 + $0x4] sm:$0xf]
  %v33 = vld [vmem:[%s1 + $0x8] sm:$0xf]
  %v34 = vld [vmem:[%s1 + $0xc] sm:$0xf]
  %v35 = vld [vmem:[%s1 + $0x10] sm:$0xf]
  %v36 = vld [vmem:[%s1 + $0x14] sm:$0xf]
  %v37 = vld [vmem:[%s1 + $0x18] sm:$0xf]
  %v38 = vld [vmem:[%s1 + $0x1c] sm:$0xf]
  %v39 = vld [vmem:[%s1 + $0x20] sm:$0xf]
  %v40 = vld [vmem:[%s1 + $0x24] sm:$0xf]
  %v41 = vld [vmem:[%s1 + $0x28] sm:$0xf]
  %v42 = vld [vmem:[%s1 + $0x2c] sm:$0xf]
  %v43 = vld [vmem:[%s1 + $0x30] sm:$0xf]
  %v44 = vld [vmem:[%s1 + $0x34] sm:$0xf]
  %v45 = vld [vmem:[%s1 + $0x38] sm:$0xf]
  %v46 = vld [vmem:[%s1 + $0x3c] sm:$0xf]
  %v63 = vunpack.c.l.b16 %v15
  %v64 = vunpack.c.l.b16 %v16
  %v65 = vunpack.c.l.b16 %v17
  %v66 = vunpack.c.l.b16 %v18
  %v67 = vunpack.c.l.b16 %v19
  %v68 = vunpack.c.l.b16 %v20
  %v69 = vunpack.c.l.b16 %v21
  %v70 = vunpack.c.l.b16 %v22
  %v71 = vunpack.c.l.b16 %v23
  %v72 = vunpack.c.l.b16 %v24
  %v73 = vunpack.c.l.b16 %v25
  %v74 = vunpack.c.l.b16 %v26
  %v75 = vunpack.c.l.b16 %v27
  %v76 = vunpack.c.l.b16 %v28
  %v77 = vunpack.c.l.b16 %v29
  %v78 = vunpack.c.l.b16 %v30
  %v79 = vpack.c.b16 %v64, %v63
  %v80 = vpack.c.b16 %v66, %v65
  %v81 = vpack.c.b16 %v68, %v67
  %v82 = vpack.c.b16 %v70, %v69
  %v83 = vpack.c.b16 %v72, %v71
  %v84 = vpack.c.b16 %v74, %v73
  %v85 = vpack.c.b16 %v76, %v75
  %v86 = vpack.c.b16 %v78, %v77
  %v111 = vunpack.c.l.b16 %v31
  %v112 = vunpack.c.l.b16 %v32
  %v113 = vunpack.c.l.b16 %v33
  %v114 = vunpack.c.l.b16 %v34
  %v115 = vunpack.c.l.b16 %v35
  %v116 = vunpack.c.l.b16 %v36
  %v117 = vunpack.c.l.b16 %v37
  %v118 = vunpack.c.l.b16 %v38
  %v119 = vunpack.c.l.b16 %v39
  %v120 = vunpack.c.l.b16 %v40
  %v121 = vunpack.c.l.b16 %v41
  %v122 = vunpack.c.l.b16 %v42
  %v123 = vunpack.c.l.b16 %v43
  %v124 = vunpack.c.l.b16 %v44
  %v125 = vunpack.c.l.b16 %v45
  %v126 = vunpack.c.l.b16 %v46
  %v127 = vpack.c.b16 %v112, %v111
  %v128 = vpack.c.b16 %v114, %v113
  %v129 = vpack.c.b16 %v116, %v115
  %v130 = vpack.c.b16 %v118, %v117
  %v131 = vpack.c.b16 %v120, %v119
  %v132 = vpack.c.b16 %v122, %v121
  %v133 = vpack.c.b16 %v124, %v123
  %v134 = vpack.c.b16 %v126, %v125
  %143 = vmatprep.subr.bf16.mxu0 0
  %144 = vmatpush1.bf16.msra.mxu0 %v127
  %145 = vmatprep.subr.bf16.mxu0 0
  %146 = vmatpush1.bf16.msra.mxu0 %v128
  %147 = vmatprep.subr.bf16.mxu0 0
  %148 = vmatpush1.bf16.msra.mxu0 %v129
  %149 = vmatprep.subr.bf16.mxu0 0
  %150 = vmatpush1.bf16.msra.mxu0 %v130
  %151 = vmatprep.subr.bf16.mxu0 0
  %152 = vmatpush1.bf16.msra.mxu0 %v131
  %153 = vmatprep.subr.bf16.mxu0 0
  %154 = vmatpush1.bf16.msra.mxu0 %v132
  %155 = vmatprep.subr.bf16.mxu0 0
  %156 = vmatpush1.bf16.msra.mxu0 %v133
  %157 = vmatprep.subr.bf16.mxu0 0
  %158 = vmatpush1.bf16.msra.mxu0 %v134
  %159 = vmatprep.subr.bf16.mxu0 0
  %160 = vmatpush1.bf16.msra.mxu0 0
  %161 = vmatprep.subr.bf16.mxu0 0
  %162 = vmatpush1.bf16.msra.mxu0 0
  %163 = vmatprep.subr.bf16.mxu0 0
  %164 = vmatpush1.bf16.msra.mxu0 0
  %165 = vmatprep.subr.bf16.mxu0 0
  %166 = vmatpush1.bf16.msra.mxu0 0
  %167 = vmatprep.subr.bf16.mxu0 0
  %168 = vmatpush1.bf16.msra.mxu0 0
  %169 = vmatprep.subr.bf16.mxu0 0
  %170 = vmatpush1.bf16.msra.mxu0 0
  %171 = vmatprep.subr.bf16.mxu0 0
  %172 = vmatpush1.bf16.msra.mxu0 0
  %173 = vmatprep.subr.bf16.mxu0 0
  %174 = vmatpush1.bf16.msra.mxu0 0
  %175 = vmatprep.mubr.bf16.mxu0 0
  %176 = vmatmul.mubr.bf16.gmra.mrb[0].mxu0 %v79
  %v177 = vpop.f32.mrb[0].mxu0
  %v178 = vadd.f32 0.0, %v177
  %v179 = vpop.f32.mrb[0].mxu0
  %v180 = vpop.f32.mrb[0].mxu0
  %v181 = vadd.f32 0.0, %v180
  %v182 = vpop.f32.mrb[0].mxu0
  %183 = vmatprep.mubr.bf16.mxu0 0
  %184 = vmatmul.mubr.bf16.gmra.mrb[0].mxu0 %v80
  %v185 = vpop.f32.mrb[0].mxu0
  %v186 = vadd.f32 0.0, %v185
  %v187 = vpop.f32.mrb[0].mxu0
  %v188 = vpop.f32.mrb[0].mxu0
  %v189 = vadd.f32 0.0, %v188
  %v190 = vpop.f32.mrb[0].mxu0
  %191 = vmatprep.mubr.bf16.mxu0 0
  %192 = vmatmul.mubr.bf16.gmra.mrb[0].mxu0 %v81
  %v193 = vpop.f32.mrb[0].mxu0
  %v194 = vadd.f32 0.0, %v193
  %v195 = vpop.f32.mrb[0].mxu0
  %v196 = vpop.f32.mrb[0].mxu0
  %v197 = vadd.f32 0.0, %v196
  %v198 = vpop.f32.mrb[0].mxu0
  %199 = vmatprep.mubr.bf16.mxu0 0
  %200 = vmatmul.mubr.bf16.gmra.mrb[0].mxu0 %v82
  %v201 = vpop.f32.mrb[0].mxu0
  %v202 = vadd.f32 0.0, %v201
  %v203 = vpop.f32.mrb[0].mxu0
  %v204 = vpop.f32.mrb[0].mxu0
  %v205 = vadd.f32 0.0, %v204
  %v206 = vpop.f32.mrb[0].mxu0
  %207 = vmatprep.mubr.bf16.mxu0 0
  %208 = vmatmul.mubr.bf16.gmra.mrb[0].mxu0 %v83
  %v209 = vpop.f32.mrb[0].mxu0
  %v210 = vadd.f32 0.0, %v209
  %v211 = vpop.f32.mrb[0].mxu0
  %v212 = vpop.f32.mrb[0].mxu0
  %v213 = vadd.f32 0.0, %v212
  %v214 = vpop.f32.mrb[0].mxu0
  %215 = vmatprep.mubr.bf16.mxu0 0
  %216 = vmatmul.mubr.bf16.gmra.mrb[0].mxu0 %v84
  %v217 = vpop.f32.mrb[0].mxu0
  %v218 = vadd.f32 0.0, %v217
  %v219 = vpop.f32.mrb[0].mxu0
  %v220 = vpop.f32.mrb[0].mxu0
  %v221 = vadd.f32 0.0, %v220
  %v222 = vpop.f32.mrb[0].mxu0
  %223 = vmatprep.mubr.bf16.mxu0 0
  %224 = vmatmul.mubr.bf16.gmra.mrb[0].mxu0 %v85
  %v225 = vpop.f32.mrb[0].mxu0
  %v226 = vadd.f32 0.0, %v225
  %v227 = vpop.f32.mrb[0].mxu0
  %v228 = vpop.f32.mrb[0].mxu0
  %v229 = vadd.f32 0.0, %v228
  %v230 = vpop.f32.mrb[0].mxu0
  %231 = vmatprep.mubr.bf16.mxu0 0
  %232 = vmatmul.mubr.bf16.gmra.mrb[0].mxu0 %v86
  %v233 = vpop.f32.mrb[0].mxu0
  %v234 = vadd.f32 0.0, %v233
  %v235 = vpop.f32.mrb[0].mxu0
  %v236 = vpop.f32.mrb[0].mxu0
  %v237 = vadd.f32 0.0, %v236
  %v238 = vpop.f32.mrb[0].mxu0
  %239 = vdwg.mxu0
  %v240 = vpack.c.bf16 %v181, %v178
  %v241 = vpack.c.bf16 %v189, %v186
  %v242 = vpack.c.bf16 %v197, %v194
  %v243 = vpack.c.bf16 %v205, %v202
  %v244 = vpack.c.bf16 %v213, %v210
  %v245 = vpack.c.bf16 %v221, %v218
  %v246 = vpack.c.bf16 %v229, %v226
  %v247 = vpack.c.bf16 %v237, %v234
  %v256 = vunpack.c.l.b16 %v240
  %v257 = vunpack.c.h.b16 %v240
  %v258 = vunpack.c.l.b16 %v241
  %v259 = vunpack.c.h.b16 %v241
  %v260 = vunpack.c.l.b16 %v242
  %v261 = vunpack.c.h.b16 %v242
  %v262 = vunpack.c.l.b16 %v243
  %v263 = vunpack.c.h.b16 %v243
  %v264 = vunpack.c.l.b16 %v244
  %v265 = vunpack.c.h.b16 %v244
  %v266 = vunpack.c.l.b16 %v245
  %v267 = vunpack.c.h.b16 %v245
  %v268 = vunpack.c.l.b16 %v246
  %v269 = vunpack.c.h.b16 %v246
  %v270 = vunpack.c.l.b16 %v247
  %v271 = vunpack.c.h.b16 %v247
  %v272 = vpack.c.b16 %v256, %v256
  %v273 = vpack.c.b16 %v257, %v257
  %v274 = vpack.c.b16 %v258, %v258
  %v275 = vpack.c.b16 %v259, %v259
  %v276 = vpack.c.b16 %v260, %v260
  %v277 = vpack.c.b16 %v261, %v261
  %v278 = vpack.c.b16 %v262, %v262
  %v279 = vpack.c.b16 %v263, %v263
  %v280 = vpack.c.b16 %v264, %v264
  %v281 = vpack.c.b16 %v265, %v265
  %v282 = vpack.c.b16 %v266, %v266
  %v283 = vpack.c.b16 %v267, %v267
  %v284 = vpack.c.b16 %v268, %v268
  %v285 = vpack.c.b16 %v269, %v269
  %v286 = vpack.c.b16 %v270, %v270
  %v287 = vpack.c.b16 %v271, %v271
  %304 = vst [vmem:[%s2] sm:$0xf] %v272
  %305 = vst [vmem:[%s2 + $0x4] sm:$0xf] %v273
  %306 = vst [vmem:[%s2 + $0x8] sm:$0xf] %v274
  %307 = vst [vmem:[%s2 + $0xc] sm:$0xf] %v275
  %308 = vst [vmem:[%s2 + $0x10] sm:$0xf] %v276
  %309 = vst [vmem:[%s2 + $0x14] sm:$0xf] %v277
  %310 = vst [vmem:[%s2 + $0x18] sm:$0xf] %v278
  %311 = vst [vmem:[%s2 + $0x1c] sm:$0xf] %v279
  %312 = vst [vmem:[%s2 + $0x20] sm:$0xf] %v280
  %313 = vst [vmem:[%s2 + $0x24] sm:$0xf] %v281
  %314 = vst [vmem:[%s2 + $0x28] sm:$0xf] %v282
  %315 = vst [vmem:[%s2 + $0x2c] sm:$0xf] %v283
  %316 = vst [vmem:[%s2 + $0x30] sm:$0xf] %v284
  %317 = vst [vmem:[%s2 + $0x34] sm:$0xf] %v285
  %318 = vst [vmem:[%s2 + $0x38] sm:$0xf] %v286
  %319 = vst [vmem:[%s2 + $0x3c] sm:$0xf] %v287
  %v320 = vadd.f32 %v178, %v181
  %v321 = vadd.f32 %v320, %v186
  %v322 = vadd.f32 %v321, %v189
  %v323 = vadd.f32 %v322, %v194
  %v324 = vadd.f32 %v323, %v197
  %v325 = vadd.f32 %v324, %v202
  %v326 = vadd.f32 %v325, %v205
  %v327 = vadd.f32 %v326, %v210
  %v328 = vadd.f32 %v327, %v213
  %v329 = vadd.f32 %v328, %v218
  %v330 = vadd.f32 %v329, %v221
  %v331 = vadd.f32 %v330, %v226
  %v332 = vadd.f32 %v331, %v229
  %v333 = vadd.f32 %v332, %v234
  %v334 = vadd.f32 %v333, %v237
  %v335 = vrot.slane %v334, 4
  %v336 = vadd.f32 %v334, %v335
  %v337 = vrot.slane %v336, 2
  %v338 = vadd.f32 %v336, %v337
  %v339 = vrot.slane %v338, 1
  %v340 = vadd.f32 %v338, %v339
  %341 = vst [vmem:[%s3] sm:$0x1] %v340
  %v342 = vmul.f32 %v178, %v178
  %v343 = vmul.f32 %v181, %v181
  %v344 = vmul.f32 %v186, %v186
  %v345 = vmul.f32 %v189, %v189
  %v346 = vmul.f32 %v194, %v194
  %v347 = vmul.f32 %v197, %v197
  %v348 = vmul.f32 %v202, %v202
  %v349 = vmul.f32 %v205, %v205
  %v350 = vmul.f32 %v210, %v210
  %v351 = vmul.f32 %v213, %v213
  %v352 = vmul.f32 %v218, %v218
  %v353 = vmul.f32 %v221, %v221
  %v354 = vmul.f32 %v226, %v226
  %v355 = vmul.f32 %v229, %v229
  %v356 = vmul.f32 %v234, %v234
  %v357 = vmul.f32 %v237, %v237
  %v358 = vadd.f32 %v342, %v343
  %v359 = vadd.f32 %v358, %v344
  %v360 = vadd.f32 %v359, %v345
  %v361 = vadd.f32 %v360, %v346
  %v362 = vadd.f32 %v361, %v347
  %v363 = vadd.f32 %v362, %v348
  %v364 = vadd.f32 %v363, %v349
  %v365 = vadd.f32 %v364, %v350
  %v366 = vadd.f32 %v365, %v351
  %v367 = vadd.f32 %v366, %v352
  %v368 = vadd.f32 %v367, %v353
  %v369 = vadd.f32 %v368, %v354
  %v370 = vadd.f32 %v369, %v355
  %v371 = vadd.f32 %v370, %v356
  %v372 = vadd.f32 %v371, %v357
  %v373 = vrot.slane %v372, 4
  %v374 = vadd.f32 %v372, %v373
  %v375 = vrot.slane %v374, 2
  %v376 = vadd.f32 %v374, %v375
  %v377 = vrot.slane %v376, 1
  %v378 = vadd.f32 %v376, %v377
  %379 = vst [vmem:[%s4] sm:$0x1] %v378
  // Predicated region
  $region10: #{residual_block_pallas.5} parent=0 // pred_check
    _
  $region11: #{residual_block_pallas.5} parent=0 // pred_check_branch
    %381 = sbr.rel (0) target = $region13
  $region12: #{residual_block_pallas.5} parent=0 // pred_region
    _
  $region13: #{residual_block_pallas.5} parent=0 // pred_fallthru
    _
  // Predicated region
  $region14: #{residual_block_pallas.5} parent=0 // pred_check
    _
  $region15: #{residual_block_pallas.5} parent=0 // pred_check_branch
    %383 = sbr.rel (0) target = $region17
  $region16: #{residual_block_pallas.5} parent=0 // pred_region
    _
  $region17: #{residual_block_pallas.5} parent=0 // pred_fallthru
    _
  // Predicated region
  $region18: #{residual_block_pallas.5} parent=0 // pred_check
    _
  $region19: #{residual_block_pallas.5} parent=0 // pred_check_branch
    %385 = sbr.rel (0) target = $region21
  $region20: #{residual_block_pallas.5} parent=0 // pred_region
    _
  $region21: #{residual_block_pallas.5} parent=0 // pred_fallthru
    _
  // Predicated region
  $region22: #{residual_block_pallas.5} parent=0 // pred_check
    _
  $region23: #{residual_block_pallas.5} parent=0 // pred_check_branch
    %387 = sbr.rel (0) target = $region25
  $region24: #{residual_block_pallas.5} parent=0 // pred_region
    _
  $region25: #{residual_block_pallas.5} parent=0 // pred_fallthru
    _
  // Predicated region
  $region26: #{residual_block_pallas.5} parent=0 // pred_check
    _
  $region27: #{residual_block_pallas.5} parent=0 // pred_check_branch
    %389 = sbr.rel (0) target = $region29
  $region28: #{residual_block_pallas.5} parent=0 // pred_region
    _
  $region29: #{residual_block_pallas.5} parent=0 // pred_fallthru
    _
  // Predicated region
  $region30: #{residual_block_pallas.5} parent=0 // pred_check
    _
  $region31: #{residual_block_pallas.5} parent=0 // pred_check_branch
    %391 = sbr.rel (0) target = $region33
  $region32: #{residual_block_pallas.5} parent=0 // pred_region
    _
  $region33: #{residual_block_pallas.5} parent=0 // pred_fallthru
    _

// kernel: residual_block_pallas.9
$region0: #{residual_block_pallas.9}
  #allocation0 [shape = 'u32[]', space=smem, size = 0x4, offset = 0x4, fixed_abs, tag = 'smem constant byte address 0x4 - core index']
  #allocation1 [shape = 'u32[144,128]{1,0:T(1,128)}', space=vmem, size = 0x12000, scoped, tag = 'internal scratch']
  %s0 = inlined_call_operand.vmem [shape: bf16[2,8,8,128], index: 0, kind: input, shape index: {}]
  %s1 = inlined_call_operand.vmem [shape: bf16[2,8,8,128], index: 1, kind: input, shape index: {}]
  %s2 = inlined_call_operand.vmem [shape: f32[1,128], index: 2, kind: input, shape index: {}]
  %s3 = inlined_call_operand.vmem [shape: f32[1,128], index: 3, kind: input, shape index: {}]
  %s4 = inlined_call_operand.vmem [shape: f32[1,128], index: 4, kind: input, shape index: {}]
  %s5 = inlined_call_operand.vmem [shape: f32[1,128], index: 5, kind: input, shape index: {}]
  %s6 = inlined_call_operand.vmem [shape: bf16[2,8,8,128], index: 6, kind: output, shape index: {}]
  %s7 = sld [smem:[#allocation0]]
  $region176: #{residual_block_pallas.9} parent=0
    _
  %s9 = ssub.s32 1, %s7
  %s10 = scalar_select 0, %s9, %s7
  $region1: #{residual_block_pallas.9} parent=0
    #allocation2 [shape = 'u8[8192]{0}', space=vmem, size = 0x2000, scoped, tag = 'input window, operand 0']
    #allocation3 [shape = 'u8[8192]{0}', space=vmem, size = 0x2000, scoped, tag = 'input window, operand 1']
    #allocation4 [shape = 'u8[8192]{0}', space=vmem, size = 0x2000, scoped, tag = 'output window, operand 0']
    loop: start=0, step=1, limit=10
    $region2: #{residual_block_pallas.9} parent=1 // loop_pre_header
      _
    $region3: #{residual_block_pallas.9} parent=1 // loop_header
      %s12 = sphi 0, %s16
      %p13 = scmp.ge.s32.totalorder %s12, 10
      %s22 = sphi 0, %s24
      %s25 = sphi 0, %s22
      %s26 = sphi 0, %s25
      %s42 = sphi 0, %s26
      %s48 = sphi 0, %s50
      %s51 = sphi 0, %s48
      %s52 = sphi 0, %s51
      %s68 = sphi 0, %s52
      %s72 = sphi 0, %s72
      %s74 = sphi 0, %s72
      %s75 = sphi 0, %s74
      %s89 = sphi 0, %s75
      %s93 = sphi 0, %s93
      %s95 = sphi 0, %s93
      %s96 = sphi 0, %s95
      %s110 = sphi 0, %s96
      %s114 = sphi 0, %s114
      %s116 = sphi 0, %s114
      %s117 = sphi 0, %s116
      %s131 = sphi 0, %s117
      %s135 = sphi 0, %s135
      %s137 = sphi 0, %s135
      %s138 = sphi 0, %s137
      %s152 = sphi 0, %s138
      %s158 = sphi 0, %s160
      %s161 = sphi 0, %s158
      %s162 = sphi 0, %s161
      %s178 = sphi 0, %s162
    $region4: #{residual_block_pallas.9} parent=1 // loop_header_branch
      %15 = sbr.rel (%p13) target = $region8
    $region5: #{residual_block_pallas.9} parent=1 // loop_body
      %s17 = ssub.s32 %s12, 1
      %s18 = ssub.s32 %s12, 2
      %s19 = sadd.s32 %s12, 1
      %s20 = ssub.s32 %s12, %s19
      %p21 = scmp.eq.s32.totalorder %s20, 0
      %s23 = sadd.s32 %s22, 1
      %s24 = scalar_select %p21, %s22, %s23
      %p27 = pneg %p21
      %p28 = scmp.eq.s32.totalorder %s12, 7
      %p29 = por %p27, %p28
      %p30 = scmp.ne.s32.totalorder %s22, %s25
      %p31 = scmp.eq.s32.totalorder %s12, 0
      %p32 = por %p30, %p31
      %p33 = scmp.ne.s32.totalorder %s22, %s25
      %p34 = scmp.eq.s32.totalorder %s17, 7
      %p35 = por %p33, %p34
      %p36 = scmp.ne.s32.totalorder %s25, %s26
      %p37 = scmp.eq.s32.totalorder %s17, 0
      %p38 = por %p36, %p37
      %p39 = scmp.ne.s32.totalorder %s25, %s26
      %p40 = scmp.eq.s32.totalorder %s18, 7
      %p41 = por %p39, %p40
      %p43 = scmp.ne.s32.totalorder %s26, %s42
      %p44 = scmp.eq.s32.totalorder %s18, 0
      %p45 = por %p43, %p44
      %s46 = ssub.s32 %s12, %s19
      %p47 = scmp.eq.s32.totalorder %s46, 0
      %s49 = sadd.s32 %s48, 1
      %s50 = scalar_select %p47, %s48, %s49
      %p53 = pneg %p47
      %p54 = scmp.eq.s32.totalorder %s12, 7
      %p55 = por %p53, %p54
      %p56 = scmp.ne.s32.totalorder %s48, %s51
      %p57 = scmp.eq.s32.totalorder %s12, 0
      %p58 = por %p56, %p57
      %p59 = scmp.ne.s32.totalorder %s48, %s51
      %p60 = scmp.eq.s32.totalorder %s17, 7
      %p61 = por %p59, %p60
      %p62 = scmp.ne.s32.totalorder %s51, %s52
      %p63 = scmp.eq.s32.totalorder %s17, 0
      %p64 = por %p62, %p63
      %p65 = scmp.ne.s32.totalorder %s51, %s52
      %p66 = scmp.eq.s32.totalorder %s18, 7
      %p67 = por %p65, %p66
      %p69 = scmp.ne.s32.totalorder %s52, %s68
      %p70 = scmp.eq.s32.totalorder %s18, 0
      %p71 = por %p69, %p70
      %s73 = sadd.s32 %s72, 1
      %p76 = scmp.eq.s32.totalorder %s12, 7
      %p77 = scmp.ne.s32.totalorder %s72, %s74
      %p78 = scmp.eq.s32.totalorder %s12, 0
      %p79 = por %p77, %p78
      %p80 = scmp.ne.s32.totalorder %s72, %s74
      %p81 = scmp.eq.s32.totalorder %s17, 7
      %p82 = por %p80, %p81
      %p83 = scmp.ne.s32.totalorder %s74, %s75
      %p84 = scmp.eq.s32.totalorder %s17, 0
      %p85 = por %p83, %p84
      %p86 = scmp.ne.s32.totalorder %s74, %s75
      %p87 = scmp.eq.s32.totalorder %s18, 7
      %p88 = por %p86, %p87
      %p90 = scmp.ne.s32.totalorder %s75, %s89
      %p91 = scmp.eq.s32.totalorder %s18, 0
      %p92 = por %p90, %p91
      %s94 = sadd.s32 %s93, 1
      %p97 = scmp.eq.s32.totalorder %s12, 7
      %p98 = scmp.ne.s32.totalorder %s93, %s95
      %p99 = scmp.eq.s32.totalorder %s12, 0
      %p100 = por %p98, %p99
      %p101 = scmp.ne.s32.totalorder %s93, %s95
      %p102 = scmp.eq.s32.totalorder %s17, 7
      %p103 = por %p101, %p102
      %p104 = scmp.ne.s32.totalorder %s95, %s96
      %p105 = scmp.eq.s32.totalorder %s17, 0
      %p106 = por %p104, %p105
      %p107 = scmp.ne.s32.totalorder %s95, %s96
      %p108 = scmp.eq.s32.totalorder %s18, 7
      %p109 = por %p107, %p108
      %p111 = scmp.ne.s32.totalorder %s96, %s110
      %p112 = scmp.eq.s32.totalorder %s18, 0
      %p113 = por %p111, %p112
      %s115 = sadd.s32 %s114, 1
      %p118 = scmp.eq.s32.totalorder %s12, 7
      %p119 = scmp.ne.s32.totalorder %s114, %s116
      %p120 = scmp.eq.s32.totalorder %s12, 0
      %p121 = por %p119, %p120
      %p122 = scmp.ne.s32.totalorder %s114, %s116
      %p123 = scmp.eq.s32.totalorder %s17, 7
      %p124 = por %p122, %p123
      %p125 = scmp.ne.s32.totalorder %s116, %s117
      %p126 = scmp.eq.s32.totalorder %s17, 0
      %p127 = por %p125, %p126
      %p128 = scmp.ne.s32.totalorder %s116, %s117
      %p129 = scmp.eq.s32.totalorder %s18, 7
      %p130 = por %p128, %p129
      %p132 = scmp.ne.s32.totalorder %s117, %s131
      %p133 = scmp.eq.s32.totalorder %s18, 0
      %p134 = por %p132, %p133
      %s136 = sadd.s32 %s135, 1
      %p139 = scmp.eq.s32.totalorder %s12, 7
      %p140 = scmp.ne.s32.totalorder %s135, %s137
      %p141 = scmp.eq.s32.totalorder %s12, 0
      %p142 = por %p140, %p141
      %p143 = scmp.ne.s32.totalorder %s135, %s137
      %p144 = scmp.eq.s32.totalorder %s17, 7
      %p145 = por %p143, %p144
      %p146 = scmp.ne.s32.totalorder %s137, %s138
      %p147 = scmp.eq.s32.totalorder %s17, 0
      %p148 = por %p146, %p147
      %p149 = scmp.ne.s32.totalorder %s137, %s138
      %p150 = scmp.eq.s32.totalorder %s18, 7
      %p151 = por %p149, %p150
      %p153 = scmp.ne.s32.totalorder %s138, %s152
      %p154 = scmp.eq.s32.totalorder %s18, 0
      %p155 = por %p153, %p154
      %s156 = ssub.s32 %s12, %s19
      %p157 = scmp.eq.s32.totalorder %s156, 0
      %s159 = sadd.s32 %s158, 1
      %s160 = scalar_select %p157, %s158, %s159
      %p163 = pneg %p157
      %p164 = scmp.eq.s32.totalorder %s12, 7
      %p165 = por %p163, %p164
      %p166 = scmp.ne.s32.totalorder %s158, %s161
      %p167 = scmp.eq.s32.totalorder %s12, 0
      %p168 = por %p166, %p167
      %p169 = scmp.ne.s32.totalorder %s158, %s161
      %p170 = scmp.eq.s32.totalorder %s17, 7
      %p171 = por %p169, %p170
      %p172 = scmp.ne.s32.totalorder %s161, %s162
      %p173 = scmp.eq.s32.totalorder %s17, 0
      %p174 = por %p172, %p173
      %p175 = scmp.ne.s32.totalorder %s161, %s162
      %p176 = scmp.eq.s32.totalorder %s18, 7
      %p177 = por %p175, %p176
      %p179 = scmp.ne.s32.totalorder %s162, %s178
      %p180 = scmp.eq.s32.totalorder %s18, 0
      %p181 = por %p179, %p180
      %p182 = scmp.le.s32.totalorder 1, %s12
      %p183 = scmp.lt.s32.totalorder %s12, 9
      %p184 = pnand %p182, %p183
      %p185 = pneg %p184
      // Predicated region
      $region9: #{residual_block_pallas.9} parent=5 // pred_check
        _
      $region10: #{residual_block_pallas.9} parent=5 // pred_check_branch
        %187 = sbr.rel (%p184) target = $region12
      $region11: #{residual_block_pallas.9} parent=5 // pred_region
        %s188 = ssub.s32 %s12, 1
        // Predicated region
        $region13: #{residual_block_pallas.9} parent=11 // pred_check
          %p189 = pneg %p85
        $region14: #{residual_block_pallas.9} parent=11 // pred_check_branch
          %191 = sbr.rel (%p189) target = $region16
        $region15: #{residual_block_pallas.9} parent=11 // pred_region
          _
        $region16: #{residual_block_pallas.9} parent=11 // pred_fallthru
          _
        // Predicated region
        $region17: #{residual_block_pallas.9} parent=11 // pred_check
          %p192 = pneg %p106
        $region18: #{residual_block_pallas.9} parent=11 // pred_check_branch
          %194 = sbr.rel (%p192) target = $region20
        $region19: #{residual_block_pallas.9} parent=11 // pred_region
          _
        $region20: #{residual_block_pallas.9} parent=11 // pred_fallthru
          _
        // Predicated region
        $region21: #{residual_block_pallas.9} parent=11 // pred_check
          %p195 = pneg %p127
        $region22: #{residual_block_pallas.9} parent=11 // pred_check_branch
          %197 = sbr.rel (%p195) target = $region24
        $region23: #{residual_block_pallas.9} parent=11 // pred_region
          _
        $region24: #{residual_block_pallas.9} parent=11 // pred_fallthru
          _
        // Predicated region
        $region25: #{residual_block_pallas.9} parent=11 // pred_check
          %p198 = pneg %p148
        $region26: #{residual_block_pallas.9} parent=11 // pred_check_branch
          %200 = sbr.rel (%p198) target = $region28
        $region27: #{residual_block_pallas.9} parent=11 // pred_region
          _
        $region28: #{residual_block_pallas.9} parent=11 // pred_fallthru
          _
      $region12: #{residual_block_pallas.9} parent=5 // pred_fallthru
        _
      %p201 = scmp.lt.s32.totalorder %s12, 8
      // Predicated region
      $region29: #{residual_block_pallas.9} parent=5 // pred_check
        %p202 = pneg %p201
      $region30: #{residual_block_pallas.9} parent=5 // pred_check_branch
        %204 = sbr.rel (%p202) target = $region32
      $region31: #{residual_block_pallas.9} parent=5 // pred_region
        // Predicated region
        $region33: #{residual_block_pallas.9} parent=31 // pred_check
          %p205 = pneg %p32
        $region34: #{residual_block_pallas.9} parent=31 // pred_check_branch
          %207 = sbr.rel (%p205) target = $region36
        $region35: #{residual_block_pallas.9} parent=31 // pred_region
          %s208 = sand.u32 %s22, 1
          %s209 = sand.u32 %s22, 1
          %s210 = smul.addr %s209, 8
          %s211 = scalar_lea.vmem [#allocation2], %s210
          %s212 = smul.addr %s12, 4
          %s213 = scalar_lea.vmem %s0, %s212
          // Predicated region
          $region37: #{residual_block_pallas.9} parent=35 // pred_check
            _
          $region38: #{residual_block_pallas.9} parent=35 // pred_check_branch
            %215 = sbr.rel (0) target = $region40
          $region39: #{residual_block_pallas.9} parent=35 // pred_region
            // Predicated region
            $region41: #{residual_block_pallas.9} parent=39 // pred_check
              _
            $region42: #{residual_block_pallas.9} parent=39 // pred_check_branch
              %217 = sbr.rel target = $region44
            $region43: #{residual_block_pallas.9} parent=39 // pred_region
              // Predicated region
              $region56: #{residual_block_pallas.9} parent=43 // pred_check
                _
              $region57: #{residual_block_pallas.9} parent=43 // pred_check_branch
                %234 = sbr.rel (0) target = $region59
              $region58: #{residual_block_pallas.9} parent=43 // pred_region
                loop: start=0, step=1, limit=1
                $region60: #{residual_block_pallas.9} parent=58 // loop_pre_header
                  _
                $region61: #{residual_block_pallas.9} parent=58 // loop_header
                  %s236 = sphi 0, %s240
                  %p237 = scmp.ge.s32.totalorder %s236, 1
                  %s241 = sphi %s213, %s213
                  %s242 = sphi %s211, %s211
                $region62: #{residual_block_pallas.9} parent=58 // loop_header_branch
                  %239 = sbr.rel (%p237) target = $region66
                $region63: #{residual_block_pallas.9} parent=58 // loop_body
                  _
                $region64: #{residual_block_pallas.9} parent=58 // loop_footer
                  %s240 = sadd.s32 1, %s236
                $region65: #{residual_block_pallas.9} parent=58 // loop_footer_branch
                  %235 = sbr.rel target = $region61
                $region66: #{residual_block_pallas.9} parent=58 // loop_exit
                  _
                loop: start=0, step=1, limit=1
                $region67: #{residual_block_pallas.9} parent=58 // loop_pre_header
                  _
                $region68: #{residual_block_pallas.9} parent=58 // loop_header
                  %s245 = sphi 0, %s249
                  %p246 = scmp.ge.s32.totalorder %s245, 1
                  %s250 = sphi %s213, %s213
                  %s251 = sphi %s211, %s211
                $region69: #{residual_block_pallas.9} parent=58 // loop_header_branch
                  %248 = sbr.rel (%p246) target = $region73
                $region70: #{residual_block_pallas.9} parent=58 // loop_body
                  %v252 = vld [vmem:[%s250] sm:$0xf]
                  %253 = vst [vmem:[%s251] sm:$0xf] %v252
                  %v254 = vld [vmem:[%s250 + $0x20] sm:$0xf]
                  %255 = vst [vmem:[%s251 + $0x4] sm:$0xf] %v254
                $region71: #{residual_block_pallas.9} parent=58 // loop_footer
                  %s249 = sadd.s32 1, %s245
                $region72: #{residual_block_pallas.9} parent=58 // loop_footer_branch
                  %244 = sbr.rel target = $region68
                $region73: #{residual_block_pallas.9} parent=58 // loop_exit
                  _
              $region59: #{residual_block_pallas.9} parent=43 // pred_fallthru
                _
            $region44: #{residual_block_pallas.9} parent=39 // pred_fallthru
              _
            // Predicated region
            $region45: #{residual_block_pallas.9} parent=39 // pred_check
              _
            $region46: #{residual_block_pallas.9} parent=39 // pred_check_branch
              %219 = sbr.rel (0) target = $region48
            $region47: #{residual_block_pallas.9} parent=39 // pred_region
              loop: start=0, step=1, limit=1
              $region49: #{residual_block_pallas.9} parent=47 // loop_pre_header
                _
              $region50: #{residual_block_pallas.9} parent=47 // loop_header
                %s222 = sphi 0, %s226
                %p223 = scmp.ge.s32.totalorder %s222, 1
                %s227 = sphi %s213, %s213
                %s228 = sphi %s211, %s211
              $region51: #{residual_block_pallas.9} parent=47 // loop_header_branch
                %225 = sbr.rel (%p223) target = $region55
              $region52: #{residual_block_pallas.9} parent=47 // loop_body
                %v229 = vld [vmem:[%s227] sm:$0xf]
                %230 = vst [vmem:[%s228] sm:$0xf] %v229
                %v231 = vld [vmem:[%s227 + $0x20] sm:$0xf]
                %232 = vst [vmem:[%s228 + $0x4] sm:$0xf] %v231
              $region53: #{residual_block_pallas.9} parent=47 // loop_footer
                %s226 = sadd.s32 1, %s222
              $region54: #{residual_block_pallas.9} parent=47 // loop_footer_branch
                %221 = sbr.rel target = $region50
              $region55: #{residual_block_pallas.9} parent=47 // loop_exit
                _
            $region48: #{residual_block_pallas.9} parent=39 // pred_fallthru
              _
          $region40: #{residual_block_pallas.9} parent=35 // pred_fallthru
            _
          %256 = vnop
        $region36: #{residual_block_pallas.9} parent=31 // pred_fallthru
          _
        // Predicated region
        $region74: #{residual_block_pallas.9} parent=31 // pred_check
          %p257 = pneg %p58
        $region75: #{residual_block_pallas.9} parent=31 // pred_check_branch
          %259 = sbr.rel (%p257) target = $region77
        $region76: #{residual_block_pallas.9} parent=31 // pred_region
          %s260 = sand.u32 %s48, 1
          %s261 = sand.u32 %s48, 1
          %s262 = smul.addr %s261, 8
          %s263 = scalar_lea.vmem [#allocation3], %s262
          %s264 = smul.addr %s12, 4
          %s265 = scalar_lea.vmem %s1, %s264
          // Predicated region
          $region78: #{residual_block_pallas.9} parent=76 // pred_check
            _
          $region79: #{residual_block_pallas.9} parent=76 // pred_check_branch
            %267 = sbr.rel (0) target = $region81
          $region80: #{residual_block_pallas.9} parent=76 // pred_region
            // Predicated region
            $region82: #{residual_block_pallas.9} parent=80 // pred_check
              _
            $region83: #{residual_block_pallas.9} parent=80 // pred_check_branch
              %269 = sbr.rel target = $region85
            $region84: #{residual_block_pallas.9} parent=80 // pred_region
              // Predicated region
              $region97: #{residual_block_pallas.9} parent=84 // pred_check
                _
              $region98: #{residual_block_pallas.9} parent=84 // pred_check_branch
                %286 = sbr.rel (0) target = $region100
              $region99: #{residual_block_pallas.9} parent=84 // pred_region
                loop: start=0, step=1, limit=1
                $region101: #{residual_block_pallas.9} parent=99 // loop_pre_header
                  _
                $region102: #{residual_block_pallas.9} parent=99 // loop_header
                  %s288 = sphi 0, %s292
                  %p289 = scmp.ge.s32.totalorder %s288, 1
                  %s293 = sphi %s265, %s265
                  %s294 = sphi %s263, %s263
                $region103: #{residual_block_pallas.9} parent=99 // loop_header_branch
                  %291 = sbr.rel (%p289) target = $region107
                $region104: #{residual_block_pallas.9} parent=99 // loop_body
                  _
                $region105: #{residual_block_pallas.9} parent=99 // loop_footer
                  %s292 = sadd.s32 1, %s288
                $region106: #{residual_block_pallas.9} parent=99 // loop_footer_branch
                  %287 = sbr.rel target = $region102
                $region107: #{residual_block_pallas.9} parent=99 // loop_exit
                  _
                loop: start=0, step=1, limit=1
                $region108: #{residual_block_pallas.9} parent=99 // loop_pre_header
                  _
                $region109: #{residual_block_pallas.9} parent=99 // loop_header
                  %s297 = sphi 0, %s301
                  %p298 = scmp.ge.s32.totalorder %s297, 1
                  %s302 = sphi %s265, %s265
                  %s303 = sphi %s263, %s263
                $region110: #{residual_block_pallas.9} parent=99 // loop_header_branch
                  %300 = sbr.rel (%p298) target = $region114
                $region111: #{residual_block_pallas.9} parent=99 // loop_body
                  %v304 = vld [vmem:[%s302] sm:$0xf]
                  %305 = vst [vmem:[%s303] sm:$0xf] %v304
                  %v306 = vld [vmem:[%s302 + $0x20] sm:$0xf]
                  %307 = vst [vmem:[%s303 + $0x4] sm:$0xf] %v306
                $region112: #{residual_block_pallas.9} parent=99 // loop_footer
                  %s301 = sadd.s32 1, %s297
                $region113: #{residual_block_pallas.9} parent=99 // loop_footer_branch
                  %296 = sbr.rel target = $region109
                $region114: #{residual_block_pallas.9} parent=99 // loop_exit
                  _
              $region100: #{residual_block_pallas.9} parent=84 // pred_fallthru
                _
            $region85: #{residual_block_pallas.9} parent=80 // pred_fallthru
              _
            // Predicated region
            $region86: #{residual_block_pallas.9} parent=80 // pred_check
              _
            $region87: #{residual_block_pallas.9} parent=80 // pred_check_branch
              %271 = sbr.rel (0) target = $region89
            $region88: #{residual_block_pallas.9} parent=80 // pred_region
              loop: start=0, step=1, limit=1
              $region90: #{residual_block_pallas.9} parent=88 // loop_pre_header
                _
              $region91: #{residual_block_pallas.9} parent=88 // loop_header
                %s274 = sphi 0, %s278
                %p275 = scmp.ge.s32.totalorder %s274, 1
                %s279 = sphi %s265, %s265
                %s280 = sphi %s263, %s263
              $region92: #{residual_block_pallas.9} parent=88 // loop_header_branch
                %277 = sbr.rel (%p275) target = $region96
              $region93: #{residual_block_pallas.9} parent=88 // loop_body
                %v281 = vld [vmem:[%s279] sm:$0xf]
                %282 = vst [vmem:[%s280] sm:$0xf] %v281
                %v283 = vld [vmem:[%s279 + $0x20] sm:$0xf]
                %284 = vst [vmem:[%s280 + $0x4] sm:$0xf] %v283
              $region94: #{residual_block_pallas.9} parent=88 // loop_footer
                %s278 = sadd.s32 1, %s274
              $region95: #{residual_block_pallas.9} parent=88 // loop_footer_branch
                %273 = sbr.rel target = $region91
              $region96: #{residual_block_pallas.9} parent=88 // loop_exit
                _
            $region89: #{residual_block_pallas.9} parent=80 // pred_fallthru
              _
          $region81: #{residual_block_pallas.9} parent=76 // pred_fallthru
            _
          %308 = vnop
        $region77: #{residual_block_pallas.9} parent=31 // pred_fallthru
          _
      $region32: #{residual_block_pallas.9} parent=5 // pred_fallthru
        _
      %p309 = scmp.le.s32.totalorder 1, %s12
      %p310 = scmp.lt.s32.totalorder %s12, 9
      %p311 = pnand %p309, %p310
      %p312 = pneg %p311
      // Predicated region
      $region115: #{residual_block_pallas.9} parent=5 // pred_check
        _
      $region116: #{residual_block_pallas.9} parent=5 // pred_check_branch
        %314 = sbr.rel (%p311) target = $region118
      $region117: #{residual_block_pallas.9} parent=5 // pred_region
        %s315 = ssub.s32 %s12, 1
        %s316 = sand.u32 %s25, 1
        %s317 = sand.u32 %s25, 1
        %s318 = smul.addr %s317, 8
        %s319 = scalar_lea.vmem [#allocation2], %s318
        // Predicated region
        $region119: #{residual_block_pallas.9} parent=117 // pred_check
          %p320 = pneg %p38
        $region120: #{residual_block_pallas.9} parent=117 // pred_check_branch
          %322 = sbr.rel (%p320) target = $region122
        $region121: #{residual_block_pallas.9} parent=117 // pred_region
          _
        $region122: #{residual_block_pallas.9} parent=117 // pred_fallthru
          _
        %s323 = sand.u32 %s51, 1
        %s324 = sand.u32 %s51, 1
        %s325 = smul.addr %s324, 8
        %s326 = scalar_lea.vmem [#allocation3], %s325
        // Predicated region
        $region123: #{residual_block_pallas.9} parent=117 // pred_check
          %p327 = pneg %p64
        $region124: #{residual_block_pallas.9} parent=117 // pred_check_branch
          %329 = sbr.rel (%p327) target = $region126
        $region125: #{residual_block_pallas.9} parent=117 // pred_region
          _
        $region126: #{residual_block_pallas.9} parent=117 // pred_fallthru
          _
        %s330 = sand.u32 %s25, 1
        %s331 = sand.u32 %s25, 1
        %s332 = smul.addr %s331, 8
        %s333 = scalar_lea.vmem [#allocation2], %s332
        %p334 = pneg %p38
        %p335 = pneg %p35
        %s336 = sand.u32 %s51, 1
        %s337 = sand.u32 %s51, 1
        %s338 = smul.addr %s337, 8
        %s339 = scalar_lea.vmem [#allocation3], %s338
        %p340 = pneg %p64
        %p341 = pneg %p61
        %p342 = pneg %p85
        %p343 = pneg %p82
        %p344 = pneg %p106
        %p345 = pneg %p103
        %p346 = pneg %p127
        %p347 = pneg %p124
        %p348 = pneg %p148
        %p349 = pneg %p145
        %p350 = pneg %p174
        %p351 = pneg %p171
        %s352 = sand.u32 %s161, 1
        %s353 = sand.u32 %s161, 1
        %s354 = smul.addr %s353, 8
        %s355 = scalar_lea.vmem [#allocation4], %s354
        %v356 = vld [vmem:[%s319] sm:$0xf]
        %v357 = vld [vmem:[%s319 + $0x4] sm:$0xf]
        %v358 = vunpack.c.l.bf16 %v356
        %v359 = vunpack.c.l.bf16 %v357
        %v360 = vld [vmem:[%s2] sm:$0x1]
        %v362 = vlaneseq
        %v363 = vshrl.u32 %v362, 7
        %v364 = vsub.s32 0, %v363
        %v365 = vrot.slane %v360, %v364
        %v367 = vmul.f32 %v358, %v365
        %v368 = vmul.f32 %v359, %v365
        %v369 = vld [vmem:[%s3] sm:$0x1]
        %v371 = vlaneseq
        %v372 = vshrl.u32 %v371, 7
        %v373 = vsub.s32 0, %v372
        %v374 = vrot.slane %v369, %v373
        %v376 = vadd.f32 %v367, %v374
        %v377 = vadd.f32 %v368, %v374
        %v378 = vld [vmem:[%s326] sm:$0xf]
        %v379 = vld [vmem:[%s326 + $0x4] sm:$0xf]
        %v380 = vunpack.c.l.bf16 %v378
        %v381 = vunpack.c.l.bf16 %v379
        %v382 = vld [vmem:[%s4] sm:$0x1]
        %v384 = vlaneseq
        %v385 = vshrl.u32 %v384, 7
        %v386 = vsub.s32 0, %v385
        %v387 = vrot.slane %v382, %v386
        %v389 = vmul.f32 %v380, %v387
        %v390 = vmul.f32 %v381, %v387
        %v391 = vld [vmem:[%s5] sm:$0x1]
        %v393 = vlaneseq
        %v394 = vshrl.u32 %v393, 7
        %v395 = vsub.s32 0, %v394
        %v396 = vrot.slane %v391, %v395
        %v398 = vadd.f32 %v389, %v396
        %v399 = vadd.f32 %v390, %v396
        %v400 = vadd.f32 %v376, %v398
        %v401 = vadd.f32 %v377, %v399
        %v402 = vmax.f32 %v400, 0.0
        %v403 = vmax.f32 %v401, 0.0
        %v404 = vpack.c.bf16 %v402, %v402
        %v405 = vpack.c.bf16 %v403, %v403
        %406 = vst [vmem:[%s355] sm:$0xf] %v404
        %407 = vst [vmem:[%s355 + $0x4] sm:$0xf] %v405
        %s408 = sand.u32 %s161, 1
        %s409 = sand.u32 %s161, 1
        %s410 = smul.addr %s409, 8
        %s411 = scalar_lea.vmem [#allocation4], %s410
        // Predicated region
        $region127: #{residual_block_pallas.9} parent=117 // pred_check
          %p412 = pneg %p171
        $region128: #{residual_block_pallas.9} parent=117 // pred_check_branch
          %414 = sbr.rel (%p412) target = $region130
        $region129: #{residual_block_pallas.9} parent=117 // pred_region
          %s415 = smul.addr %s17, 4
          %s416 = scalar_lea.vmem %s6, %s415
          // Predicated region
          $region131: #{residual_block_pallas.9} parent=129 // pred_check
            _
          $region132: #{residual_block_pallas.9} parent=129 // pred_check_branch
            %418 = sbr.rel (0) target = $region134
          $region133: #{residual_block_pallas.9} parent=129 // pred_region
            // Predicated region
            $region135: #{residual_block_pallas.9} parent=133 // pred_check
              _
            $region136: #{residual_block_pallas.9} parent=133 // pred_check_branch
              %420 = sbr.rel target = $region138
            $region137: #{residual_block_pallas.9} parent=133 // pred_region
              // Predicated region
              $region150: #{residual_block_pallas.9} parent=137 // pred_check
                _
              $region151: #{residual_block_pallas.9} parent=137 // pred_check_branch
                %437 = sbr.rel (0) target = $region153
              $region152: #{residual_block_pallas.9} parent=137 // pred_region
                loop: start=0, step=1, limit=1
                $region154: #{residual_block_pallas.9} parent=152 // loop_pre_header
                  _
                $region155: #{residual_block_pallas.9} parent=152 // loop_header
                  %s439 = sphi 0, %s443
                  %p440 = scmp.ge.s32.totalorder %s439, 1
                  %s444 = sphi %s411, %s411
                  %s445 = sphi %s416, %s416
                $region156: #{residual_block_pallas.9} parent=152 // loop_header_branch
                  %442 = sbr.rel (%p440) target = $region160
                $region157: #{residual_block_pallas.9} parent=152 // loop_body
                  _
                $region158: #{residual_block_pallas.9} parent=152 // loop_footer
                  %s443 = sadd.s32 1, %s439
                $region159: #{residual_block_pallas.9} parent=152 // loop_footer_branch
                  %438 = sbr.rel target = $region155
                $region160: #{residual_block_pallas.9} parent=152 // loop_exit
                  _
                loop: start=0, step=1, limit=1
                $region161: #{residual_block_pallas.9} parent=152 // loop_pre_header
                  _
                $region162: #{residual_block_pallas.9} parent=152 // loop_header
                  %s448 = sphi 0, %s452
                  %p449 = scmp.ge.s32.totalorder %s448, 1
                  %s453 = sphi %s411, %s411
                  %s454 = sphi %s416, %s416
                $region163: #{residual_block_pallas.9} parent=152 // loop_header_branch
                  %451 = sbr.rel (%p449) target = $region167
                $region164: #{residual_block_pallas.9} parent=152 // loop_body
                  %v455 = vld [vmem:[%s453] sm:$0xf]
                  %456 = vst [vmem:[%s454] sm:$0xf] %v455
                  %v457 = vld [vmem:[%s453 + $0x4] sm:$0xf]
                  %458 = vst [vmem:[%s454 + $0x20] sm:$0xf] %v457
                $region165: #{residual_block_pallas.9} parent=152 // loop_footer
                  %s452 = sadd.s32 1, %s448
                $region166: #{residual_block_pallas.9} parent=152 // loop_footer_branch
                  %447 = sbr.rel target = $region162
                $region167: #{residual_block_pallas.9} parent=152 // loop_exit
                  _
              $region153: #{residual_block_pallas.9} parent=137 // pred_fallthru
                _
            $region138: #{residual_block_pallas.9} parent=133 // pred_fallthru
              _
            // Predicated region
            $region139: #{residual_block_pallas.9} parent=133 // pred_check
              _
            $region140: #{residual_block_pallas.9} parent=133 // pred_check_branch
              %422 = sbr.rel (0) target = $region142
            $region141: #{residual_block_pallas.9} parent=133 // pred_region
              loop: start=0, step=1, limit=1
              $region143: #{residual_block_pallas.9} parent=141 // loop_pre_header
                _
              $region144: #{residual_block_pallas.9} parent=141 // loop_header
                %s425 = sphi 0, %s429
                %p426 = scmp.ge.s32.totalorder %s425, 1
                %s430 = sphi %s411, %s411
                %s431 = sphi %s416, %s416
              $region145: #{residual_block_pallas.9} parent=141 // loop_header_branch
                %428 = sbr.rel (%p426) target = $region149
              $region146: #{residual_block_pallas.9} parent=141 // loop_body
                %v432 = vld [vmem:[%s430] sm:$0xf]
                %433 = vst [vmem:[%s431] sm:$0xf] %v432
                %v434 = vld [vmem:[%s430 + $0x4] sm:$0xf]
                %435 = vst [vmem:[%s431 + $0x20] sm:$0xf] %v434
              $region147: #{residual_block_pallas.9} parent=141 // loop_footer
                %s429 = sadd.s32 1, %s425
              $region148: #{residual_block_pallas.9} parent=141 // loop_footer_branch
                %424 = sbr.rel target = $region144
              $region149: #{residual_block_pallas.9} parent=141 // loop_exit
                _
            $region142: #{residual_block_pallas.9} parent=133 // pred_fallthru
              _
          $region134: #{residual_block_pallas.9} parent=129 // pred_fallthru
            _
          %459 = vnop
        $region130: #{residual_block_pallas.9} parent=117 // pred_fallthru
          _
      $region118: #{residual_block_pallas.9} parent=5 // pred_fallthru
        _
      %p460 = scmp.le.s32.totalorder 2, %s12
      // Predicated region
      $region168: #{residual_block_pallas.9} parent=5 // pred_check
        %p461 = pneg %p460
      $region169: #{residual_block_pallas.9} parent=5 // pred_check_branch
        %463 = sbr.rel (%p461) target = $region171
      $region170: #{residual_block_pallas.9} parent=5 // pred_region
        %s464 = ssub.s32 %s12, 2
        // Predicated region
        $region172: #{residual_block_pallas.9} parent=170 // pred_check
          %p465 = pneg %p177
        $region173: #{residual_block_pallas.9} parent=170 // pred_check_branch
          %467 = sbr.rel (%p465) target = $region175
        $region174: #{residual_block_pallas.9} parent=170 // pred_region
          %s468 = sand.u32 %s162, 1
          %s469 = sand.u32 %s162, 1
          %s470 = smul.addr %s469, 8
          %s471 = scalar_lea.vmem [#allocation4], %s470
        $region175: #{residual_block_pallas.9} parent=170 // pred_fallthru
          _
      $region171: #{residual_block_pallas.9} parent=5 // pred_fallthru
        _
    $region6: #{residual_block_pallas.9} parent=1 // loop_footer
      %s16 = sadd.s32 1, %s12
    $region7: #{residual_block_pallas.9} parent=1 // loop_footer_branch
      %11 = sbr.rel target = $region3
    $region8: #{residual_block_pallas.9} parent=1 // loop_exit
      _

// kernel: residual_block_pallas.7
$region0: #{residual_block_pallas.7}
  #allocation0 [shape = 'u32[]', space=smem, size = 0x4, offset = 0x4, fixed_abs, tag = 'smem constant byte address 0x4 - core index']
  #allocation1 [shape = 'u32[144,128]{1,0:T(1,128)}', space=vmem, size = 0x12000, scoped, tag = 'internal scratch']
  %s0 = inlined_call_operand.vmem [shape: bf16[2,10,10,128], index: 0, kind: input, shape index: {}, may-alias: {0,1,2}]
  %s1 = inlined_call_operand.vmem [shape: bf16[2,10,10,128], index: 1, kind: input, shape index: {}, may-alias: {0,1,2}]
  %s2 = inlined_call_operand.vmem [shape: bf16[2,10,10,128], index: 2, kind: input, shape index: {}, may-alias: {0,1,2}]
  %s3 = inlined_call_operand.vmem [shape: bf16[3,3,128,128], index: 3, kind: input, shape index: {}]
  %s4 = inlined_call_operand.vmem [shape: bf16[2,8,8,128], index: 4, kind: output, shape index: {0}]
  %s5 = inlined_call_operand.vmem [shape: f32[8,1,128], index: 5, kind: output, shape index: {1}]
  %s6 = inlined_call_operand.vmem [shape: f32[8,1,128], index: 6, kind: output, shape index: {2}]
  %7 = xla_tuple %s4, %s5, %s6
  %s8 = sld [smem:[#allocation0]]
  $region225: #{residual_block_pallas.7} parent=0
    _
  %s10 = ssub.s32 1, %s8
  %s11 = scalar_select 0, %s10, %s8
  $region1: #{residual_block_pallas.7} parent=0
    #allocation2 [shape = 'u8[16384]{0}', space=vmem, size = 0x4000, scoped, tag = 'input window, operand 0']
    #allocation3 [shape = 'u8[16384]{0}', space=vmem, size = 0x4000, scoped, tag = 'input window, operand 1']
    #allocation4 [shape = 'u8[16384]{0}', space=vmem, size = 0x4000, scoped, tag = 'input window, operand 2']
    #allocation5 [shape = 'u8[8192]{0}', space=vmem, size = 0x2000, scoped, tag = 'output window, operand 0']
    loop: start=0, step=1, limit=10
    $region2: #{residual_block_pallas.7} parent=1 // loop_pre_header
      _
    $region3: #{residual_block_pallas.7} parent=1 // loop_header
      %s13 = sphi 0, %s17
      %p14 = scmp.ge.s32.totalorder %s13, 10
      %s23 = sphi 0, %s25
      %s26 = sphi 0, %s23
      %s27 = sphi 0, %s26
      %s43 = sphi 0, %s27
      %s51 = sphi 0, %s53
      %s54 = sphi 0, %s51
      %s55 = sphi 0, %s54
      %s71 = sphi 0, %s55
      %s79 = sphi 0, %s81
      %s82 = sphi 0, %s79
      %s83 = sphi 0, %s82
      %s99 = sphi 0, %s83
      %s103 = sphi 0, %s103
      %s105 = sphi 0, %s103
      %s106 = sphi 0, %s105
      %s120 = sphi 0, %s106
      %s126 = sphi 0, %s128
      %s129 = sphi 0, %s126
      %s130 = sphi 0, %s129
      %s146 = sphi 0, %s130
      %s152 = sphi 0, %s154
      %s155 = sphi 0, %s152
      %s156 = sphi 0, %s155
      %s172 = sphi 0, %s156
      %s178 = sphi 0, %s180
      %s181 = sphi 0, %s178
      %s182 = sphi 0, %s181
      %s198 = sphi 0, %s182
    $region4: #{residual_block_pallas.7} parent=1 // loop_header_branch
      %16 = sbr.rel (%p14) target = $region8
    $region5: #{residual_block_pallas.7} parent=1 // loop_body
      %s18 = ssub.s32 %s13, 1
      %s19 = ssub.s32 %s13, 2
      %s20 = sadd.s32 %s13, 1
      %s21 = ssub.s32 %s13, %s20
      %p22 = scmp.eq.s32.totalorder %s21, 0
      %s24 = sadd.s32 %s23, 1
      %s25 = scalar_select %p22, %s23, %s24
      %p28 = pneg %p22
      %p29 = scmp.eq.s32.totalorder %s13, 7
      %p30 = por %p28, %p29
      %p31 = scmp.ne.s32.totalorder %s23, %s26
      %p32 = scmp.eq.s32.totalorder %s13, 0
      %p33 = por %p31, %p32
      %p34 = scmp.ne.s32.totalorder %s23, %s26
      %p35 = scmp.eq.s32.totalorder %s18, 7
      %p36 = por %p34, %p35
      %p37 = scmp.ne.s32.totalorder %s26, %s27
      %p38 = scmp.eq.s32.totalorder %s18, 0
      %p39 = por %p37, %p38
      %p40 = scmp.ne.s32.totalorder %s26, %s27
      %p41 = scmp.eq.s32.totalorder %s19, 7
      %p42 = por %p40, %p41
      %p44 = scmp.ne.s32.totalorder %s27, %s43
      %p45 = scmp.eq.s32.totalorder %s19, 0
      %p46 = por %p44, %p45
      %s47 = sadd.s32 %s13, 1
      %s48 = sadd.s32 %s20, 1
      %s49 = ssub.s32 %s47, %s48
      %p50 = scmp.eq.s32.totalorder %s49, 0
      %s52 = sadd.s32 %s51, 1
      %s53 = scalar_select %p50, %s51, %s52
      %p56 = pneg %p50
      %p57 = scmp.eq.s32.totalorder %s13, 7
      %p58 = por %p56, %p57
      %p59 = scmp.ne.s32.totalorder %s51, %s54
      %p60 = scmp.eq.s32.totalorder %s13, 0
      %p61 = por %p59, %p60
      %p62 = scmp.ne.s32.totalorder %s51, %s54
      %p63 = scmp.eq.s32.totalorder %s18, 7
      %p64 = por %p62, %p63
      %p65 = scmp.ne.s32.totalorder %s54, %s55
      %p66 = scmp.eq.s32.totalorder %s18, 0
      %p67 = por %p65, %p66
      %p68 = scmp.ne.s32.totalorder %s54, %s55
      %p69 = scmp.eq.s32.totalorder %s19, 7
      %p70 = por %p68, %p69
      %p72 = scmp.ne.s32.totalorder %s55, %s71
      %p73 = scmp.eq.s32.totalorder %s19, 0
      %p74 = por %p72, %p73
      %s75 = sadd.s32 %s13, 2
      %s76 = sadd.s32 %s20, 2
      %s77 = ssub.s32 %s75, %s76
      %p78 = scmp.eq.s32.totalorder %s77, 0
      %s80 = sadd.s32 %s79, 1
      %s81 = scalar_select %p78, %s79, %s80
      %p84 = pneg %p78
      %p85 = scmp.eq.s32.totalorder %s13, 7
      %p86 = por %p84, %p85
      %p87 = scmp.ne.s32.totalorder %s79, %s82
      %p88 = scmp.eq.s32.totalorder %s13, 0
      %p89 = por %p87, %p88
      %p90 = scmp.ne.s32.totalorder %s79, %s82
      %p91 = scmp.eq.s32.totalorder %s18, 7
      %p92 = por %p90, %p91
      %p93 = scmp.ne.s32.totalorder %s82, %s83
      %p94 = scmp.eq.s32.totalorder %s18, 0
      %p95 = por %p93, %p94
      %p96 = scmp.ne.s32.totalorder %s82, %s83
      %p97 = scmp.eq.s32.totalorder %s19, 7
      %p98 = por %p96, %p97
      %p100 = scmp.ne.s32.totalorder %s83, %s99
      %p101 = scmp.eq.s32.totalorder %s19, 0
      %p102 = por %p100, %p101
      %s104 = sadd.s32 %s103, 1
      %p107 = scmp.eq.s32.totalorder %s13, 7
      %p108 = scmp.ne.s32.totalorder %s103, %s105
      %p109 = scmp.eq.s32.totalorder %s13, 0
      %p110 = por %p108, %p109
      %p111 = scmp.ne.s32.totalorder %s103, %s105
      %p112 = scmp.eq.s32.totalorder %s18, 7
      %p113 = por %p111, %p112
      %p114 = scmp.ne.s32.totalorder %s105, %s106
      %p115 = scmp.eq.s32.totalorder %s18, 0
      %p116 = por %p114, %p115
      %p117 = scmp.ne.s32.totalorder %s105, %s106
      %p118 = scmp.eq.s32.totalorder %s19, 7
      %p119 = por %p117, %p118
      %p121 = scmp.ne.s32.totalorder %s106, %s120
      %p122 = scmp.eq.s32.totalorder %s19, 0
      %p123 = por %p121, %p122
      %s124 = ssub.s32 %s13, %s20
      %p125 = scmp.eq.s32.totalorder %s124, 0
      %s127 = sadd.s32 %s126, 1
      %s128 = scalar_select %p125, %s126, %s127
      %p131 = pneg %p125
      %p132 = scmp.eq.s32.totalorder %s13, 7
      %p133 = por %p131, %p132
      %p134 = scmp.ne.s32.totalorder %s126, %s129
      %p135 = scmp.eq.s32.totalorder %s13, 0
      %p136 = por %p134, %p135
      %p137 = scmp.ne.s32.totalorder %s126, %s129
      %p138 = scmp.eq.s32.totalorder %s18, 7
      %p139 = por %p137, %p138
      %p140 = scmp.ne.s32.totalorder %s129, %s130
      %p141 = scmp.eq.s32.totalorder %s18, 0
      %p142 = por %p140, %p141
      %p143 = scmp.ne.s32.totalorder %s129, %s130
      %p144 = scmp.eq.s32.totalorder %s19, 7
      %p145 = por %p143, %p144
      %p147 = scmp.ne.s32.totalorder %s130, %s146
      %p148 = scmp.eq.s32.totalorder %s19, 0
      %p149 = por %p147, %p148
      %s150 = ssub.s32 %s13, %s20
      %p151 = scmp.eq.s32.totalorder %s150, 0
      %s153 = sadd.s32 %s152, 1
      %s154 = scalar_select %p151, %s152, %s153
      %p157 = pneg %p151
      %p158 = scmp.eq.s32.totalorder %s13, 7
      %p159 = por %p157, %p158
      %p160 = scmp.ne.s32.totalorder %s152, %s155
      %p161 = scmp.eq.s32.totalorder %s13, 0
      %p162 = por %p160, %p161
      %p163 = scmp.ne.s32.totalorder %s152, %s155
      %p164 = scmp.eq.s32.totalorder %s18, 7
      %p165 = por %p163, %p164
      %p166 = scmp.ne.s32.totalorder %s155, %s156
      %p167 = scmp.eq.s32.totalorder %s18, 0
      %p168 = por %p166, %p167
      %p169 = scmp.ne.s32.totalorder %s155, %s156
      %p170 = scmp.eq.s32.totalorder %s19, 7
      %p171 = por %p169, %p170
      %p173 = scmp.ne.s32.totalorder %s156, %s172
      %p174 = scmp.eq.s32.totalorder %s19, 0
      %p175 = por %p173, %p174
      %s176 = ssub.s32 %s13, %s20
      %p177 = scmp.eq.s32.totalorder %s176, 0
      %s179 = sadd.s32 %s178, 1
      %s180 = scalar_select %p177, %s178, %s179
      %p183 = pneg %p177
      %p184 = scmp.eq.s32.totalorder %s13, 7
      %p185 = por %p183, %p184
      %p186 = scmp.ne.s32.totalorder %s178, %s181
      %p187 = scmp.eq.s32.totalorder %s13, 0
      %p188 = por %p186, %p187
      %p189 = scmp.ne.s32.totalorder %s178, %s181
      %p190 = scmp.eq.s32.totalorder %s18, 7
      %p191 = por %p189, %p190
      %p192 = scmp.ne.s32.totalorder %s181, %s182
      %p193 = scmp.eq.s32.totalorder %s18, 0
      %p194 = por %p192, %p193
      %p195 = scmp.ne.s32.totalorder %s181, %s182
      %p196 = scmp.eq.s32.totalorder %s19, 7
      %p197 = por %p195, %p196
      %p199 = scmp.ne.s32.totalorder %s182, %s198
      %p200 = scmp.eq.s32.totalorder %s19, 0
      %p201 = por %p199, %p200
      %p202 = scmp.le.s32.totalorder 1, %s13
      %p203 = scmp.lt.s32.totalorder %s13, 9
      %p204 = pnand %p202, %p203
      %p205 = pneg %p204
      // Predicated region
      $region9: #{residual_block_pallas.7} parent=5 // pred_check
        _
      $region10: #{residual_block_pallas.7} parent=5 // pred_check_branch
        %207 = sbr.rel (%p204) target = $region12
      $region11: #{residual_block_pallas.7} parent=5 // pred_region
        %s208 = ssub.s32 %s13, 1
        // Predicated region
        $region13: #{residual_block_pallas.7} parent=11 // pred_check
          %p209 = pneg %p116
        $region14: #{residual_block_pallas.7} parent=11 // pred_check_branch
          %211 = sbr.rel (%p209) target = $region16
        $region15: #{residual_block_pallas.7} parent=11 // pred_region
          _
        $region16: #{residual_block_pallas.7} parent=11 // pred_fallthru
          _
      $region12: #{residual_block_pallas.7} parent=5 // pred_fallthru
        _
      %p212 = scmp.lt.s32.totalorder %s13, 8
      // Predicated region
      $region17: #{residual_block_pallas.7} parent=5 // pred_check
        %p213 = pneg %p212
      $region18: #{residual_block_pallas.7} parent=5 // pred_check_branch
        %215 = sbr.rel (%p213) target = $region20
      $region19: #{residual_block_pallas.7} parent=5 // pred_region
        // Predicated region
        $region21: #{residual_block_pallas.7} parent=19 // pred_check
          %p216 = pneg %p33
        $region22: #{residual_block_pallas.7} parent=19 // pred_check_branch
          %218 = sbr.rel (%p216) target = $region24
        $region23: #{residual_block_pallas.7} parent=19 // pred_region
          %s219 = sand.u32 %s23, 1
          %s220 = sand.u32 %s23, 1
          %s221 = smul.addr %s220, 16
          %s222 = scalar_lea.vmem [#allocation2], %s221
          %s223 = smul.addr %s13, 2
          %s224 = smul.addr %s223, 4
          %s225 = scalar_lea.vmem %s0, %s224
          // Predicated region
          $region25: #{residual_block_pallas.7} parent=23 // pred_check
            _
          $region26: #{residual_block_pallas.7} parent=23 // pred_check_branch
            %227 = sbr.rel (0) target = $region28
          $region27: #{residual_block_pallas.7} parent=23 // pred_region
            // Predicated region
            $region29: #{residual_block_pallas.7} parent=27 // pred_check
              _
            $region30: #{residual_block_pallas.7} parent=27 // pred_check_branch
              %229 = sbr.rel target = $region32
            $region31: #{residual_block_pallas.7} parent=27 // pred_region
              // Predicated region
              $region44: #{residual_block_pallas.7} parent=31 // pred_check
                _
              $region45: #{residual_block_pallas.7} parent=31 // pred_check_branch
                %250 = sbr.rel (0) target = $region47
              $region46: #{residual_block_pallas.7} parent=31 // pred_region
                loop: start=0, step=1, limit=1
                $region48: #{residual_block_pallas.7} parent=46 // loop_pre_header
                  _
                $region49: #{residual_block_pallas.7} parent=46 // loop_header
                  %s252 = sphi 0, %s256
                  %p253 = scmp.ge.s32.totalorder %s252, 1
                  %s257 = sphi %s225, %s225
                  %s258 = sphi %s222, %s222
                $region50: #{residual_block_pallas.7} parent=46 // loop_header_branch
                  %255 = sbr.rel (%p253) target = $region54
                $region51: #{residual_block_pallas.7} parent=46 // loop_body
                  _
                $region52: #{residual_block_pallas.7} parent=46 // loop_footer
                  %s256 = sadd.s32 1, %s252
                $region53: #{residual_block_pallas.7} parent=46 // loop_footer_branch
                  %251 = sbr.rel target = $region49
                $region54: #{residual_block_pallas.7} parent=46 // loop_exit
                  _
                loop: start=0, step=1, limit=1
                $region55: #{residual_block_pallas.7} parent=46 // loop_pre_header
                  _
                $region56: #{residual_block_pallas.7} parent=46 // loop_header
                  %s261 = sphi 0, %s265
                  %p262 = scmp.ge.s32.totalorder %s261, 1
                  %s266 = sphi %s225, %s225
                  %s267 = sphi %s222, %s222
                $region57: #{residual_block_pallas.7} parent=46 // loop_header_branch
                  %264 = sbr.rel (%p262) target = $region61
                $region58: #{residual_block_pallas.7} parent=46 // loop_body
                  %v268 = vld [vmem:[%s266] sm:$0xf]
                  %269 = vst [vmem:[%s267] sm:$0xf] %v268
                  %v270 = vld [vmem:[%s266 + $0x4] sm:$0xf]
                  %271 = vst [vmem:[%s267 + $0x4] sm:$0xf] %v270
                  %v272 = vld [vmem:[%s266 + $0x50] sm:$0xf]
                  %273 = vst [vmem:[%s267 + $0x8] sm:$0xf] %v272
                  %v274 = vld [vmem:[%s266 + $0x54] sm:$0xf]
                  %275 = vst [vmem:[%s267 + $0xc] sm:$0xf] %v274
                $region59: #{residual_block_pallas.7} parent=46 // loop_footer
                  %s265 = sadd.s32 1, %s261
                $region60: #{residual_block_pallas.7} parent=46 // loop_footer_branch
                  %260 = sbr.rel target = $region56
                $region61: #{residual_block_pallas.7} parent=46 // loop_exit
                  _
              $region47: #{residual_block_pallas.7} parent=31 // pred_fallthru
                _
            $region32: #{residual_block_pallas.7} parent=27 // pred_fallthru
              _
            // Predicated region
            $region33: #{residual_block_pallas.7} parent=27 // pred_check
              _
            $region34: #{residual_block_pallas.7} parent=27 // pred_check_branch
              %231 = sbr.rel (0) target = $region36
            $region35: #{residual_block_pallas.7} parent=27 // pred_region
              loop: start=0, step=1, limit=1
              $region37: #{residual_block_pallas.7} parent=35 // loop_pre_header
                _
              $region38: #{residual_block_pallas.7} parent=35 // loop_header
                %s234 = sphi 0, %s238
                %p235 = scmp.ge.s32.totalorder %s234, 1
                %s239 = sphi %s225, %s225
                %s240 = sphi %s222, %s222
              $region39: #{residual_block_pallas.7} parent=35 // loop_header_branch
                %237 = sbr.rel (%p235) target = $region43
              $region40: #{residual_block_pallas.7} parent=35 // loop_body
                %v241 = vld [vmem:[%s239] sm:$0xf]
                %242 = vst [vmem:[%s240] sm:$0xf] %v241
                %v243 = vld [vmem:[%s239 + $0x4] sm:$0xf]
                %244 = vst [vmem:[%s240 + $0x4] sm:$0xf] %v243
                %v245 = vld [vmem:[%s239 + $0x50] sm:$0xf]
                %246 = vst [vmem:[%s240 + $0x8] sm:$0xf] %v245
                %v247 = vld [vmem:[%s239 + $0x54] sm:$0xf]
                %248 = vst [vmem:[%s240 + $0xc] sm:$0xf] %v247
              $region41: #{residual_block_pallas.7} parent=35 // loop_footer
                %s238 = sadd.s32 1, %s234
              $region42: #{residual_block_pallas.7} parent=35 // loop_footer_branch
                %233 = sbr.rel target = $region38
              $region43: #{residual_block_pallas.7} parent=35 // loop_exit
                _
            $region36: #{residual_block_pallas.7} parent=27 // pred_fallthru
              _
          $region28: #{residual_block_pallas.7} parent=23 // pred_fallthru
            _
          %276 = vnop
        $region24: #{residual_block_pallas.7} parent=19 // pred_fallthru
          _
        // Predicated region
        $region62: #{residual_block_pallas.7} parent=19 // pred_check
          %p277 = pneg %p61
        $region63: #{residual_block_pallas.7} parent=19 // pred_check_branch
          %279 = sbr.rel (%p277) target = $region65
        $region64: #{residual_block_pallas.7} parent=19 // pred_region
          %s280 = sand.u32 %s51, 1
          %s281 = sand.u32 %s51, 1
          %s282 = smul.addr %s281, 16
          %s283 = scalar_lea.vmem [#allocation3], %s282
          %s284 = sadd.s32 %s13, 1
          %s285 = smul.addr %s284, 2
          %s286 = smul.addr %s285, 4
          %s287 = scalar_lea.vmem %s1, %s286
          // Predicated region
          $region66: #{residual_block_pallas.7} parent=64 // pred_check
            _
          $region67: #{residual_block_pallas.7} parent=64 // pred_check_branch
            %289 = sbr.rel (0) target = $region69
          $region68: #{residual_block_pallas.7} parent=64 // pred_region
            // Predicated region
            $region70: #{residual_block_pallas.7} parent=68 // pred_check
              _
            $region71: #{residual_block_pallas.7} parent=68 // pred_check_branch
              %291 = sbr.rel target = $region73
            $region72: #{residual_block_pallas.7} parent=68 // pred_region
              // Predicated region
              $region85: #{residual_block_pallas.7} parent=72 // pred_check
                _
              $region86: #{residual_block_pallas.7} parent=72 // pred_check_branch
                %312 = sbr.rel (0) target = $region88
              $region87: #{residual_block_pallas.7} parent=72 // pred_region
                loop: start=0, step=1, limit=1
                $region89: #{residual_block_pallas.7} parent=87 // loop_pre_header
                  _
                $region90: #{residual_block_pallas.7} parent=87 // loop_header
                  %s314 = sphi 0, %s318
                  %p315 = scmp.ge.s32.totalorder %s314, 1
                  %s319 = sphi %s287, %s287
                  %s320 = sphi %s283, %s283
                $region91: #{residual_block_pallas.7} parent=87 // loop_header_branch
                  %317 = sbr.rel (%p315) target = $region95
                $region92: #{residual_block_pallas.7} parent=87 // loop_body
                  _
                $region93: #{residual_block_pallas.7} parent=87 // loop_footer
                  %s318 = sadd.s32 1, %s314
                $region94: #{residual_block_pallas.7} parent=87 // loop_footer_branch
                  %313 = sbr.rel target = $region90
                $region95: #{residual_block_pallas.7} parent=87 // loop_exit
                  _
                loop: start=0, step=1, limit=1
                $region96: #{residual_block_pallas.7} parent=87 // loop_pre_header
                  _
                $region97: #{residual_block_pallas.7} parent=87 // loop_header
                  %s323 = sphi 0, %s327
                  %p324 = scmp.ge.s32.totalorder %s323, 1
                  %s328 = sphi %s287, %s287
                  %s329 = sphi %s283, %s283
                $region98: #{residual_block_pallas.7} parent=87 // loop_header_branch
                  %326 = sbr.rel (%p324) target = $region102
                $region99: #{residual_block_pallas.7} parent=87 // loop_body
                  %v330 = vld [vmem:[%s328] sm:$0xf]
                  %331 = vst [vmem:[%s329] sm:$0xf] %v330
                  %v332 = vld [vmem:[%s328 + $0x4] sm:$0xf]
                  %333 = vst [vmem:[%s329 + $0x4] sm:$0xf] %v332
                  %v334 = vld [vmem:[%s328 + $0x50] sm:$0xf]
                  %335 = vst [vmem:[%s329 + $0x8] sm:$0xf] %v334
                  %v336 = vld [vmem:[%s328 + $0x54] sm:$0xf]
                  %337 = vst [vmem:[%s329 + $0xc] sm:$0xf] %v336
                $region100: #{residual_block_pallas.7} parent=87 // loop_footer
                  %s327 = sadd.s32 1, %s323
                $region101: #{residual_block_pallas.7} parent=87 // loop_footer_branch
                  %322 = sbr.rel target = $region97
                $region102: #{residual_block_pallas.7} parent=87 // loop_exit
                  _
              $region88: #{residual_block_pallas.7} parent=72 // pred_fallthru
                _
            $region73: #{residual_block_pallas.7} parent=68 // pred_fallthru
              _
            // Predicated region
            $region74: #{residual_block_pallas.7} parent=68 // pred_check
              _
            $region75: #{residual_block_pallas.7} parent=68 // pred_check_branch
              %293 = sbr.rel (0) target = $region77
            $region76: #{residual_block_pallas.7} parent=68 // pred_region
              loop: start=0, step=1, limit=1
              $region78: #{residual_block_pallas.7} parent=76 // loop_pre_header
                _
              $region79: #{residual_block_pallas.7} parent=76 // loop_header
                %s296 = sphi 0, %s300
                %p297 = scmp.ge.s32.totalorder %s296, 1
                %s301 = sphi %s287, %s287
                %s302 = sphi %s283, %s283
              $region80: #{residual_block_pallas.7} parent=76 // loop_header_branch
                %299 = sbr.rel (%p297) target = $region84
              $region81: #{residual_block_pallas.7} parent=76 // loop_body
                %v303 = vld [vmem:[%s301] sm:$0xf]
                %304 = vst [vmem:[%s302] sm:$0xf] %v303
                %v305 = vld [vmem:[%s301 + $0x4] sm:$0xf]
                %306 = vst [vmem:[%s302 + $0x4] sm:$0xf] %v305
                %v307 = vld [vmem:[%s301 + $0x50] sm:$0xf]
                %308 = vst [vmem:[%s302 + $0x8] sm:$0xf] %v307
                %v309 = vld [vmem:[%s301 + $0x54] sm:$0xf]
                %310 = vst [vmem:[%s302 + $0xc] sm:$0xf] %v309
              $region82: #{residual_block_pallas.7} parent=76 // loop_footer
                %s300 = sadd.s32 1, %s296
              $region83: #{residual_block_pallas.7} parent=76 // loop_footer_branch
                %295 = sbr.rel target = $region79
              $region84: #{residual_block_pallas.7} parent=76 // loop_exit
                _
            $region77: #{residual_block_pallas.7} parent=68 // pred_fallthru
              _
          $region69: #{residual_block_pallas.7} parent=64 // pred_fallthru
            _
          %338 = vnop
        $region65: #{residual_block_pallas.7} parent=19 // pred_fallthru
          _
        // Predicated region
        $region103: #{residual_block_pallas.7} parent=19 // pred_check
          %p339 = pneg %p89
        $region104: #{residual_block_pallas.7} parent=19 // pred_check_branch
          %341 = sbr.rel (%p339) target = $region106
        $region105: #{residual_block_pallas.7} parent=19 // pred_region
          %s342 = sand.u32 %s79, 1
          %s343 = sand.u32 %s79, 1
          %s344 = smul.addr %s343, 16
          %s345 = scalar_lea.vmem [#allocation4], %s344
          %s346 = sadd.s32 %s13, 2
          %s347 = smul.addr %s346, 2
          %s348 = smul.addr %s347, 4
          %s349 = scalar_lea.vmem %s2, %s348
          // Predicated region
          $region107: #{residual_block_pallas.7} parent=105 // pred_check
            _
          $region108: #{residual_block_pallas.7} parent=105 // pred_check_branch
            %351 = sbr.rel (0) target = $region110
          $region109: #{residual_block_pallas.7} parent=105 // pred_region
            // Predicated region
            $region111: #{residual_block_pallas.7} parent=109 // pred_check
              _
            $region112: #{residual_block_pallas.7} parent=109 // pred_check_branch
              %353 = sbr.rel target = $region114
            $region113: #{residual_block_pallas.7} parent=109 // pred_region
              // Predicated region
              $region126: #{residual_block_pallas.7} parent=113 // pred_check
                _
              $region127: #{residual_block_pallas.7} parent=113 // pred_check_branch
                %374 = sbr.rel (0) target = $region129
              $region128: #{residual_block_pallas.7} parent=113 // pred_region
                loop: start=0, step=1, limit=1
                $region130: #{residual_block_pallas.7} parent=128 // loop_pre_header
                  _
                $region131: #{residual_block_pallas.7} parent=128 // loop_header
                  %s376 = sphi 0, %s380
                  %p377 = scmp.ge.s32.totalorder %s376, 1
                  %s381 = sphi %s349, %s349
                  %s382 = sphi %s345, %s345
                $region132: #{residual_block_pallas.7} parent=128 // loop_header_branch
                  %379 = sbr.rel (%p377) target = $region136
                $region133: #{residual_block_pallas.7} parent=128 // loop_body
                  _
                $region134: #{residual_block_pallas.7} parent=128 // loop_footer
                  %s380 = sadd.s32 1, %s376
                $region135: #{residual_block_pallas.7} parent=128 // loop_footer_branch
                  %375 = sbr.rel target = $region131
                $region136: #{residual_block_pallas.7} parent=128 // loop_exit
                  _
                loop: start=0, step=1, limit=1
                $region137: #{residual_block_pallas.7} parent=128 // loop_pre_header
                  _
                $region138: #{residual_block_pallas.7} parent=128 // loop_header
                  %s385 = sphi 0, %s389
                  %p386 = scmp.ge.s32.totalorder %s385, 1
                  %s390 = sphi %s349, %s349
                  %s391 = sphi %s345, %s345
                $region139: #{residual_block_pallas.7} parent=128 // loop_header_branch
                  %388 = sbr.rel (%p386) target = $region143
                $region140: #{residual_block_pallas.7} parent=128 // loop_body
                  %v392 = vld [vmem:[%s390] sm:$0xf]
                  %393 = vst [vmem:[%s391] sm:$0xf] %v392
                  %v394 = vld [vmem:[%s390 + $0x4] sm:$0xf]
                  %395 = vst [vmem:[%s391 + $0x4] sm:$0xf] %v394
                  %v396 = vld [vmem:[%s390 + $0x50] sm:$0xf]
                  %397 = vst [vmem:[%s391 + $0x8] sm:$0xf] %v396
                  %v398 = vld [vmem:[%s390 + $0x54] sm:$0xf]
                  %399 = vst [vmem:[%s391 + $0xc] sm:$0xf] %v398
                $region141: #{residual_block_pallas.7} parent=128 // loop_footer
                  %s389 = sadd.s32 1, %s385
                $region142: #{residual_block_pallas.7} parent=128 // loop_footer_branch
                  %384 = sbr.rel target = $region138
                $region143: #{residual_block_pallas.7} parent=128 // loop_exit
                  _
              $region129: #{residual_block_pallas.7} parent=113 // pred_fallthru
                _
            $region114: #{residual_block_pallas.7} parent=109 // pred_fallthru
              _
            // Predicated region
            $region115: #{residual_block_pallas.7} parent=109 // pred_check
              _
            $region116: #{residual_block_pallas.7} parent=109 // pred_check_branch
              %355 = sbr.rel (0) target = $region118
            $region117: #{residual_block_pallas.7} parent=109 // pred_region
              loop: start=0, step=1, limit=1
              $region119: #{residual_block_pallas.7} parent=117 // loop_pre_header
                _
              $region120: #{residual_block_pallas.7} parent=117 // loop_header
                %s358 = sphi 0, %s362
                %p359 = scmp.ge.s32.totalorder %s358, 1
                %s363 = sphi %s349, %s349
                %s364 = sphi %s345, %s345
              $region121: #{residual_block_pallas.7} parent=117 // loop_header_branch
                %361 = sbr.rel (%p359) target = $region125
              $region122: #{residual_block_pallas.7} parent=117 // loop_body
                %v365 = vld [vmem:[%s363] sm:$0xf]
                %366 = vst [vmem:[%s364] sm:$0xf] %v365
                %v367 = vld [vmem:[%s363 + $0x4] sm:$0xf]
                %368 = vst [vmem:[%s364 + $0x4] sm:$0xf] %v367
                %v369 = vld [vmem:[%s363 + $0x50] sm:$0xf]
                %370 = vst [vmem:[%s364 + $0x8] sm:$0xf] %v369
                %v371 = vld [vmem:[%s363 + $0x54] sm:$0xf]
                %372 = vst [vmem:[%s364 + $0xc] sm:$0xf] %v371
              $region123: #{residual_block_pallas.7} parent=117 // loop_footer
                %s362 = sadd.s32 1, %s358
              $region124: #{residual_block_pallas.7} parent=117 // loop_footer_branch
                %357 = sbr.rel target = $region120
              $region125: #{residual_block_pallas.7} parent=117 // loop_exit
                _
            $region118: #{residual_block_pallas.7} parent=109 // pred_fallthru
              _
          $region110: #{residual_block_pallas.7} parent=105 // pred_fallthru
            _
          %400 = vnop
        $region106: #{residual_block_pallas.7} parent=19 // pred_fallthru
          _
      $region20: #{residual_block_pallas.7} parent=5 // pred_fallthru
        _
      %p401 = scmp.le.s32.totalorder 1, %s13
      %p402 = scmp.lt.s32.totalorder %s13, 9
      %p403 = pnand %p401, %p402
      %p404 = pneg %p403
      // Predicated region
      $region144: #{residual_block_pallas.7} parent=5 // pred_check
        _
      $region145: #{residual_block_pallas.7} parent=5 // pred_check_branch
        %406 = sbr.rel (%p403) target = $region147
      $region146: #{residual_block_pallas.7} parent=5 // pred_region
        %s407 = ssub.s32 %s13, 1
        %s408 = sand.u32 %s26, 1
        %s409 = sand.u32 %s26, 1
        %s410 = smul.addr %s409, 16
        %s411 = scalar_lea.vmem [#allocation2], %s410
        // Predicated region
        $region148: #{residual_block_pallas.7} parent=146 // pred_check
          %p412 = pneg %p39
        $region149: #{residual_block_pallas.7} parent=146 // pred_check_branch
          %414 = sbr.rel (%p412) target = $region151
        $region150: #{residual_block_pallas.7} parent=146 // pred_region
          _
        $region151: #{residual_block_pallas.7} parent=146 // pred_fallthru
          _
        %s415 = sand.u32 %s54, 1
        %s416 = sand.u32 %s54, 1
        %s417 = smul.addr %s416, 16
        %s418 = scalar_lea.vmem [#allocation3], %s417
        // Predicated region
        $region152: #{residual_block_pallas.7} parent=146 // pred_check
          %p419 = pneg %p67
        $region153: #{residual_block_pallas.7} parent=146 // pred_check_branch
          %421 = sbr.rel (%p419) target = $region155
        $region154: #{residual_block_pallas.7} parent=146 // pred_region
          _
        $region155: #{residual_block_pallas.7} parent=146 // pred_fallthru
          _
        %s422 = sand.u32 %s82, 1
        %s423 = sand.u32 %s82, 1
        %s424 = smul.addr %s423, 16
        %s425 = scalar_lea.vmem [#allocation4], %s424
        // Predicated region
        $region156: #{residual_block_pallas.7} parent=146 // pred_check
          %p426 = pneg %p95
        $region157: #{residual_block_pallas.7} parent=146 // pred_check_branch
          %428 = sbr.rel (%p426) target = $region159
        $region158: #{residual_block_pallas.7} parent=146 // pred_region
          _
        $region159: #{residual_block_pallas.7} parent=146 // pred_fallthru
          _
        %s429 = sand.u32 %s26, 1
        %s430 = sand.u32 %s26, 1
        %s431 = smul.addr %s430, 16
        %s432 = scalar_lea.vmem [#allocation2], %s431
        %p433 = pneg %p39
        %p434 = pneg %p36
        %s435 = sand.u32 %s54, 1
        %s436 = sand.u32 %s54, 1
        %s437 = smul.addr %s436, 16
        %s438 = scalar_lea.vmem [#allocation3], %s437
        %p439 = pneg %p67
        %p440 = pneg %p64
        %s441 = sand.u32 %s82, 1
        %s442 = sand.u32 %s82, 1
        %s443 = smul.addr %s442, 16
        %s444 = scalar_lea.vmem [#allocation4], %s443
        %p445 = pneg %p95
        %p446 = pneg %p92
        %p447 = pneg %p116
        %p448 = pneg %p113
        %p449 = pneg %p142
        %p450 = pneg %p139
        %s451 = sand.u32 %s129, 1
        %s452 = sand.u32 %s129, 1
        %s453 = smul.addr %s452, 8
        %s454 = scalar_lea.vmem [#allocation5], %s453
        %p455 = pneg %p168
        %p456 = pneg %p165
        %p457 = scmp.lt.s32.totalorder %s18, 7
        %s458 = scalar_select %p457, %s18, 7
        %s459 = scalar_lea.vmem %s5, %s458
        %p460 = pneg %p194
        %p461 = pneg %p191
        %p462 = scmp.lt.s32.totalorder %s18, 7
        %s463 = scalar_select %p462, %s18, 7
        %s464 = scalar_lea.vmem %s6, %s463
        %s465 = sadd.s32 %s18, 1
        %s466 = sadd.s32 %s18, 2
        %p467 = scmp.lt.s32.totalorder %s18, 7
        %s468 = scalar_select %p467, %s18, 7
        %s469 = scalar_lea.vmem %s5, %s468
        %p470 = scmp.lt.s32.totalorder %s18, 7
        %s471 = scalar_select %p470, %s18, 7
        %s472 = scalar_lea.vmem %s6, %s471
        %v474 = vld [vmem:[%s411] sm:$0xf]
        %v475 = vld [vmem:[%s411 + $0x8] sm:$0xf]
        %v476 = vld [vmem:[%s3] sm:$0xf]
        %v477 = vld [vmem:[%s3 + $0x4] sm:$0xf]
        %v478 = vld [vmem:[%s3 + $0x8] sm:$0xf]
        %v479 = vld [vmem:[%s3 + $0xc] sm:$0xf]
        %v480 = vld [vmem:[%s3 + $0x10] sm:$0xf]
        %v481 = vld [vmem:[%s3 + $0x14] sm:$0xf]
        %v482 = vld [vmem:[%s3 + $0x18] sm:$0xf]
        %v483 = vld [vmem:[%s3 + $0x1c] sm:$0xf]
        %v484 = vld [vmem:[%s3 + $0x20] sm:$0xf]
        %v485 = vld [vmem:[%s3 + $0x24] sm:$0xf]
        %v486 = vld [vmem:[%s3 + $0x28] sm:$0xf]
        %v487 = vld [vmem:[%s3 + $0x2c] sm:$0xf]
        %v488 = vld [vmem:[%s3 + $0x30] sm:$0xf]
        %v489 = vld [vmem:[%s3 + $0x34] sm:$0xf]
        %v490 = vld [vmem:[%s3 + $0x38] sm:$0xf]
        %v491 = vld [vmem:[%s3 + $0x3c] sm:$0xf]
        %v492 = vld [vmem:[%s411 + $0x4] sm:$0x1]
        %v493 = vld [vmem:[%s411 + $0xc] sm:$0x1]
        %vm494 = vsmask.f32 3328
        %vm495 = vsmask.f32 7440
        %vm496 = vmor %vm494, %vm495
        %v498 = vshrl.u32 %v474, 16
        %v500 = vrot.slane %v498, 4
        %v501 = vshll.u32 %v474, 16
        %v503 = vrot.slane %v501, 5
        %v504 = vor.u32 %v500, %v503
        %v505 = vrot.slane %v504, 4
        %v507 = vshll.u32 %v492, 16
        %v509 = vrot.slane %v507, 5
        %v510 = vsel %vm496, %v505, %v509
        %v512 = vshrl.u32 %v475, 16
        %v514 = vrot.slane %v512, 4
        %v515 = vshll.u32 %v475, 16
        %v517 = vrot.slane %v515, 5
        %v518 = vor.u32 %v514, %v517
        %v519 = vrot.slane %v518, 4
        %v521 = vshll.u32 %v493, 16
        %v523 = vrot.slane %v521, 5
        %v524 = vsel %vm496, %v519, %v523
        %s525 = scalar_lea.vmem %s3, 64
        %v526 = vld [vmem:[%s525] sm:$0xf]
        %v527 = vld [vmem:[%s525 + $0x4] sm:$0xf]
        %v528 = vld [vmem:[%s525 + $0x8] sm:$0xf]
        %v529 = vld [vmem:[%s525 + $0xc] sm:$0xf]
        %v530 = vld [vmem:[%s525 + $0x10] sm:$0xf]
        %v531 = vld [vmem:[%s525 + $0x14] sm:$0xf]
        %v532 = vld [vmem:[%s525 + $0x18] sm:$0xf]
        %v533 = vld [vmem:[%s525 + $0x1c] sm:$0xf]
        %v534 = vld [vmem:[%s525 + $0x20] sm:$0xf]
        %v535 = vld [vmem:[%s525 + $0x24] sm:$0xf]
        %v536 = vld [vmem:[%s525 + $0x28] sm:$0xf]
        %v537 = vld [vmem:[%s525 + $0x2c] sm:$0xf]
        %v538 = vld [vmem:[%s525 + $0x30] sm:$0xf]
        %v539 = vld [vmem:[%s525 + $0x34] sm:$0xf]
        %v540 = vld [vmem:[%s525 + $0x38] sm:$0xf]
        %v541 = vld [vmem:[%s525 + $0x3c] sm:$0xf]
        %v542 = vunpack.c.l.b16 %v510
        %v543 = vunpack.c.l.b16 %v524
        %v544 = vpack.c.b16 %v543, %v542
        %v562 = vunpack.c.l.b16 %v526
        %v563 = vunpack.c.l.b16 %v527
        %v564 = vunpack.c.l.b16 %v528
        %v565 = vunpack.c.l.b16 %v529
        %v566 = vunpack.c.l.b16 %v530
        %v567 = vunpack.c.l.b16 %v531
        %v568 = vunpack.c.l.b16 %v532
        %v569 = vunpack.c.l.b16 %v533
        %v570 = vunpack.c.l.b16 %v534
        %v571 = vunpack.c.l.b16 %v535
        %v572 = vunpack.c.l.b16 %v536
        %v573 = vunpack.c.l.b16 %v537
        %v574 = vunpack.c.l.b16 %v538
        %v575 = vunpack.c.l.b16 %v539
        %v576 = vunpack.c.l.b16 %v540
        %v577 = vunpack.c.l.b16 %v541
        %v578 = vpack.c.b16 %v563, %v562
        %v579 = vpack.c.b16 %v565, %v564
        %v580 = vpack.c.b16 %v567, %v566
        %v581 = vpack.c.b16 %v569, %v568
        %v582 = vpack.c.b16 %v571, %v570
        %v583 = vpack.c.b16 %v573, %v572
        %v584 = vpack.c.b16 %v575, %v574
        %v585 = vpack.c.b16 %v577, %v576
        %594 = vmatprep.subr.bf16.mxu0 0
        %595 = vmatpush1.bf16.msra.mxu0 %v578
        %596 = vmatprep.subr.bf16.mxu0 0
        %597 = vmatpush1.bf16.msra.mxu0 %v579
        %598 = vmatprep.subr.bf16.mxu0 0
        %599 = vmatpush1.bf16.msra.mxu0 %v580
        %600 = vmatprep.subr.bf16.mxu0 0
        %601 = vmatpush1.bf16.msra.mxu0 %v581
        %602 = vmatprep.subr.bf16.mxu0 0
        %603 = vmatpush1.bf16.msra.mxu0 %v582
        %604 = vmatprep.subr.bf16.mxu0 0
        %605 = vmatpush1.bf16.msra.mxu0 %v583
        %606 = vmatprep.subr.bf16.mxu0 0
        %607 = vmatpush1.bf16.msra.mxu0 %v584
        %608 = vmatprep.subr.bf16.mxu0 0
        %609 = vmatpush1.bf16.msra.mxu0 %v585
        %610 = vmatprep.subr.bf16.mxu0 0
        %611 = vmatpush1.bf16.msra.mxu0 0
        %612 = vmatprep.subr.bf16.mxu0 0
        %613 = vmatpush1.bf16.msra.mxu0 0
        %614 = vmatprep.subr.bf16.mxu0 0
        %615 = vmatpush1.bf16.msra.mxu0 0
        %616 = vmatprep.subr.bf16.mxu0 0
        %617 = vmatpush1.bf16.msra.mxu0 0
        %618 = vmatprep.subr.bf16.mxu0 0
        %619 = vmatpush1.bf16.msra.mxu0 0
        %620 = vmatprep.subr.bf16.mxu0 0
        %621 = vmatpush1.bf16.msra.mxu0 0
        %622 = vmatprep.subr.bf16.mxu0 0
        %623 = vmatpush1.bf16.msra.mxu0 0
        %624 = vmatprep.subr.bf16.mxu0 0
        %625 = vmatpush1.bf16.msra.mxu0 0
        %626 = vmatprep.mubr.bf16.mxu0 0
        %627 = vmatmul.mubr.bf16.gmra.mrb[0].mxu0 %v544
        %v628 = vpop.f32.mrb[0].mxu0
        %v629 = vadd.f32 0.0, %v628
        %v630 = vpop.f32.mrb[0].mxu0
        %v631 = vpop.f32.mrb[0].mxu0
        %v632 = vadd.f32 0.0, %v631
        %v633 = vpop.f32.mrb[0].mxu0
        %634 = vdwg.mxu0
        %v637 = vunpack.c.l.b16 %v474
        %v638 = vunpack.c.l.b16 %v475
        %v639 = vpack.c.b16 %v638, %v637
        %v657 = vunpack.c.l.b16 %v476
        %v658 = vunpack.c.l.b16 %v477
        %v659 = vunpack.c.l.b16 %v478
        %v660 = vunpack.c.l.b16 %v479
        %v661 = vunpack.c.l.b16 %v480
        %v662 = vunpack.c.l.b16 %v481
        %v663 = vunpack.c.l.b16 %v482
        %v664 = vunpack.c.l.b16 %v483
        %v665 = vunpack.c.l.b16 %v484
        %v666 = vunpack.c.l.b16 %v485
        %v667 = vunpack.c.l.b16 %v486
        %v668 = vunpack.c.l.b16 %v487
        %v669 = vunpack.c.l.b16 %v488
        %v670 = vunpack.c.l.b16 %v489
        %v671 = vunpack.c.l.b16 %v490
        %v672 = vunpack.c.l.b16 %v491
        %v673 = vpack.c.b16 %v658, %v657
        %v674 = vpack.c.b16 %v660, %v659
        %v675 = vpack.c.b16 %v662, %v661
        %v676 = vpack.c.b16 %v664, %v663
        %v677 = vpack.c.b16 %v666, %v665
        %v678 = vpack.c.b16 %v668, %v667
        %v679 = vpack.c.b16 %v670, %v669
        %v680 = vpack.c.b16 %v672, %v671
        %689 = vmatprep.subr.bf16.mxu0 0
        %690 = vmatpush1.bf16.msra.mxu0 %v673
        %691 = vmatprep.subr.bf16.mxu0 0
        %692 = vmatpush1.bf16.msra.mxu0 %v674
        %693 = vmatprep.subr.bf16.mxu0 0
        %694 = vmatpush1.bf16.msra.mxu0 %v675
        %695 = vmatprep.subr.bf16.mxu0 0
        %696 = vmatpush1.bf16.msra.mxu0 %v676
        %697 = vmatprep.subr.bf16.mxu0 0
        %698 = vmatpush1.bf16.msra.mxu0 %v677
        %699 = vmatprep.subr.bf16.mxu0 0
        %700 = vmatpush1.bf16.msra.mxu0 %v678
        %701 = vmatprep.subr.bf16.mxu0 0
        %702 = vmatpush1.bf16.msra.mxu0 %v679
        %703 = vmatprep.subr.bf16.mxu0 0
        %704 = vmatpush1.bf16.msra.mxu0 %v680
        %705 = vmatprep.subr.bf16.mxu0 0
        %706 = vmatpush1.bf16.msra.mxu0 0
        %707 = vmatprep.subr.bf16.mxu0 0
        %708 = vmatpush1.bf16.msra.mxu0 0
        %709 = vmatprep.subr.bf16.mxu0 0
        %710 = vmatpush1.bf16.msra.mxu0 0
        %711 = vmatprep.subr.bf16.mxu0 0
        %712 = vmatpush1.bf16.msra.mxu0 0
        %713 = vmatprep.subr.bf16.mxu0 0
        %714 = vmatpush1.bf16.msra.mxu0 0
        %715 = vmatprep.subr.bf16.mxu0 0
        %716 = vmatpush1.bf16.msra.mxu0 0
        %717 = vmatprep.subr.bf16.mxu0 0
        %718 = vmatpush1.bf16.msra.mxu0 0
        %719 = vmatprep.subr.bf16.mxu0 0
        %720 = vmatpush1.bf16.msra.mxu0 0
        %721 = vmatprep.mubr.bf16.mxu0 0
        %722 = vmatmul.mubr.bf16.gmra.mrb[0].mxu0 %v639
        %v723 = vpop.f32.mrb[0].mxu0
        %v724 = vadd.f32 %v629, %v723
        %v725 = vpop.f32.mrb[0].mxu0
        %v726 = vpop.f32.mrb[0].mxu0
        %v727 = vadd.f32 %v632, %v726
        %v728 = vpop.f32.mrb[0].mxu0
        %729 = vdwg.mxu0
        %v730 = vld [vmem:[%s411] sm:$0xe]
        %v731 = vld [vmem:[%s411 + $0x8] sm:$0xe]
        %vm736 = vcmask 1042432
        %vm737 = vcmask 1046532
        %vm738 = vmor %vm736, %vm737
        %v739 = vrot.slane %v730, 5
        %v740 = vrot.slane %v739, 4
        %v741 = vrot.slane %v492, 5
        %v742 = vsel %vm738, %v740, %v741
        %v743 = vrot.slane %v731, 5
        %v744 = vrot.slane %v743, 4
        %v745 = vrot.slane %v493, 5
        %v746 = vsel %vm738, %v744, %v745
        %s747 = scalar_lea.vmem %s3, 128
        %v748 = vld [vmem:[%s747] sm:$0xf]
        %v749 = vld [vmem:[%s747 + $0x4] sm:$0xf]
        %v750 = vld [vmem:[%s747 + $0x8] sm:$0xf]
        %v751 = vld [vmem:[%s747 + $0xc] sm:$0xf]
        %v752 = vld [vmem:[%s747 + $0x10] sm:$0xf]
        %v753 = vld [vmem:[%s747 + $0x14] sm:$0xf]
        %v754 = vld [vmem:[%s747 + $0x18] sm:$0xf]
        %v755 = vld [vmem:[%s747 + $0x1c] sm:$0xf]
        %v756 = vld [vmem:[%s747 + $0x20] sm:$0xf]
        %v757 = vld [vmem:[%s747 + $0x24] sm:$0xf]
        %v758 = vld [vmem:[%s747 + $0x28] sm:$0xf]
        %v759 = vld [vmem:[%s747 + $0x2c] sm:$0xf]
        %v760 = vld [vmem:[%s747 + $0x30] sm:$0xf]
        %v761 = vld [vmem:[%s747 + $0x34] sm:$0xf]
        %v762 = vld [vmem:[%s747 + $0x38] sm:$0xf]
        %v763 = vld [vmem:[%s747 + $0x3c] sm:$0xf]
        %v764 = vunpack.c.l.b16 %v742
        %v765 = vunpack.c.l.b16 %v746
        %v766 = vpack.c.b16 %v765, %v764
        %v784 = vunpack.c.l.b16 %v748
        %v785 = vunpack.c.l.b16 %v749
        %v786 = vunpack.c.l.b16 %v750
        %v787 = vunpack.c.l.b16 %v751
        %v788 = vunpack.c.l.b16 %v752
        %v789 = vunpack.c.l.b16 %v753
        %v790 = vunpack.c.l.b16 %v754
        %v791 = vunpack.c.l.b16 %v755
        %v792 = vunpack.c.l.b16 %v756
        %v793 = vunpack.c.l.b16 %v757
        %v794 = vunpack.c.l.b16 %v758
        %v795 = vunpack.c.l.b16 %v759
        %v796 = vunpack.c.l.b16 %v760
        %v797 = vunpack.c.l.b16 %v761
        %v798 = vunpack.c.l.b16 %v762
        %v799 = vunpack.c.l.b16 %v763
        %v800 = vpack.c.b16 %v785, %v784
        %v801 = vpack.c.b16 %v787, %v786
        %v802 = vpack.c.b16 %v789, %v788
        %v803 = vpack.c.b16 %v791, %v790
        %v804 = vpack.c.b16 %v793, %v792
        %v805 = vpack.c.b16 %v795, %v794
        %v806 = vpack.c.b16 %v797, %v796
        %v807 = vpack.c.b16 %v799, %v798
        %816 = vmatprep.subr.bf16.mxu0 0
        %817 = vmatpush1.bf16.msra.mxu0 %v800
        %818 = vmatprep.subr.bf16.mxu0 0
        %819 = vmatpush1.bf16.msra.mxu0 %v801
        %820 = vmatprep.subr.bf16.mxu0 0
        %821 = vmatpush1.bf16.msra.mxu0 %v802
        %822 = vmatprep.subr.bf16.mxu0 0
        %823 = vmatpush1.bf16.msra.mxu0 %v803
        %824 = vmatprep.subr.bf16.mxu0 0
        %825 = vmatpush1.bf16.msra.mxu0 %v804
        %826 = vmatprep.subr.bf16.mxu0 0
        %827 = vmatpush1.bf16.msra.mxu0 %v805
        %828 = vmatprep.subr.bf16.mxu0 0
        %829 = vmatpush1.bf16.msra.mxu0 %v806
        %830 = vmatprep.subr.bf16.mxu0 0
        %831 = vmatpush1.bf16.msra.mxu0 %v807
        %832 = vmatprep.subr.bf16.mxu0 0
        %833 = vmatpush1.bf16.msra.mxu0 0
        %834 = vmatprep.subr.bf16.mxu0 0
        %835 = vmatpush1.bf16.msra.mxu0 0
        %836 = vmatprep.subr.bf16.mxu0 0
        %837 = vmatpush1.bf16.msra.mxu0 0
        %838 = vmatprep.subr.bf16.mxu0 0
        %839 = vmatpush1.bf16.msra.mxu0 0
        %840 = vmatprep.subr.bf16.mxu0 0
        %841 = vmatpush1.bf16.msra.mxu0 0
        %842 = vmatprep.subr.bf16.mxu0 0
        %843 = vmatpush1.bf16.msra.mxu0 0
        %844 = vmatprep.subr.bf16.mxu0 0
        %845 = vmatpush1.bf16.msra.mxu0 0
        %846 = vmatprep.subr.bf16.mxu0 0
        %847 = vmatpush1.bf16.msra.mxu0 0
        %848 = vmatprep.mubr.bf16.mxu0 0
        %849 = vmatmul.mubr.bf16.gmra.mrb[0].mxu0 %v766
        %v850 = vpop.f32.mrb[0].mxu0
        %v851 = vadd.f32 0.0, %v850
        %v852 = vpop.f32.mrb[0].mxu0
        %v853 = vpop.f32.mrb[0].mxu0
        %v854 = vadd.f32 0.0, %v853
        %v855 = vpop.f32.mrb[0].mxu0
        %856 = vdwg.mxu0
        %v857 = vadd.f32 %v724, %v851
        %v858 = vadd.f32 %v727, %v854
        %v859 = vld [vmem:[%s418] sm:$0xf]
        %v860 = vld [vmem:[%s418 + $0x8] sm:$0xf]
        %s861 = scalar_lea.vmem %s3, 192
        %v862 = vld [vmem:[%s861] sm:$0xf]
        %v863 = vld [vmem:[%s861 + $0x4] sm:$0xf]
        %v864 = vld [vmem:[%s861 + $0x8] sm:$0xf]
        %v865 = vld [vmem:[%s861 + $0xc] sm:$0xf]
        %v866 = vld [vmem:[%s861 + $0x10] sm:$0xf]
        %v867 = vld [vmem:[%s861 + $0x14] sm:$0xf]
        %v868 = vld [vmem:[%s861 + $0x18] sm:$0xf]
        %v869 = vld [vmem:[%s861 + $0x1c] sm:$0xf]
        %v870 = vld [vmem:[%s861 + $0x20] sm:$0xf]
        %v871 = vld [vmem:[%s861 + $0x24] sm:$0xf]
        %v872 = vld [vmem:[%s861 + $0x28] sm:$0xf]
        %v873 = vld [vmem:[%s861 + $0x2c] sm:$0xf]
        %v874 = vld [vmem:[%s861 + $0x30] sm:$0xf]
        %v875 = vld [vmem:[%s861 + $0x34] sm:$0xf]
        %v876 = vld [vmem:[%s861 + $0x38] sm:$0xf]
        %v877 = vld [vmem:[%s861 + $0x3c] sm:$0xf]
        %v880 = vunpack.c.l.b16 %v859
        %v881 = vunpack.c.l.b16 %v860
        %v882 = vpack.c.b16 %v881, %v880
        %v900 = vunpack.c.l.b16 %v862
        %v901 = vunpack.c.l.b16 %v863
        %v902 = vunpack.c.l.b16 %v864
        %v903 = vunpack.c.l.b16 %v865
        %v904 = vunpack.c.l.b16 %v866
        %v905 = vunpack.c.l.b16 %v867
        %v906 = vunpack.c.l.b16 %v868
        %v907 = vunpack.c.l.b16 %v869
        %v908 = vunpack.c.l.b16 %v870
        %v909 = vunpack.c.l.b16 %v871
        %v910 = vunpack.c.l.b16 %v872
        %v911 = vunpack.c.l.b16 %v873
        %v912 = vunpack.c.l.b16 %v874
        %v913 = vunpack.c.l.b16 %v875
        %v914 = vunpack.c.l.b16 %v876
        %v915 = vunpack.c.l.b16 %v877
        %v916 = vpack.c.b16 %v901, %v900
        %v917 = vpack.c.b16 %v903, %v902
        %v918 = vpack.c.b16 %v905, %v904
        %v919 = vpack.c.b16 %v907, %v906
        %v920 = vpack.c.b16 %v909, %v908
        %v921 = vpack.c.b16 %v911, %v910
        %v922 = vpack.c.b16 %v913, %v912
        %v923 = vpack.c.b16 %v915, %v914
        %932 = vmatprep.subr.bf16.mxu0 0
        %933 = vmatpush1.bf16.msra.mxu0 %v916
        %934 = vmatprep.subr.bf16.mxu0 0
        %935 = vmatpush1.bf16.msra.mxu0 %v917
        %936 = vmatprep.subr.bf16.mxu0 0
        %937 = vmatpush1.bf16.msra.mxu0 %v918
        %938 = vmatprep.subr.bf16.mxu0 0
        %939 = vmatpush1.bf16.msra.mxu0 %v919
        %940 = vmatprep.subr.bf16.mxu0 0
        %941 = vmatpush1.bf16.msra.mxu0 %v920
        %942 = vmatprep.subr.bf16.mxu0 0
        %943 = vmatpush1.bf16.msra.mxu0 %v921
        %944 = vmatprep.subr.bf16.mxu0 0
        %945 = vmatpush1.bf16.msra.mxu0 %v922
        %946 = vmatprep.subr.bf16.mxu0 0
        %947 = vmatpush1.bf16.msra.mxu0 %v923
        %948 = vmatprep.subr.bf16.mxu0 0
        %949 = vmatpush1.bf16.msra.mxu0 0
        %950 = vmatprep.subr.bf16.mxu0 0
        %951 = vmatpush1.bf16.msra.mxu0 0
        %952 = vmatprep.subr.bf16.mxu0 0
        %953 = vmatpush1.bf16.msra.mxu0 0
        %954 = vmatprep.subr.bf16.mxu0 0
        %955 = vmatpush1.bf16.msra.mxu0 0
        %956 = vmatprep.subr.bf16.mxu0 0
        %957 = vmatpush1.bf16.msra.mxu0 0
        %958 = vmatprep.subr.bf16.mxu0 0
        %959 = vmatpush1.bf16.msra.mxu0 0
        %960 = vmatprep.subr.bf16.mxu0 0
        %961 = vmatpush1.bf16.msra.mxu0 0
        %962 = vmatprep.subr.bf16.mxu0 0
        %963 = vmatpush1.bf16.msra.mxu0 0
        %964 = vmatprep.mubr.bf16.mxu0 0
        %965 = vmatmul.mubr.bf16.gmra.mrb[0].mxu0 %v882
        %v966 = vpop.f32.mrb[0].mxu0
        %v967 = vadd.f32 0.0, %v966
        %v968 = vpop.f32.mrb[0].mxu0
        %v969 = vpop.f32.mrb[0].mxu0
        %v970 = vadd.f32 0.0, %v969
        %v971 = vpop.f32.mrb[0].mxu0
        %972 = vdwg.mxu0
        %v973 = vadd.f32 %v857, %v967
        %v974 = vadd.f32 %v858, %v970
        %v975 = vld [vmem:[%s418] sm:$0xf]
        %v976 = vld [vmem:[%s418 + $0x4] sm:$0x1]
        %v977 = vld [vmem:[%s418 + $0x8] sm:$0xf]
        %v978 = vld [vmem:[%s418 + $0xc] sm:$0x1]
        %v980 = vshrl.u32 %v975, 16
        %v982 = vrot.slane %v980, 4
        %v983 = vshll.u32 %v975, 16
        %v985 = vrot.slane %v983, 5
        %v986 = vor.u32 %v982, %v985
        %v987 = vrot.slane %v986, 4
        %v989 = vshll.u32 %v976, 16
        %v991 = vrot.slane %v989, 5
        %v992 = vsel %vm496, %v987, %v991
        %v994 = vshrl.u32 %v977, 16
        %v996 = vrot.slane %v994, 4
        %v997 = vshll.u32 %v977, 16
        %v999 = vrot.slane %v997, 5
        %v1000 = vor.u32 %v996, %v999
        %v1001 = vrot.slane %v1000, 4
        %v1003 = vshll.u32 %v978, 16
        %v1005 = vrot.slane %v1003, 5
        %v1006 = vsel %vm496, %v1001, %v1005
        %s1007 = scalar_lea.vmem %s3, 256
        %v1008 = vld [vmem:[%s1007] sm:$0xf]
        %v1009 = vld [vmem:[%s1007 + $0x4] sm:$0xf]
        %v1010 = vld [vmem:[%s1007 + $0x8] sm:$0xf]
        %v1011 = vld [vmem:[%s1007 + $0xc] sm:$0xf]
        %v1012 = vld [vmem:[%s1007 + $0x10] sm:$0xf]
        %v1013 = vld [vmem:[%s1007 + $0x14] sm:$0xf]
        %v1014 = vld [vmem:[%s1007 + $0x18] sm:$0xf]
        %v1015 = vld [vmem:[%s1007 + $0x1c] sm:$0xf]
        %v1016 = vld [vmem:[%s1007 + $0x20] sm:$0xf]
        %v1017 = vld [vmem:[%s1007 + $0x24] sm:$0xf]
        %v1018 = vld [vmem:[%s1007 + $0x28] sm:$0xf]
        %v1019 = vld [vmem:[%s1007 + $0x2c] sm:$0xf]
        %v1020 = vld [vmem:[%s1007 + $0x30] sm:$0xf]
        %v1021 = vld [vmem:[%s1007 + $0x34] sm:$0xf]
        %v1022 = vld [vmem:[%s1007 + $0x38] sm:$0xf]
        %v1023 = vld [vmem:[%s1007 + $0x3c] sm:$0xf]
        %v1024 = vunpack.c.l.b16 %v992
        %v1025 = vunpack.c.l.b16 %v1006
        %v1026 = vpack.c.b16 %v1025, %v1024
        %v1044 = vunpack.c.l.b16 %v1008
        %v1045 = vunpack.c.l.b16 %v1009
        %v1046 = vunpack.c.l.b16 %v1010
        %v1047 = vunpack.c.l.b16 %v1011
        %v1048 = vunpack.c.l.b16 %v1012
        %v1049 = vunpack.c.l.b16 %v1013
        %v1050 = vunpack.c.l.b16 %v1014
        %v1051 = vunpack.c.l.b16 %v1015
        %v1052 = vunpack.c.l.b16 %v1016
        %v1053 = vunpack.c.l.b16 %v1017
        %v1054 = vunpack.c.l.b16 %v1018
        %v1055 = vunpack.c.l.b16 %v1019
        %v1056 = vunpack.c.l.b16 %v1020
        %v1057 = vunpack.c.l.b16 %v1021
        %v1058 = vunpack.c.l.b16 %v1022
        %v1059 = vunpack.c.l.b16 %v1023
        %v1060 = vpack.c.b16 %v1045, %v1044
        %v1061 = vpack.c.b16 %v1047, %v1046
        %v1062 = vpack.c.b16 %v1049, %v1048
        %v1063 = vpack.c.b16 %v1051, %v1050
        %v1064 = vpack.c.b16 %v1053, %v1052
        %v1065 = vpack.c.b16 %v1055, %v1054
        %v1066 = vpack.c.b16 %v1057, %v1056
        %v1067 = vpack.c.b16 %v1059, %v1058
        %1076 = vmatprep.subr.bf16.mxu0 0
        %1077 = vmatpush1.bf16.msra.mxu0 %v1060
        %1078 = vmatprep.subr.bf16.mxu0 0
        %1079 = vmatpush1.bf16.msra.mxu0 %v1061
        %1080 = vmatprep.subr.bf16.mxu0 0
        %1081 = vmatpush1.bf16.msra.mxu0 %v1062
        %1082 = vmatprep.subr.bf16.mxu0 0
        %1083 = vmatpush1.bf16.msra.mxu0 %v1063
        %1084 = vmatprep.subr.bf16.mxu0 0
        %1085 = vmatpush1.bf16.msra.mxu0 %v1064
        %1086 = vmatprep.subr.bf16.mxu0 0
        %1087 = vmatpush1.bf16.msra.mxu0 %v1065
        %1088 = vmatprep.subr.bf16.mxu0 0
        %1089 = vmatpush1.bf16.msra.mxu0 %v1066
        %1090 = vmatprep.subr.bf16.mxu0 0
        %1091 = vmatpush1.bf16.msra.mxu0 %v1067
        %1092 = vmatprep.subr.bf16.mxu0 0
        %1093 = vmatpush1.bf16.msra.mxu0 0
        %1094 = vmatprep.subr.bf16.mxu0 0
        %1095 = vmatpush1.bf16.msra.mxu0 0
        %1096 = vmatprep.subr.bf16.mxu0 0
        %1097 = vmatpush1.bf16.msra.mxu0 0
        %1098 = vmatprep.subr.bf16.mxu0 0
        %1099 = vmatpush1.bf16.msra.mxu0 0
        %1100 = vmatprep.subr.bf16.mxu0 0
        %1101 = vmatpush1.bf16.msra.mxu0 0
        %1102 = vmatprep.subr.bf16.mxu0 0
        %1103 = vmatpush1.bf16.msra.mxu0 0
        %1104 = vmatprep.subr.bf16.mxu0 0
        %1105 = vmatpush1.bf16.msra.mxu0 0
        %1106 = vmatprep.subr.bf16.mxu0 0
        %1107 = vmatpush1.bf16.msra.mxu0 0
        %1108 = vmatprep.mubr.bf16.mxu0 0
        %1109 = vmatmul.mubr.bf16.gmra.mrb[0].mxu0 %v1026
        %v1110 = vpop.f32.mrb[0].mxu0
        %v1111 = vadd.f32 0.0, %v1110
        %v1112 = vpop.f32.mrb[0].mxu0
        %v1113 = vpop.f32.mrb[0].mxu0
        %v1114 = vadd.f32 0.0, %v1113
        %v1115 = vpop.f32.mrb[0].mxu0
        %1116 = vdwg.mxu0
        %v1117 = vadd.f32 %v973, %v1111
        %v1118 = vadd.f32 %v974, %v1114
        %v1119 = vld [vmem:[%s418] sm:$0xe]
        %v1120 = vld [vmem:[%s418 + $0x8] sm:$0xe]
        %v1125 = vrot.slane %v1119, 5
        %v1126 = vrot.slane %v1125, 4
        %v1127 = vrot.slane %v976, 5
        %v1128 = vsel %vm738, %v1126, %v1127
        %v1129 = vrot.slane %v1120, 5
        %v1130 = vrot.slane %v1129, 4
        %v1131 = vrot.slane %v978, 5
        %v1132 = vsel %vm738, %v1130, %v1131
        %s1133 = scalar_lea.vmem %s3, 320
        %v1134 = vld [vmem:[%s1133] sm:$0xf]
        %v1135 = vld [vmem:[%s1133 + $0x4] sm:$0xf]
        %v1136 = vld [vmem:[%s1133 + $0x8] sm:$0xf]
        %v1137 = vld [vmem:[%s1133 + $0xc] sm:$0xf]
        %v1138 = vld [vmem:[%s1133 + $0x10] sm:$0xf]
        %v1139 = vld [vmem:[%s1133 + $0x14] sm:$0xf]
        %v1140 = vld [vmem:[%s1133 + $0x18] sm:$0xf]
        %v1141 = vld [vmem:[%s1133 + $0x1c] sm:$0xf]
        %v1142 = vld [vmem:[%s1133 + $0x20] sm:$0xf]
        %v1143 = vld [vmem:[%s1133 + $0x24] sm:$0xf]
        %v1144 = vld [vmem:[%s1133 + $0x28] sm:$0xf]
        %v1145 = vld [vmem:[%s1133 + $0x2c] sm:$0xf]
        %v1146 = vld [vmem:[%s1133 + $0x30] sm:$0xf]
        %v1147 = vld [vmem:[%s1133 + $0x34] sm:$0xf]
        %v1148 = vld [vmem:[%s1133 + $0x38] sm:$0xf]
        %v1149 = vld [vmem:[%s1133 + $0x3c] sm:$0xf]
        %v1150 = vunpack.c.l.b16 %v1128
        %v1151 = vunpack.c.l.b16 %v1132
        %v1152 = vpack.c.b16 %v1151, %v1150
        %v1170 = vunpack.c.l.b16 %v1134
        %v1171 = vunpack.c.l.b16 %v1135
        %v1172 = vunpack.c.l.b16 %v1136
        %v1173 = vunpack.c.l.b16 %v1137
        %v1174 = vunpack.c.l.b16 %v1138
        %v1175 = vunpack.c.l.b16 %v1139
        %v1176 = vunpack.c.l.b16 %v1140
        %v1177 = vunpack.c.l.b16 %v1141
        %v1178 = vunpack.c.l.b16 %v1142
        %v1179 = vunpack.c.l.b16 %v1143
        %v1180 = vunpack.c.l.b16 %v1144
        %v1181 = vunpack.c.l.b16 %v1145
        %v1182 = vunpack.c.l.b16 %v1146
        %v1183 = vunpack.c.l.b16 %v1147
        %v1184 = vunpack.c.l.b16 %v1148
        %v1185 = vunpack.c.l.b16 %v1149
        %v1186 = vpack.c.b16 %v1171, %v1170
        %v1187 = vpack.c.b16 %v1173, %v1172
        %v1188 = vpack.c.b16 %v1175, %v1174
        %v1189 = vpack.c.b16 %v1177, %v1176
        %v1190 = vpack.c.b16 %v1179, %v1178
        %v1191 = vpack.c.b16 %v1181, %v1180
        %v1192 = vpack.c.b16 %v1183, %v1182
        %v1193 = vpack.c.b16 %v1185, %v1184
        %1202 = vmatprep.subr.bf16.mxu0 0
        %1203 = vmatpush1.bf16.msra.mxu0 %v1186
        %1204 = vmatprep.subr.bf16.mxu0 0
        %1205 = vmatpush1.bf16.msra.mxu0 %v1187
        %1206 = vmatprep.subr.bf16.mxu0 0
        %1207 = vmatpush1.bf16.msra.mxu0 %v1188
        %1208 = vmatprep.subr.bf16.mxu0 0
        %1209 = vmatpush1.bf16.msra.mxu0 %v1189
        %1210 = vmatprep.subr.bf16.mxu0 0
        %1211 = vmatpush1.bf16.msra.mxu0 %v1190
        %1212 = vmatprep.subr.bf16.mxu0 0
        %1213 = vmatpush1.bf16.msra.mxu0 %v1191
        %1214 = vmatprep.subr.bf16.mxu0 0
        %1215 = vmatpush1.bf16.msra.mxu0 %v1192
        %1216 = vmatprep.subr.bf16.mxu0 0
        %1217 = vmatpush1.bf16.msra.mxu0 %v1193
        %1218 = vmatprep.subr.bf16.mxu0 0
        %1219 = vmatpush1.bf16.msra.mxu0 0
        %1220 = vmatprep.subr.bf16.mxu0 0
        %1221 = vmatpush1.bf16.msra.mxu0 0
        %1222 = vmatprep.subr.bf16.mxu0 0
        %1223 = vmatpush1.bf16.msra.mxu0 0
        %1224 = vmatprep.subr.bf16.mxu0 0
        %1225 = vmatpush1.bf16.msra.mxu0 0
        %1226 = vmatprep.subr.bf16.mxu0 0
        %1227 = vmatpush1.bf16.msra.mxu0 0
        %1228 = vmatprep.subr.bf16.mxu0 0
        %1229 = vmatpush1.bf16.msra.mxu0 0
        %1230 = vmatprep.subr.bf16.mxu0 0
        %1231 = vmatpush1.bf16.msra.mxu0 0
        %1232 = vmatprep.subr.bf16.mxu0 0
        %1233 = vmatpush1.bf16.msra.mxu0 0
        %1234 = vmatprep.mubr.bf16.mxu0 0
        %1235 = vmatmul.mubr.bf16.gmra.mrb[0].mxu0 %v1152
        %v1236 = vpop.f32.mrb[0].mxu0
        %v1237 = vadd.f32 0.0, %v1236
        %v1238 = vpop.f32.mrb[0].mxu0
        %v1239 = vpop.f32.mrb[0].mxu0
        %v1240 = vadd.f32 0.0, %v1239
        %v1241 = vpop.f32.mrb[0].mxu0
        %1242 = vdwg.mxu0
        %v1243 = vadd.f32 %v1117, %v1237
        %v1244 = vadd.f32 %v1118, %v1240
        %v1245 = vld [vmem:[%s425] sm:$0xf]
        %v1246 = vld [vmem:[%s425 + $0x8] sm:$0xf]
        %s1247 = scalar_lea.vmem %s3, 384
        %v1248 = vld [vmem:[%s1247] sm:$0xf]
        %v1249 = vld [vmem:[%s1247 + $0x4] sm:$0xf]
        %v1250 = vld [vmem:[%s1247 + $0x8] sm:$0xf]
        %v1251 = vld [vmem:[%s1247 + $0xc] sm:$0xf]
        %v1252 = vld [vmem:[%s1247 + $0x10] sm:$0xf]
        %v1253 = vld [vmem:[%s1247 + $0x14] sm:$0xf]
        %v1254 = vld [vmem:[%s1247 + $0x18] sm:$0xf]
        %v1255 = vld [vmem:[%s1247 + $0x1c] sm:$0xf]
        %v1256 = vld [vmem:[%s1247 + $0x20] sm:$0xf]
        %v1257 = vld [vmem:[%s1247 + $0x24] sm:$0xf]
        %v1258 = vld [vmem:[%s1247 + $0x28] sm:$0xf]
        %v1259 = vld [vmem:[%s1247 + $0x2c] sm:$0xf]
        %v1260 = vld [vmem:[%s1247 + $0x30] sm:$0xf]
        %v1261 = vld [vmem:[%s1247 + $0x34] sm:$0xf]
        %v1262 = vld [vmem:[%s1247 + $0x38] sm:$0xf]
        %v1263 = vld [vmem:[%s1247 + $0x3c] sm:$0xf]
        %v1266 = vunpack.c.l.b16 %v1245
        %v1267 = vunpack.c.l.b16 %v1246
        %v1268 = vpack.c.b16 %v1267, %v1266
        %v1286 = vunpack.c.l.b16 %v1248
        %v1287 = vunpack.c.l.b16 %v1249
        %v1288 = vunpack.c.l.b16 %v1250
        %v1289 = vunpack.c.l.b16 %v1251
        %v1290 = vunpack.c.l.b16 %v1252
        %v1291 = vunpack.c.l.b16 %v1253
        %v1292 = vunpack.c.l.b16 %v1254
        %v1293 = vunpack.c.l.b16 %v1255
        %v1294 = vunpack.c.l.b16 %v1256
        %v1295 = vunpack.c.l.b16 %v1257
        %v1296 = vunpack.c.l.b16 %v1258
        %v1297 = vunpack.c.l.b16 %v1259
        %v1298 = vunpack.c.l.b16 %v1260
        %v1299 = vunpack.c.l.b16 %v1261
        %v1300 = vunpack.c.l.b16 %v1262
        %v1301 = vunpack.c.l.b16 %v1263
        %v1302 = vpack.c.b16 %v1287, %v1286
        %v1303 = vpack.c.b16 %v1289, %v1288
        %v1304 = vpack.c.b16 %v1291, %v1290
        %v1305 = vpack.c.b16 %v1293, %v1292
        %v1306 = vpack.c.b16 %v1295, %v1294
        %v1307 = vpack.c.b16 %v1297, %v1296
        %v1308 = vpack.c.b16 %v1299, %v1298
        %v1309 = vpack.c.b16 %v1301, %v1300
        %1318 = vmatprep.subr.bf16.mxu0 0
        %1319 = vmatpush1.bf16.msra.mxu0 %v1302
        %1320 = vmatprep.subr.bf16.mxu0 0
        %1321 = vmatpush1.bf16.msra.mxu0 %v1303
        %1322 = vmatprep.subr.bf16.mxu0 0
        %1323 = vmatpush1.bf16.msra.mxu0 %v1304
        %1324 = vmatprep.subr.bf16.mxu0 0
        %1325 = vmatpush1.bf16.msra.mxu0 %v1305
        %1326 = vmatprep.subr.bf16.mxu0 0
        %1327 = vmatpush1.bf16.msra.mxu0 %v1306
        %1328 = vmatprep.subr.bf16.mxu0 0
        %1329 = vmatpush1.bf16.msra.mxu0 %v1307
        %1330 = vmatprep.subr.bf16.mxu0 0
        %1331 = vmatpush1.bf16.msra.mxu0 %v1308
        %1332 = vmatprep.subr.bf16.mxu0 0
        %1333 = vmatpush1.bf16.msra.mxu0 %v1309
        %1334 = vmatprep.subr.bf16.mxu0 0
        %1335 = vmatpush1.bf16.msra.mxu0 0
        %1336 = vmatprep.subr.bf16.mxu0 0
        %1337 = vmatpush1.bf16.msra.mxu0 0
        %1338 = vmatprep.subr.bf16.mxu0 0
        %1339 = vmatpush1.bf16.msra.mxu0 0
        %1340 = vmatprep.subr.bf16.mxu0 0
        %1341 = vmatpush1.bf16.msra.mxu0 0
        %1342 = vmatprep.subr.bf16.mxu0 0
        %1343 = vmatpush1.bf16.msra.mxu0 0
        %1344 = vmatprep.subr.bf16.mxu0 0
        %1345 = vmatpush1.bf16.msra.mxu0 0
        %1346 = vmatprep.subr.bf16.mxu0 0
        %1347 = vmatpush1.bf16.msra.mxu0 0
        %1348 = vmatprep.subr.bf16.mxu0 0
        %1349 = vmatpush1.bf16.msra.mxu0 0
        %1350 = vmatprep.mubr.bf16.mxu0 0
        %1351 = vmatmul.mubr.bf16.gmra.mrb[0].mxu0 %v1268
        %v1352 = vpop.f32.mrb[0].mxu0
        %v1353 = vadd.f32 0.0, %v1352
        %v1354 = vpop.f32.mrb[0].mxu0
        %v1355 = vpop.f32.mrb[0].mxu0
        %v1356 = vadd.f32 0.0, %v1355
        %v1357 = vpop.f32.mrb[0].mxu0
        %1358 = vdwg.mxu0
        %v1359 = vadd.f32 %v1243, %v1353
        %v1360 = vadd.f32 %v1244, %v1356
        %v1361 = vld [vmem:[%s425] sm:$0xf]
        %v1362 = vld [vmem:[%s425 + $0x4] sm:$0x1]
        %v1363 = vld [vmem:[%s425 + $0x8] sm:$0xf]
        %v1364 = vld [vmem:[%s425 + $0xc] sm:$0x1]
        %v1366 = vshrl.u32 %v1361, 16
        %v1368 = vrot.slane %v1366, 4
        %v1369 = vshll.u32 %v1361, 16
        %v1371 = vrot.slane %v1369, 5
        %v1372 = vor.u32 %v1368, %v1371
        %v1373 = vrot.slane %v1372, 4
        %v1375 = vshll.u32 %v1362, 16
        %v1377 = vrot.slane %v1375, 5
        %v1378 = vsel %vm496, %v1373, %v1377
        %v1380 = vshrl.u32 %v1363, 16
        %v1382 = vrot.slane %v1380, 4
        %v1383 = vshll.u32 %v1363, 16
        %v1385 = vrot.slane %v1383, 5
        %v1386 = vor.u32 %v1382, %v1385
        %v1387 = vrot.slane %v1386, 4
        %v1389 = vshll.u32 %v1364, 16
        %v1391 = vrot.slane %v1389, 5
        %v1392 = vsel %vm496, %v1387, %v1391
        %s1393 = scalar_lea.vmem %s3, 448
        %v1394 = vld [vmem:[%s1393] sm:$0xf]
        %v1395 = vld [vmem:[%s1393 + $0x4] sm:$0xf]
        %v1396 = vld [vmem:[%s1393 + $0x8] sm:$0xf]
        %v1397 = vld [vmem:[%s1393 + $0xc] sm:$0xf]
        %v1398 = vld [vmem:[%s1393 + $0x10] sm:$0xf]
        %v1399 = vld [vmem:[%s1393 + $0x14] sm:$0xf]
        %v1400 = vld [vmem:[%s1393 + $0x18] sm:$0xf]
        %v1401 = vld [vmem:[%s1393 + $0x1c] sm:$0xf]
        %v1402 = vld [vmem:[%s1393 + $0x20] sm:$0xf]
        %v1403 = vld [vmem:[%s1393 + $0x24] sm:$0xf]
        %v1404 = vld [vmem:[%s1393 + $0x28] sm:$0xf]
        %v1405 = vld [vmem:[%s1393 + $0x2c] sm:$0xf]
        %v1406 = vld [vmem:[%s1393 + $0x30] sm:$0xf]
        %v1407 = vld [vmem:[%s1393 + $0x34] sm:$0xf]
        %v1408 = vld [vmem:[%s1393 + $0x38] sm:$0xf]
        %v1409 = vld [vmem:[%s1393 + $0x3c] sm:$0xf]
        %v1410 = vunpack.c.l.b16 %v1378
        %v1411 = vunpack.c.l.b16 %v1392
        %v1412 = vpack.c.b16 %v1411, %v1410
        %v1430 = vunpack.c.l.b16 %v1394
        %v1431 = vunpack.c.l.b16 %v1395
        %v1432 = vunpack.c.l.b16 %v1396
        %v1433 = vunpack.c.l.b16 %v1397
        %v1434 = vunpack.c.l.b16 %v1398
        %v1435 = vunpack.c.l.b16 %v1399
        %v1436 = vunpack.c.l.b16 %v1400
        %v1437 = vunpack.c.l.b16 %v1401
        %v1438 = vunpack.c.l.b16 %v1402
        %v1439 = vunpack.c.l.b16 %v1403
        %v1440 = vunpack.c.l.b16 %v1404
        %v1441 = vunpack.c.l.b16 %v1405
        %v1442 = vunpack.c.l.b16 %v1406
        %v1443 = vunpack.c.l.b16 %v1407
        %v1444 = vunpack.c.l.b16 %v1408
        %v1445 = vunpack.c.l.b16 %v1409
        %v1446 = vpack.c.b16 %v1431, %v1430
        %v1447 = vpack.c.b16 %v1433, %v1432
        %v1448 = vpack.c.b16 %v1435, %v1434
        %v1449 = vpack.c.b16 %v1437, %v1436
        %v1450 = vpack.c.b16 %v1439, %v1438
        %v1451 = vpack.c.b16 %v1441, %v1440
        %v1452 = vpack.c.b16 %v1443, %v1442
        %v1453 = vpack.c.b16 %v1445, %v1444
        %1462 = vmatprep.subr.bf16.mxu0 0
        %1463 = vmatpush1.bf16.msra.mxu0 %v1446
        %1464 = vmatprep.subr.bf16.mxu0 0
        %1465 = vmatpush1.bf16.msra.mxu0 %v1447
        %1466 = vmatprep.subr.bf16.mxu0 0
        %1467 = vmatpush1.bf16.msra.mxu0 %v1448
        %1468 = vmatprep.subr.bf16.mxu0 0
        %1469 = vmatpush1.bf16.msra.mxu0 %v1449
        %1470 = vmatprep.subr.bf16.mxu0 0
        %1471 = vmatpush1.bf16.msra.mxu0 %v1450
        %1472 = vmatprep.subr.bf16.mxu0 0
        %1473 = vmatpush1.bf16.msra.mxu0 %v1451
        %1474 = vmatprep.subr.bf16.mxu0 0
        %1475 = vmatpush1.bf16.msra.mxu0 %v1452
        %1476 = vmatprep.subr.bf16.mxu0 0
        %1477 = vmatpush1.bf16.msra.mxu0 %v1453
        %1478 = vmatprep.subr.bf16.mxu0 0
        %1479 = vmatpush1.bf16.msra.mxu0 0
        %1480 = vmatprep.subr.bf16.mxu0 0
        %1481 = vmatpush1.bf16.msra.mxu0 0
        %1482 = vmatprep.subr.bf16.mxu0 0
        %1483 = vmatpush1.bf16.msra.mxu0 0
        %1484 = vmatprep.subr.bf16.mxu0 0
        %1485 = vmatpush1.bf16.msra.mxu0 0
        %1486 = vmatprep.subr.bf16.mxu0 0
        %1487 = vmatpush1.bf16.msra.mxu0 0
        %1488 = vmatprep.subr.bf16.mxu0 0
        %1489 = vmatpush1.bf16.msra.mxu0 0
        %1490 = vmatprep.subr.bf16.mxu0 0
        %1491 = vmatpush1.bf16.msra.mxu0 0
        %1492 = vmatprep.subr.bf16.mxu0 0
        %1493 = vmatpush1.bf16.msra.mxu0 0
        %1494 = vmatprep.mubr.bf16.mxu0 0
        %1495 = vmatmul.mubr.bf16.gmra.mrb[0].mxu0 %v1412
        %v1496 = vpop.f32.mrb[0].mxu0
        %v1497 = vadd.f32 0.0, %v1496
        %v1498 = vpop.f32.mrb[0].mxu0
        %v1499 = vpop.f32.mrb[0].mxu0
        %v1500 = vadd.f32 0.0, %v1499
        %v1501 = vpop.f32.mrb[0].mxu0
        %1502 = vdwg.mxu0
        %v1503 = vadd.f32 %v1359, %v1497
        %v1504 = vadd.f32 %v1360, %v1500
        %v1505 = vld [vmem:[%s425] sm:$0xe]
        %v1506 = vld [vmem:[%s425 + $0x8] sm:$0xe]
        %v1511 = vrot.slane %v1505, 5
        %v1512 = vrot.slane %v1511, 4
        %v1513 = vrot.slane %v1362, 5
        %v1514 = vsel %vm738, %v1512, %v1513
        %v1515 = vrot.slane %v1506, 5
        %v1516 = vrot.slane %v1515, 4
        %v1517 = vrot.slane %v1364, 5
        %v1518 = vsel %vm738, %v1516, %v1517
        %s1519 = scalar_lea.vmem %s3, 512
        %v1520 = vld [vmem:[%s1519] sm:$0xf]
        %v1521 = vld [vmem:[%s1519 + $0x4] sm:$0xf]
        %v1522 = vld [vmem:[%s1519 + $0x8] sm:$0xf]
        %v1523 = vld [vmem:[%s1519 + $0xc] sm:$0xf]
        %v1524 = vld [vmem:[%s1519 + $0x10] sm:$0xf]
        %v1525 = vld [vmem:[%s1519 + $0x14] sm:$0xf]
        %v1526 = vld [vmem:[%s1519 + $0x18] sm:$0xf]
        %v1527 = vld [vmem:[%s1519 + $0x1c] sm:$0xf]
        %v1528 = vld [vmem:[%s1519 + $0x20] sm:$0xf]
        %v1529 = vld [vmem:[%s1519 + $0x24] sm:$0xf]
        %v1530 = vld [vmem:[%s1519 + $0x28] sm:$0xf]
        %v1531 = vld [vmem:[%s1519 + $0x2c] sm:$0xf]
        %v1532 = vld [vmem:[%s1519 + $0x30] sm:$0xf]
        %v1533 = vld [vmem:[%s1519 + $0x34] sm:$0xf]
        %v1534 = vld [vmem:[%s1519 + $0x38] sm:$0xf]
        %v1535 = vld [vmem:[%s1519 + $0x3c] sm:$0xf]
        %v1536 = vunpack.c.l.b16 %v1514
        %v1537 = vunpack.c.l.b16 %v1518
        %v1538 = vpack.c.b16 %v1537, %v1536
        %v1556 = vunpack.c.l.b16 %v1520
        %v1557 = vunpack.c.l.b16 %v1521
        %v1558 = vunpack.c.l.b16 %v1522
        %v1559 = vunpack.c.l.b16 %v1523
        %v1560 = vunpack.c.l.b16 %v1524
        %v1561 = vunpack.c.l.b16 %v1525
        %v1562 = vunpack.c.l.b16 %v1526
        %v1563 = vunpack.c.l.b16 %v1527
        %v1564 = vunpack.c.l.b16 %v1528
        %v1565 = vunpack.c.l.b16 %v1529
        %v1566 = vunpack.c.l.b16 %v1530
        %v1567 = vunpack.c.l.b16 %v1531
        %v1568 = vunpack.c.l.b16 %v1532
        %v1569 = vunpack.c.l.b16 %v1533
        %v1570 = vunpack.c.l.b16 %v1534
        %v1571 = vunpack.c.l.b16 %v1535
        %v1572 = vpack.c.b16 %v1557, %v1556
        %v1573 = vpack.c.b16 %v1559, %v1558
        %v1574 = vpack.c.b16 %v1561, %v1560
        %v1575 = vpack.c.b16 %v1563, %v1562
        %v1576 = vpack.c.b16 %v1565, %v1564
        %v1577 = vpack.c.b16 %v1567, %v1566
        %v1578 = vpack.c.b16 %v1569, %v1568
        %v1579 = vpack.c.b16 %v1571, %v1570
        %1588 = vmatprep.subr.bf16.mxu0 0
        %1589 = vmatpush1.bf16.msra.mxu0 %v1572
        %1590 = vmatprep.subr.bf16.mxu0 0
        %1591 = vmatpush1.bf16.msra.mxu0 %v1573
        %1592 = vmatprep.subr.bf16.mxu0 0
        %1593 = vmatpush1.bf16.msra.mxu0 %v1574
        %1594 = vmatprep.subr.bf16.mxu0 0
        %1595 = vmatpush1.bf16.msra.mxu0 %v1575
        %1596 = vmatprep.subr.bf16.mxu0 0
        %1597 = vmatpush1.bf16.msra.mxu0 %v1576
        %1598 = vmatprep.subr.bf16.mxu0 0
        %1599 = vmatpush1.bf16.msra.mxu0 %v1577
        %1600 = vmatprep.subr.bf16.mxu0 0
        %1601 = vmatpush1.bf16.msra.mxu0 %v1578
        %1602 = vmatprep.subr.bf16.mxu0 0
        %1603 = vmatpush1.bf16.msra.mxu0 %v1579
        %1604 = vmatprep.subr.bf16.mxu0 0
        %1605 = vmatpush1.bf16.msra.mxu0 0
        %1606 = vmatprep.subr.bf16.mxu0 0
        %1607 = vmatpush1.bf16.msra.mxu0 0
        %1608 = vmatprep.subr.bf16.mxu0 0
        %1609 = vmatpush1.bf16.msra.mxu0 0
        %1610 = vmatprep.subr.bf16.mxu0 0
        %1611 = vmatpush1.bf16.msra.mxu0 0
        %1612 = vmatprep.subr.bf16.mxu0 0
        %1613 = vmatpush1.bf16.msra.mxu0 0
        %1614 = vmatprep.subr.bf16.mxu0 0
        %1615 = vmatpush1.bf16.msra.mxu0 0
        %1616 = vmatprep.subr.bf16.mxu0 0
        %1617 = vmatpush1.bf16.msra.mxu0 0
        %1618 = vmatprep.subr.bf16.mxu0 0
        %1619 = vmatpush1.bf16.msra.mxu0 0
        %1620 = vmatprep.mubr.bf16.mxu0 0
        %1621 = vmatmul.mubr.bf16.gmra.mrb[0].mxu0 %v1538
        %v1622 = vpop.f32.mrb[0].mxu0
        %v1623 = vadd.f32 0.0, %v1622
        %v1624 = vpop.f32.mrb[0].mxu0
        %v1625 = vpop.f32.mrb[0].mxu0
        %v1626 = vadd.f32 0.0, %v1625
        %v1627 = vpop.f32.mrb[0].mxu0
        %1628 = vdwg.mxu0
        %v1629 = vadd.f32 %v1503, %v1623
        %v1630 = vadd.f32 %v1504, %v1626
        %v1631 = vpack.c.bf16 %v1629, %v1629
        %v1632 = vpack.c.bf16 %v1630, %v1630
        %1633 = vst [vmem:[%s454] sm:$0xf] %v1631
        %1634 = vst [vmem:[%s454 + $0x4] sm:$0xf] %v1632
        %v1635 = vadd.f32 %v1629, %v1630
        %v1636 = vrot.slane %v1635, 4
        %v1637 = vadd.f32 %v1635, %v1636
        %v1638 = vrot.slane %v1637, 2
        %v1639 = vadd.f32 %v1637, %v1638
        %v1640 = vrot.slane %v1639, 1
        %v1641 = vadd.f32 %v1639, %v1640
        %1642 = vst [vmem:[%s469] sm:$0x1] %v1641
        %v1643 = vmul.f32 %v1629, %v1629
        %v1644 = vmul.f32 %v1630, %v1630
        %v1645 = vadd.f32 %v1643, %v1644
        %v1646 = vrot.slane %v1645, 4
        %v1647 = vadd.f32 %v1645, %v1646
        %v1648 = vrot.slane %v1647, 2
        %v1649 = vadd.f32 %v1647, %v1648
        %v1650 = vrot.slane %v1649, 1
        %v1651 = vadd.f32 %v1649, %v1650
        %1652 = vst [vmem:[%s472] sm:$0x1] %v1651
        %s1653 = sand.u32 %s129, 1
        %s1654 = sand.u32 %s129, 1
        %s1655 = smul.addr %s1654, 8
        %s1656 = scalar_lea.vmem [#allocation5], %s1655
        %p1657 = scmp.lt.s32.totalorder %s18, 7
        %s1658 = scalar_select %p1657, %s18, 7
        %s1659 = scalar_lea.vmem %s5, %s1658
        %p1660 = scmp.lt.s32.totalorder %s18, 7
        %s1661 = scalar_select %p1660, %s18, 7
        %s1662 = scalar_lea.vmem %s6, %s1661
        // Predicated region
        $region160: #{residual_block_pallas.7} parent=146 // pred_check
          %p1663 = pneg %p139
        $region161: #{residual_block_pallas.7} parent=146 // pred_check_branch
          %1665 = sbr.rel (%p1663) target = $region163
        $region162: #{residual_block_pallas.7} parent=146 // pred_region
          %s1666 = smul.addr %s18, 4
          %s1667 = scalar_lea.vmem %s4, %s1666
          // Predicated region
          $region164: #{residual_block_pallas.7} parent=162 // pred_check
            _
          $region165: #{residual_block_pallas.7} parent=162 // pred_check_branch
            %1669 = sbr.rel (0) target = $region167
          $region166: #{residual_block_pallas.7} parent=162 // pred_region
            // Predicated region
            $region168: #{residual_block_pallas.7} parent=166 // pred_check
              _
            $region169: #{residual_block_pallas.7} parent=166 // pred_check_branch
              %1671 = sbr.rel target = $region171
            $region170: #{residual_block_pallas.7} parent=166 // pred_region
              // Predicated region
              $region183: #{residual_block_pallas.7} parent=170 // pred_check
                _
              $region184: #{residual_block_pallas.7} parent=170 // pred_check_branch
                %1688 = sbr.rel (0) target = $region186
              $region185: #{residual_block_pallas.7} parent=170 // pred_region
                loop: start=0, step=1, limit=1
                $region187: #{residual_block_pallas.7} parent=185 // loop_pre_header
                  _
                $region188: #{residual_block_pallas.7} parent=185 // loop_header
                  %s1690 = sphi 0, %s1694
                  %p1691 = scmp.ge.s32.totalorder %s1690, 1
                  %s1695 = sphi %s1656, %s1656
                  %s1696 = sphi %s1667, %s1667
                $region189: #{residual_block_pallas.7} parent=185 // loop_header_branch
                  %1693 = sbr.rel (%p1691) target = $region193
                $region190: #{residual_block_pallas.7} parent=185 // loop_body
                  _
                $region191: #{residual_block_pallas.7} parent=185 // loop_footer
                  %s1694 = sadd.s32 1, %s1690
                $region192: #{residual_block_pallas.7} parent=185 // loop_footer_branch
                  %1689 = sbr.rel target = $region188
                $region193: #{residual_block_pallas.7} parent=185 // loop_exit
                  _
                loop: start=0, step=1, limit=1
                $region194: #{residual_block_pallas.7} parent=185 // loop_pre_header
                  _
                $region195: #{residual_block_pallas.7} parent=185 // loop_header
                  %s1699 = sphi 0, %s1703
                  %p1700 = scmp.ge.s32.totalorder %s1699, 1
                  %s1704 = sphi %s1656, %s1656
                  %s1705 = sphi %s1667, %s1667
                $region196: #{residual_block_pallas.7} parent=185 // loop_header_branch
                  %1702 = sbr.rel (%p1700) target = $region200
                $region197: #{residual_block_pallas.7} parent=185 // loop_body
                  %v1706 = vld [vmem:[%s1704] sm:$0xf]
                  %1707 = vst [vmem:[%s1705] sm:$0xf] %v1706
                  %v1708 = vld [vmem:[%s1704 + $0x4] sm:$0xf]
                  %1709 = vst [vmem:[%s1705 + $0x20] sm:$0xf] %v1708
                $region198: #{residual_block_pallas.7} parent=185 // loop_footer
                  %s1703 = sadd.s32 1, %s1699
                $region199: #{residual_block_pallas.7} parent=185 // loop_footer_branch
                  %1698 = sbr.rel target = $region195
                $region200: #{residual_block_pallas.7} parent=185 // loop_exit
                  _
              $region186: #{residual_block_pallas.7} parent=170 // pred_fallthru
                _
            $region171: #{residual_block_pallas.7} parent=166 // pred_fallthru
              _
            // Predicated region
            $region172: #{residual_block_pallas.7} parent=166 // pred_check
              _
            $region173: #{residual_block_pallas.7} parent=166 // pred_check_branch
              %1673 = sbr.rel (0) target = $region175
            $region174: #{residual_block_pallas.7} parent=166 // pred_region
              loop: start=0, step=1, limit=1
              $region176: #{residual_block_pallas.7} parent=174 // loop_pre_header
                _
              $region177: #{residual_block_pallas.7} parent=174 // loop_header
                %s1676 = sphi 0, %s1680
                %p1677 = scmp.ge.s32.totalorder %s1676, 1
                %s1681 = sphi %s1656, %s1656
                %s1682 = sphi %s1667, %s1667
              $region178: #{residual_block_pallas.7} parent=174 // loop_header_branch
                %1679 = sbr.rel (%p1677) target = $region182
              $region179: #{residual_block_pallas.7} parent=174 // loop_body
                %v1683 = vld [vmem:[%s1681] sm:$0xf]
                %1684 = vst [vmem:[%s1682] sm:$0xf] %v1683
                %v1685 = vld [vmem:[%s1681 + $0x4] sm:$0xf]
                %1686 = vst [vmem:[%s1682 + $0x20] sm:$0xf] %v1685
              $region180: #{residual_block_pallas.7} parent=174 // loop_footer
                %s1680 = sadd.s32 1, %s1676
              $region181: #{residual_block_pallas.7} parent=174 // loop_footer_branch
                %1675 = sbr.rel target = $region177
              $region182: #{residual_block_pallas.7} parent=174 // loop_exit
                _
            $region175: #{residual_block_pallas.7} parent=166 // pred_fallthru
              _
          $region167: #{residual_block_pallas.7} parent=162 // pred_fallthru
            _
          %1710 = vnop
        $region163: #{residual_block_pallas.7} parent=146 // pred_fallthru
          _
        // Predicated region
        $region201: #{residual_block_pallas.7} parent=146 // pred_check
          %p1711 = pneg %p165
        $region202: #{residual_block_pallas.7} parent=146 // pred_check_branch
          %1713 = sbr.rel (%p1711) target = $region204
        $region203: #{residual_block_pallas.7} parent=146 // pred_region
          _
        $region204: #{residual_block_pallas.7} parent=146 // pred_fallthru
          _
        // Predicated region
        $region205: #{residual_block_pallas.7} parent=146 // pred_check
          %p1714 = pneg %p191
        $region206: #{residual_block_pallas.7} parent=146 // pred_check_branch
          %1716 = sbr.rel (%p1714) target = $region208
        $region207: #{residual_block_pallas.7} parent=146 // pred_region
          _
        $region208: #{residual_block_pallas.7} parent=146 // pred_fallthru
          _
      $region147: #{residual_block_pallas.7} parent=5 // pred_fallthru
        _
      %p1717 = scmp.le.s32.totalorder 2, %s13
      // Predicated region
      $region209: #{residual_block_pallas.7} parent=5 // pred_check
        %p1718 = pneg %p1717
      $region210: #{residual_block_pallas.7} parent=5 // pred_check_branch
        %1720 = sbr.rel (%p1718) target = $region212
      $region211: #{residual_block_pallas.7} parent=5 // pred_region
        %s1721 = ssub.s32 %s13, 2
        // Predicated region
        $region213: #{residual_block_pallas.7} parent=211 // pred_check
          %p1722 = pneg %p145
        $region214: #{residual_block_pallas.7} parent=211 // pred_check_branch
          %1724 = sbr.rel (%p1722) target = $region216
        $region215: #{residual_block_pallas.7} parent=211 // pred_region
          %s1725 = sand.u32 %s130, 1
          %s1726 = sand.u32 %s130, 1
          %s1727 = smul.addr %s1726, 8
          %s1728 = scalar_lea.vmem [#allocation5], %s1727
        $region216: #{residual_block_pallas.7} parent=211 // pred_fallthru
          _
        // Predicated region
        $region217: #{residual_block_pallas.7} parent=211 // pred_check
          %p1729 = pneg %p171
        $region218: #{residual_block_pallas.7} parent=211 // pred_check_branch
          %1731 = sbr.rel (%p1729) target = $region220
        $region219: #{residual_block_pallas.7} parent=211 // pred_region
          %p1732 = scmp.lt.s32.totalorder %s19, 7
          %s1733 = scalar_select %p1732, %s19, 7
          %s1734 = scalar_lea.vmem %s5, %s1733
        $region220: #{residual_block_pallas.7} parent=211 // pred_fallthru
          _
        // Predicated region
        $region221: #{residual_block_pallas.7} parent=211 // pred_check
          %p1735 = pneg %p197
        $region222: #{residual_block_pallas.7} parent=211 // pred_check_branch
          %1737 = sbr.rel (%p1735) target = $region224
        $region223: #{residual_block_pallas.7} parent=211 // pred_region
          %p1738 = scmp.lt.s32.totalorder %s19, 7
          %s1739 = scalar_select %p1738, %s19, 7
          %s1740 = scalar_lea.vmem %s6, %s1739
        $region224: #{residual_block_pallas.7} parent=211 // pred_fallthru
          _
      $region212: #{residual_block_pallas.7} parent=5 // pred_fallthru
        _
    $region6: #{residual_block_pallas.7} parent=1 // loop_footer
      %s17 = sadd.s32 1, %s13
    $region7: #{residual_block_pallas.7} parent=1 // loop_footer_branch
      %12 = sbr.rel target = $region3
    $region8: #{residual_block_pallas.7} parent=1 // loop_exit
      _

</llo_original>
